<compile_context>
chip_gen: v6e
topology: v6e:2x2x1
jax: 0.10.0
libtpu: 0.0.40
codegen_flags: <defaults>
</compile_context>

<pallas_src>
import functools

import numpy as np
import jax
import jax.numpy as jnp
from jax import lax
from jax.experimental import pallas as pl
from jax.experimental.pallas import tpu as pltpu


_dot = functools.partial(jnp.dot, preferred_element_type=jnp.float32)


# ---------------- constant pooling selectors (numpy, built once at import) ----------------

def _pool_col_selectors(ch, w_in):
    """(2, ch*w_in, ch*(w_in//2)) 0/1 matrices picking even / odd columns per channel."""
    w_out = w_in // 2
    rows = np.arange(ch * w_in)
    cols = np.arange(ch * w_out)
    cr, c = rows // w_in, rows % w_in
    cc, ow = cols // w_out, cols % w_out
    same = cr[:, None] == cc[None, :]
    a = (same & (c[:, None] == 2 * ow[None, :])).astype(np.float32)
    b = (same & (c[:, None] == 2 * ow[None, :] + 1)).astype(np.float32)
    return np.stack([a, b])


def _pool_row_selectors(h_in):
    """(2, h_in//2, h_in) 0/1 matrices picking rows 2k / 2k+1."""
    r = np.arange(h_in // 2)[:, None]
    s = np.arange(h_in)[None, :]
    return np.stack([(s == 2 * r).astype(np.float32),
                     (s == 2 * r + 1).astype(np.float32)])


_PC1 = _pool_col_selectors(2, 24)      # (2, 48, 24)
_PR1 = _pool_row_selectors(24)         # (2, 12, 24)
_PC2 = _pool_col_selectors(16, 8)      # (2, 128, 64)


def _conv_band_mats(w, in_w, out_w):
    """Fold a (out_ch, in_ch, 5, 5) conv weight into 5 banded matrices (one per row
    offset i): M[i][ci*in_w + c, co*out_w + ow] = w[co, ci, i, c-ow] for 0 <= c-ow < 5,
    so conv = sum_i rows_i @ M[i] with rows_i the sublane-shifted input rows."""
    out_ch, in_ch, kh, kw = w.shape
    rows = np.arange(in_ch * in_w)
    cols = np.arange(out_ch * out_w)
    ci, c = rows // in_w, rows % in_w
    co, ow = cols // out_w, cols % out_w
    j = c[:, None] - ow[None, :]
    valid = jnp.asarray((j >= 0) & (j < kw))
    jc = np.clip(j, 0, kw - 1)
    mats = []
    for i in range(kh):
        wi = w[:, :, i, :]                                  # (out_ch, in_ch, kw)
        g = wi[co[None, :], ci[:, None], jc]                # (rows, cols) gather
        mats.append(jnp.where(valid, g, 0.0))
    return jnp.stack(mats, axis=0).astype(jnp.float32)


# --------------------------------- Kernel A: conv tower ------------------------------------

def _conv_tower_kernel(x_ref, m1_ref, b1_ref, pc1_ref, pr1_ref,
                       m2_ref, b2_ref, pc2_ref, wp_ref, fc1b_ref,
                       fc2w_ref, fc2b_ref, o_ref, p1_scr):
    # ---- conv1 (1 -> 2, k=5) as 5 MXU matmuls over sublane-shifted row windows ----
    acc1 = _dot(x_ref[0, 0:24, :], m1_ref[0])
    for i in range(1, 5):
        acc1 = acc1 + _dot(x_ref[0, i:i + 24, :], m1_ref[i])
    act1 = jnp.maximum(acc1 + b1_ref[...], 0.0)                    # (24, 48) = (oh, co*24+ow)

    # ---- 2x2 maxpool via constant 0/1 selection matmuls ----
    cm1 = jnp.maximum(_dot(act1, pc1_ref[0]), _dot(act1, pc1_ref[1]))        # (24, 24)
    p1_scr[...] = jnp.maximum(_dot(pr1_ref[0], cm1), _dot(pr1_ref[1], cm1))  # (12, 24)

    # ---- conv2 (2 -> 16, k=5): slice the scratch ref inside the loop ----
    acc2 = _dot(p1_scr[0:8, :], m2_ref[0])
    for i in range(1, 5):
        acc2 = acc2 + _dot(p1_scr[i:i + 8, :], m2_ref[i])
    act2 = jnp.maximum(acc2 + b2_ref[...], 0.0)                    # (8, 128) = (oh, co*8+ow)

    # ---- column half of pool2; row half folded into the fc1 contraction ----
    cm2 = jnp.maximum(_dot(act2, pc2_ref[0]), _dot(act2, pc2_ref[1]))        # (8, 64)

    h = fc1b_ref[...]                                              # (1, 64)
    for t in range(4):
        row = jnp.maximum(cm2[2 * t:2 * t + 1, :], cm2[2 * t + 1:2 * t + 2, :])
        h = h + _dot(row, wp_ref[t])                               # (1,64) x (64,64)
    h = jnp.maximum(h, 0.0)                                        # ReLU(fc1)

    z = _dot(h, fc2w_ref[...]) + fc2b_ref[...]                     # fc2 -> (1, 2)
    o_ref[...] = z.reshape(1, 1, 2)


def conv_tower(x, m1, b1r, pc1, pr1, m2, b2r, pc2, wp, fc1b, fc2w, fc2b):
    B = x.shape[0]

    def const_spec(a):
        nd = a.ndim
        return pl.BlockSpec(a.shape, lambda b: (0,) * nd)

    consts = (m1, b1r, pc1, pr1, m2, b2r, pc2, wp, fc1b, fc2w, fc2b)
    return pl.pallas_call(
        _conv_tower_kernel,
        out_shape=jax.ShapeDtypeStruct((B, 1, 2), jnp.float32),
        grid=(B,),
        in_specs=[pl.BlockSpec((1, 28, 28), lambda b: (b, 0, 0))]
                 + [const_spec(a) for a in consts],
        out_specs=pl.BlockSpec((1, 1, 2), lambda b: (b, 0, 0)),
        scratch_shapes=[pltpu.VMEM((12, 24), jnp.float32)],        # pooled conv1
        compiler_params=pltpu.CompilerParams(dimension_semantics=("parallel",)),
        cost_estimate=pl.CostEstimate(flops=B * 1_100_000, transcendentals=0,
                                      bytes_accessed=B * 3200 + 250_000),
    )(x, *consts)


# -------------------------- Kernel B: QNN + fc3 + cat((y,1-y)) -----------------------------

def _qnn_head_kernel(t_ref, uat_ref, o_ref):
    f32 = jnp.float32
    tr = t_ref[0]                                          # (1, 8) packed per-sample scalars
    c0, s0 = tr[:, 0:1], tr[:, 1:2]
    c1, s1 = tr[:, 2:3], tr[:, 3:4]
    c2, s2 = tr[:, 4:5], tr[:, 5:6]
    w3, b3 = tr[:, 6:7], tr[:, 7:8]

    col = lax.broadcasted_iota(jnp.int32, (1, 4), 1)
    m0 = jnp.where((col == 1) | (col == 3), 1.0, 0.0)      # qubit-0 mask [0,1,0,1]
    m1 = jnp.where(col >= 2, 1.0, 0.0)                     # qubit-1 mask [0,0,1,1]
    mx = jnp.where((col == 1) | (col == 2), 1.0, 0.0)      # q0 XOR q1    [0,1,1,0]
    zz = 1.0 - 2.0 * mx                                    # <Z (x) Z> parity [1,-1,-1,1]
    one = jnp.ones((1, 4), f32)

    def phase(pr, pi, c, s, m):                            # diag(e^{i*theta}) on mask m
        cm = 1.0 + m * (c - 1.0)
        sm = m * s
        return pr * cm - pi * sm, pr * sm + pi * cm

    def gate(pr, pi, rows):                                # pr' = pr @ U^T via VPU MACs
        npr = pr[:, 0:1] * rows[0]
        npi = pi[:, 0:1] * rows[0]
        for k in range(1, 4):
            npr = npr + pr[:, k:k + 1] * rows[k]
            npi = npi + pi[:, k:k + 1] * rows[k]
        return npr, npi

    hh_rows = [0.5 * one, 0.5 * (one - 2.0 * m0), 0.5 * (one - 2.0 * m1), 0.5 * zz]

    # ZZFeatureMap rep 1: H(x)H on |00> -> uniform real state; then diagonal phases.
    pr, pi = 0.5 * one, jnp.zeros((1, 4), f32)
    pr, pi = phase(pr, pi, c0, s0, m0)                     # P(2*x0) on q0
    pr, pi = phase(pr, pi, c1, s1, m1)                     # P(2*x1) on q1
    pr, pi = phase(pr, pi, c2, s2, mx)                     # CX . P(2(pi-x0)(pi-x1)) . CX
    # rep 2
    pr, pi = gate(pr, pi, hh_rows)
    pr, pi = phase(pr, pi, c0, s0, m0)
    pr, pi = phase(pr, pi, c1, s1, m1)
    pr, pi = phase(pr, pi, c2, s2, mx)
    # folded RealAmplitudes(2, reps=1) ansatz
    pr, pi = gate(pr, pi, [uat_ref[k:k + 1, :] for k in range(4)])

    probs = pr * pr + pi * pi
    q = jnp.sum(probs * zz, axis=1, keepdims=True)         # (1, 1) expectation <Z(x)Z>
    y = q * w3 + b3                                        # fc3: Linear(1, 1)
    col2 = lax.broadcasted_iota(jnp.int32, (1, 2), 1)
    o_ref[...] = jnp.where(col2 == 0, y, 1.0 - y).reshape(1, 1, 2)


def qnn_head(trig, uat):
    B = trig.shape[0]
    return pl.pallas_call(
        _qnn_head_kernel,
        out_shape=jax.ShapeDtypeStruct((B, 1, 2), jnp.float32),
        grid=(B,),
        in_specs=[pl.BlockSpec((1, 1, 8), lambda b: (b, 0, 0)),
                  pl.BlockSpec((4, 4), lambda b: (0, 0))],
        out_specs=pl.BlockSpec((1, 1, 2), lambda b: (b, 0, 0)),
        compiler_params=pltpu.CompilerParams(dimension_semantics=("parallel",)),
        cost_estimate=pl.CostEstimate(flops=B * 300, transcendentals=0,
                                      bytes_accessed=B * 40 + 64),
    )(trig, uat)


# ---------------------------------- QNN fixed matrices -------------------------------------

_CX01 = np.array([[1, 0, 0, 0],                            # cx(control=q0, target=q1)
                  [0, 0, 0, 1],
                  [0, 0, 1, 0],
                  [0, 1, 0, 0]], dtype=np.float32)


def _ry(theta):
    c, s = jnp.cos(theta / 2.0), jnp.sin(theta / 2.0)
    return jnp.stack([jnp.stack([c, -s]), jnp.stack([s, c])])


def _ansatz_matrix(theta):
    """RealAmplitudes(2, reps=1): ry(t0)@q0, ry(t1)@q1, cx, ry(t2)@q0, ry(t3)@q1,
    folded into one 4x4 real matrix (jnp -> traceable/differentiable in theta)."""
    i2 = jnp.eye(2, dtype=jnp.float32)
    cx = jnp.asarray(_CX01)
    k1 = jnp.kron(i2, _ry(theta[0]))
    k2 = jnp.kron(_ry(theta[1]), i2)
    k3 = jnp.kron(i2, _ry(theta[2]))
    k4 = jnp.kron(_ry(theta[3]), i2)
    return k4 @ k3 @ cx @ k2 @ k1


# ------------------------------------- Forward pass ----------------------------------------

def net_forward(x_nchw, params):
    B = x_nchw.shape[0]
    f32 = jnp.float32
    x = x_nchw.reshape(B, 28, 28).astype(f32)                 # NCHW, C=1 -> (B, 28, 28)

    # weight-only layout plumbing (done once by XLA; no activation transposes)
    m1 = _conv_band_mats(params["conv1_w"].astype(f32), 28, 24)     # (5, 28, 48)
    m2 = _conv_band_mats(params["conv2_w"].astype(f32), 12, 8)      # (5, 24, 128)
    b1r = jnp.repeat(params["conv1_b"].astype(f32), 24).reshape(1, 48)
    b2r = jnp.repeat(params["conv2_b"].astype(f32), 8).reshape(1, 128)
    wp = params["fc1_w"].astype(f32).reshape(64, 16, 4, 4)          # (n, c, h, w)
    wp = jnp.transpose(wp, (2, 1, 3, 0)).reshape(4, 64, 64)         # (h, c*4+w, n)
    fc1b = params["fc1_b"].astype(f32).reshape(1, 64)
    fc2w = params["fc2_w"].astype(f32).T                            # (64, 2)
    fc2b = params["fc2_b"].astype(f32).reshape(1, 2)

    # Kernel A: conv1 -> pool -> conv2 -> pool -> (dropout = identity) -> fc1 -> fc2
    z = conv_tower(x, m1, b1r, jnp.asarray(_PC1), jnp.asarray(_PR1), m2, b2r,
                   jnp.asarray(_PC2), wp, fc1b, fc2w, fc2b).reshape(B, 2)

    # feature-map angle trig (tiny, data-dependent) evaluated by XLA between kernels
    # TODO(synk): keep sin/cos outside the kernels (Mosaic trig lowering not relied on).
    x0, x1 = z[:, 0:1], z[:, 1:2]
    a0, a1 = 2.0 * x0, 2.0 * x1
    a2 = 2.0 * (jnp.pi - x0) * (jnp.pi - x1)
    w3 = jnp.broadcast_to(params["fc3_w"].astype(f32).reshape(1, 1), (B, 1))
    b3 = jnp.broadcast_to(params["fc3_b"].astype(f32).reshape(1, 1), (B, 1))
    trig = jnp.concatenate([jnp.cos(a0), jnp.sin(a0), jnp.cos(a1), jnp.sin(a1),
                            jnp.cos(a2), jnp.sin(a2), w3, b3], axis=1).reshape(B, 1, 8)

    # TODO(synk): the exact `qnn` is an injected runtime dependency in the original
    # module; we implement the standard ZZFeatureMap(2,reps=2)+RealAmplitudes(2,1)
    # EstimatorQNN with observable Z(x)Z.
    uat = _ansatz_matrix(params["qnn_theta"].astype(f32)).T

    # Kernel B: QNN statevector + fc3 + cat((y, 1-y), -1)
    return qnn_head(trig, uat).reshape(B, 2)


# ---------------------------------------- Params -------------------------------------------

def init_params(key):
    ks = jax.random.split(key, 10)

    def n(k, shape, scale=0.1):
        return scale * jax.random.normal(k, shape, jnp.float32)

    return {
        "conv1_w": n(ks[0], (2, 1, 5, 5)),          # PyTorch Conv2d(1, 2, 5) layout
        "conv1_b": n(ks[1], (2,)),
        "conv2_w": n(ks[2], (16, 2, 5, 5)),         # PyTorch Conv2d(2, 16, 5) layout
        "conv2_b": n(ks[3], (16,)),
        "fc1_w": n(ks[4], (64, 256)),               # PyTorch Linear(256, 64) layout
        "fc1_b": n(ks[5], (64,)),
        "fc2_w": n(ks[6], (2, 64)),                 # PyTorch Linear(64, 2) layout
        "fc2_b": n(ks[7], (2,)),
        "qnn_theta": jax.random.uniform(ks[8], (4,), jnp.float32, 0.0, 2.0 * np.pi),
        "fc3_w": n(ks[9], (1, 1)),                  # PyTorch Linear(1, 1) layout
        "fc3_b": jnp.zeros((1,), jnp.float32),
    }


if __name__ == "__main__":
    key = jax.random.PRNGKey(0)
    kx, kp = jax.random.split(key)
    x = jax.random.normal(kx, (2, 1, 28, 28), jnp.float32)     # PyTorch NCHW input
    params = init_params(kp)

    fwd = jax.jit(net_forward)
    out = jax.block_until_ready(fwd(x, params))

    assert out.shape == (2, 2) and out.dtype == jnp.float32
    assert bool(jnp.all(jnp.isfinite(out)))
    # rows are [y, 1 - y]
    assert bool(jnp.allclose(out[:, 0] + out[:, 1], 1.0, atol=1e-5))
    print("KERNEL_OK")
</pallas_src>

<mosaic_0001>
module attributes {stable_mosaic.version = 11 : i64} {
  func.func @_conv_tower_kernel(%arg0: i32, %arg1: memref<1x28x28xf32, #tpu.memory_space<vmem>>, %arg2: memref<5x28x48xf32, #tpu.memory_space<vmem>>, %arg3: memref<1x48xf32, #tpu.memory_space<vmem>>, %arg4: memref<2x48x24xf32, #tpu.memory_space<vmem>>, %arg5: memref<2x12x24xf32, #tpu.memory_space<vmem>>, %arg6: memref<5x24x128xf32, #tpu.memory_space<vmem>>, %arg7: memref<1x128xf32, #tpu.memory_space<vmem>>, %arg8: memref<2x128x64xf32, #tpu.memory_space<vmem>>, %arg9: memref<4x64x64xf32, #tpu.memory_space<vmem>>, %arg10: memref<1x64xf32, #tpu.memory_space<vmem>>, %arg11: memref<64x2xf32, #tpu.memory_space<vmem>>, %arg12: memref<1x2xf32, #tpu.memory_space<vmem>>, %arg13: memref<1x1x2xf32, #tpu.memory_space<vmem>>, %arg14: memref<12x24xf32, #tpu.memory_space<vmem>>) attributes {dimension_semantics = [#tpu.dimension_semantics<parallel>], iteration_bounds = array<i64: 2>, scalar_prefetch = 0 : i64, scratch_operands = 1 : i64, tpu.core_type = #tpu.core_type<tc>, window_params = [{transform_indices = @transform_0, window_bounds = array<i64: 1, 28, 28>}, {pipeline_mode = #tpu.pipeline_mode<synchronous>, transform_indices = @transform_1, window_bounds = array<i64: 5, 28, 48>}, {pipeline_mode = #tpu.pipeline_mode<synchronous>, transform_indices = @transform_2, window_bounds = array<i64: 1, 48>}, {pipeline_mode = #tpu.pipeline_mode<synchronous>, transform_indices = @transform_3, window_bounds = array<i64: 2, 48, 24>}, {pipeline_mode = #tpu.pipeline_mode<synchronous>, transform_indices = @transform_4, window_bounds = array<i64: 2, 12, 24>}, {pipeline_mode = #tpu.pipeline_mode<synchronous>, transform_indices = @transform_5, window_bounds = array<i64: 5, 24, 128>}, {pipeline_mode = #tpu.pipeline_mode<synchronous>, transform_indices = @transform_6, window_bounds = array<i64: 1, 128>}, {pipeline_mode = #tpu.pipeline_mode<synchronous>, transform_indices = @transform_7, window_bounds = array<i64: 2, 128, 64>}, {pipeline_mode = #tpu.pipeline_mode<synchronous>, transform_indices = @transform_8, window_bounds = array<i64: 4, 64, 64>}, {pipeline_mode = #tpu.pipeline_mode<synchronous>, transform_indices = @transform_9, window_bounds = array<i64: 1, 64>}, {pipeline_mode = #tpu.pipeline_mode<synchronous>, transform_indices = @transform_10, window_bounds = array<i64: 64, 2>}, {pipeline_mode = #tpu.pipeline_mode<synchronous>, transform_indices = @transform_11, window_bounds = array<i64: 1, 2>}, {transform_indices = @transform_12, window_bounds = array<i64: 1, 1, 2>}]} {
    %c0 = arith.constant 0 : index
    %c0_0 = arith.constant 0 : index
    %c0_1 = arith.constant 0 : index
    %0 = vector.load %arg1[%c0, %c0_0, %c0_1] : memref<1x28x28xf32, #tpu.memory_space<vmem>>, vector<1x24x28xf32>
    %1 = vector.shape_cast %0 : vector<1x24x28xf32> to vector<24x28xf32>
    %c0_2 = arith.constant 0 : index
    %c0_3 = arith.constant 0 : index
    %c0_4 = arith.constant 0 : index
    %2 = vector.load %arg2[%c0_2, %c0_3, %c0_4] : memref<5x28x48xf32, #tpu.memory_space<vmem>>, vector<1x28x48xf32>
    %3 = vector.shape_cast %2 : vector<1x28x48xf32> to vector<28x48xf32>
    %cst = arith.constant dense<0.000000e+00> : vector<24x48xf32>
    %4 = tpu.matmul %1, %3, %cst {dimension_numbers = #tpu.dot_dimension_numbers<[1], [0], [0], [1], [0, 0, 1, 1], [], []>} : vector<24x28xf32>, vector<28x48xf32>, vector<24x48xf32> -> vector<24x48xf32>
    %c0_5 = arith.constant 0 : index
    %c1 = arith.constant 1 : index
    %c0_6 = arith.constant 0 : index
    %5 = vector.load %arg1[%c0_5, %c1, %c0_6] : memref<1x28x28xf32, #tpu.memory_space<vmem>>, vector<1x24x28xf32>
    %6 = vector.shape_cast %5 : vector<1x24x28xf32> to vector<24x28xf32>
    %c1_7 = arith.constant 1 : index
    %c0_8 = arith.constant 0 : index
    %c0_9 = arith.constant 0 : index
    %7 = vector.load %arg2[%c1_7, %c0_8, %c0_9] : memref<5x28x48xf32, #tpu.memory_space<vmem>>, vector<1x28x48xf32>
    %8 = vector.shape_cast %7 : vector<1x28x48xf32> to vector<28x48xf32>
    %cst_10 = arith.constant dense<0.000000e+00> : vector<24x48xf32>
    %9 = tpu.matmul %6, %8, %cst_10 {dimension_numbers = #tpu.dot_dimension_numbers<[1], [0], [0], [1], [0, 0, 1, 1], [], []>} : vector<24x28xf32>, vector<28x48xf32>, vector<24x48xf32> -> vector<24x48xf32>
    %10 = arith.addf %4, %9 : vector<24x48xf32>
    %c0_11 = arith.constant 0 : index
    %c2 = arith.constant 2 : index
    %c0_12 = arith.constant 0 : index
    %11 = vector.load %arg1[%c0_11, %c2, %c0_12] : memref<1x28x28xf32, #tpu.memory_space<vmem>>, vector<1x24x28xf32>
    %12 = vector.shape_cast %11 : vector<1x24x28xf32> to vector<24x28xf32>
    %c2_13 = arith.constant 2 : index
    %c0_14 = arith.constant 0 : index
    %c0_15 = arith.constant 0 : index
    %13 = vector.load %arg2[%c2_13, %c0_14, %c0_15] : memref<5x28x48xf32, #tpu.memory_space<vmem>>, vector<1x28x48xf32>
    %14 = vector.shape_cast %13 : vector<1x28x48xf32> to vector<28x48xf32>
    %cst_16 = arith.constant dense<0.000000e+00> : vector<24x48xf32>
    %15 = tpu.matmul %12, %14, %cst_16 {dimension_numbers = #tpu.dot_dimension_numbers<[1], [0], [0], [1], [0, 0, 1, 1], [], []>} : vector<24x28xf32>, vector<28x48xf32>, vector<24x48xf32> -> vector<24x48xf32>
    %16 = arith.addf %10, %15 : vector<24x48xf32>
    %c0_17 = arith.constant 0 : index
    %c3 = arith.constant 3 : index
    %c0_18 = arith.constant 0 : index
    %17 = vector.load %arg1[%c0_17, %c3, %c0_18] : memref<1x28x28xf32, #tpu.memory_space<vmem>>, vector<1x24x28xf32>
    %18 = vector.shape_cast %17 : vector<1x24x28xf32> to vector<24x28xf32>
    %c3_19 = arith.constant 3 : index
    %c0_20 = arith.constant 0 : index
    %c0_21 = arith.constant 0 : index
    %19 = vector.load %arg2[%c3_19, %c0_20, %c0_21] : memref<5x28x48xf32, #tpu.memory_space<vmem>>, vector<1x28x48xf32>
    %20 = vector.shape_cast %19 : vector<1x28x48xf32> to vector<28x48xf32>
    %cst_22 = arith.constant dense<0.000000e+00> : vector<24x48xf32>
    %21 = tpu.matmul %18, %20, %cst_22 {dimension_numbers = #tpu.dot_dimension_numbers<[1], [0], [0], [1], [0, 0, 1, 1], [], []>} : vector<24x28xf32>, vector<28x48xf32>, vector<24x48xf32> -> vector<24x48xf32>
    %22 = arith.addf %16, %21 : vector<24x48xf32>
    %c0_23 = arith.constant 0 : index
    %c4 = arith.constant 4 : index
    %c0_24 = arith.constant 0 : index
    %23 = vector.load %arg1[%c0_23, %c4, %c0_24] : memref<1x28x28xf32, #tpu.memory_space<vmem>>, vector<1x24x28xf32>
    %24 = vector.shape_cast %23 : vector<1x24x28xf32> to vector<24x28xf32>
    %c4_25 = arith.constant 4 : index
    %c0_26 = arith.constant 0 : index
    %c0_27 = arith.constant 0 : index
    %25 = vector.load %arg2[%c4_25, %c0_26, %c0_27] : memref<5x28x48xf32, #tpu.memory_space<vmem>>, vector<1x28x48xf32>
    %26 = vector.shape_cast %25 : vector<1x28x48xf32> to vector<28x48xf32>
    %cst_28 = arith.constant dense<0.000000e+00> : vector<24x48xf32>
    %27 = tpu.matmul %24, %26, %cst_28 {dimension_numbers = #tpu.dot_dimension_numbers<[1], [0], [0], [1], [0, 0, 1, 1], [], []>} : vector<24x28xf32>, vector<28x48xf32>, vector<24x48xf32> -> vector<24x48xf32>
    %28 = arith.addf %22, %27 : vector<24x48xf32>
    %c0_29 = arith.constant 0 : index
    %c0_30 = arith.constant 0 : index
    %29 = vector.load %arg3[%c0_29, %c0_30] : memref<1x48xf32, #tpu.memory_space<vmem>>, vector<1x48xf32>
    %30 = vector.broadcast %29 : vector<1x48xf32> to vector<24x48xf32>
    %31 = arith.addf %28, %30 : vector<24x48xf32>
    %cst_31 = arith.constant 0.000000e+00 : f32
    %32 = vector.broadcast %cst_31 : f32 to vector<24x48xf32>
    %33 = arith.maximumf %31, %32 : vector<24x48xf32>
    %c0_32 = arith.constant 0 : index
    %c0_33 = arith.constant 0 : index
    %c0_34 = arith.constant 0 : index
    %34 = vector.load %arg4[%c0_32, %c0_33, %c0_34] : memref<2x48x24xf32, #tpu.memory_space<vmem>>, vector<1x48x24xf32>
    %35 = vector.shape_cast %34 : vector<1x48x24xf32> to vector<48x24xf32>
    %cst_35 = arith.constant dense<0.000000e+00> : vector<24x24xf32>
    %36 = tpu.matmul %33, %35, %cst_35 {dimension_numbers = #tpu.dot_dimension_numbers<[1], [0], [0], [1], [0, 0, 1, 1], [], []>} : vector<24x48xf32>, vector<48x24xf32>, vector<24x24xf32> -> vector<24x24xf32>
    %c1_36 = arith.constant 1 : index
    %c0_37 = arith.constant 0 : index
    %c0_38 = arith.constant 0 : index
    %37 = vector.load %arg4[%c1_36, %c0_37, %c0_38] : memref<2x48x24xf32, #tpu.memory_space<vmem>>, vector<1x48x24xf32>
    %38 = vector.shape_cast %37 : vector<1x48x24xf32> to vector<48x24xf32>
    %cst_39 = arith.constant dense<0.000000e+00> : vector<24x24xf32>
    %39 = tpu.matmul %33, %38, %cst_39 {dimension_numbers = #tpu.dot_dimension_numbers<[1], [0], [0], [1], [0, 0, 1, 1], [], []>} : vector<24x48xf32>, vector<48x24xf32>, vector<24x24xf32> -> vector<24x24xf32>
    %40 = arith.maximumf %36, %39 : vector<24x24xf32>
    %c0_40 = arith.constant 0 : index
    %c0_41 = arith.constant 0 : index
    %c0_42 = arith.constant 0 : index
    %41 = vector.load %arg5[%c0_40, %c0_41, %c0_42] : memref<2x12x24xf32, #tpu.memory_space<vmem>>, vector<1x12x24xf32>
    %42 = vector.shape_cast %41 : vector<1x12x24xf32> to vector<12x24xf32>
    %cst_43 = arith.constant dense<0.000000e+00> : vector<12x24xf32>
    %43 = tpu.matmul %42, %40, %cst_43 {dimension_numbers = #tpu.dot_dimension_numbers<[1], [0], [0], [1], [0, 0, 1, 1], [], []>} : vector<12x24xf32>, vector<24x24xf32>, vector<12x24xf32> -> vector<12x24xf32>
    %c1_44 = arith.constant 1 : index
    %c0_45 = arith.constant 0 : index
    %c0_46 = arith.constant 0 : index
    %44 = vector.load %arg5[%c1_44, %c0_45, %c0_46] : memref<2x12x24xf32, #tpu.memory_space<vmem>>, vector<1x12x24xf32>
    %45 = vector.shape_cast %44 : vector<1x12x24xf32> to vector<12x24xf32>
    %cst_47 = arith.constant dense<0.000000e+00> : vector<12x24xf32>
    %46 = tpu.matmul %45, %40, %cst_47 {dimension_numbers = #tpu.dot_dimension_numbers<[1], [0], [0], [1], [0, 0, 1, 1], [], []>} : vector<12x24xf32>, vector<24x24xf32>, vector<12x24xf32> -> vector<12x24xf32>
    %47 = arith.maximumf %43, %46 : vector<12x24xf32>
    %c0_48 = arith.constant 0 : index
    %c0_49 = arith.constant 0 : index
    %48 = vector.load %arg14[%c0_48, %c0_49] : memref<12x24xf32, #tpu.memory_space<vmem>>, vector<12x24xf32>
    tpu.vector_store %arg14[%c0_48, %c0_49], %47 {strides = array<i32>} : memref<12x24xf32, #tpu.memory_space<vmem>>, vector<12x24xf32>,
    %c0_50 = arith.constant 0 : index
    %c0_51 = arith.constant 0 : index
    %49 = vector.load %arg14[%c0_50, %c0_51] : memref<12x24xf32, #tpu.memory_space<vmem>>, vector<8x24xf32>
    %c0_52 = arith.constant 0 : index
    %c0_53 = arith.constant 0 : index
    %c0_54 = arith.constant 0 : index
    %50 = vector.load %arg6[%c0_52, %c0_53, %c0_54] : memref<5x24x128xf32, #tpu.memory_space<vmem>>, vector<1x24x128xf32>
    %51 = vector.shape_cast %50 : vector<1x24x128xf32> to vector<24x128xf32>
    %cst_55 = arith.constant dense<0.000000e+00> : vector<8x128xf32>
    %52 = tpu.matmul %49, %51, %cst_55 {dimension_numbers = #tpu.dot_dimension_numbers<[1], [0], [0], [1], [0, 0, 1, 1], [], []>} : vector<8x24xf32>, vector<24x128xf32>, vector<8x128xf32> -> vector<8x128xf32>
    %c1_56 = arith.constant 1 : index
    %c0_57 = arith.constant 0 : index
    %53 = vector.load %arg14[%c1_56, %c0_57] : memref<12x24xf32, #tpu.memory_space<vmem>>, vector<8x24xf32>
    %c1_58 = arith.constant 1 : index
    %c0_59 = arith.constant 0 : index
    %c0_60 = arith.constant 0 : index
    %54 = vector.load %arg6[%c1_58, %c0_59, %c0_60] : memref<5x24x128xf32, #tpu.memory_space<vmem>>, vector<1x24x128xf32>
    %55 = vector.shape_cast %54 : vector<1x24x128xf32> to vector<24x128xf32>
    %cst_61 = arith.constant dense<0.000000e+00> : vector<8x128xf32>
    %56 = tpu.matmul %53, %55, %cst_61 {dimension_numbers = #tpu.dot_dimension_numbers<[1], [0], [0], [1], [0, 0, 1, 1], [], []>} : vector<8x24xf32>, vector<24x128xf32>, vector<8x128xf32> -> vector<8x128xf32>
    %57 = arith.addf %52, %56 : vector<8x128xf32>
    %c2_62 = arith.constant 2 : index
    %c0_63 = arith.constant 0 : index
    %58 = vector.load %arg14[%c2_62, %c0_63] : memref<12x24xf32, #tpu.memory_space<vmem>>, vector<8x24xf32>
    %c2_64 = arith.constant 2 : index
    %c0_65 = arith.constant 0 : index
    %c0_66 = arith.constant 0 : index
    %59 = vector.load %arg6[%c2_64, %c0_65, %c0_66] : memref<5x24x128xf32, #tpu.memory_space<vmem>>, vector<1x24x128xf32>
    %60 = vector.shape_cast %59 : vector<1x24x128xf32> to vector<24x128xf32>
    %cst_67 = arith.constant dense<0.000000e+00> : vector<8x128xf32>
    %61 = tpu.matmul %58, %60, %cst_67 {dimension_numbers = #tpu.dot_dimension_numbers<[1], [0], [0], [1], [0, 0, 1, 1], [], []>} : vector<8x24xf32>, vector<24x128xf32>, vector<8x128xf32> -> vector<8x128xf32>
    %62 = arith.addf %57, %61 : vector<8x128xf32>
    %c3_68 = arith.constant 3 : index
    %c0_69 = arith.constant 0 : index
    %63 = vector.load %arg14[%c3_68, %c0_69] : memref<12x24xf32, #tpu.memory_space<vmem>>, vector<8x24xf32>
    %c3_70 = arith.constant 3 : index
    %c0_71 = arith.constant 0 : index
    %c0_72 = arith.constant 0 : index
    %64 = vector.load %arg6[%c3_70, %c0_71, %c0_72] : memref<5x24x128xf32, #tpu.memory_space<vmem>>, vector<1x24x128xf32>
    %65 = vector.shape_cast %64 : vector<1x24x128xf32> to vector<24x128xf32>
    %cst_73 = arith.constant dense<0.000000e+00> : vector<8x128xf32>
    %66 = tpu.matmul %63, %65, %cst_73 {dimension_numbers = #tpu.dot_dimension_numbers<[1], [0], [0], [1], [0, 0, 1, 1], [], []>} : vector<8x24xf32>, vector<24x128xf32>, vector<8x128xf32> -> vector<8x128xf32>
    %67 = arith.addf %62, %66 : vector<8x128xf32>
    %c4_74 = arith.constant 4 : index
    %c0_75 = arith.constant 0 : index
    %68 = vector.load %arg14[%c4_74, %c0_75] : memref<12x24xf32, #tpu.memory_space<vmem>>, vector<8x24xf32>
    %c4_76 = arith.constant 4 : index
    %c0_77 = arith.constant 0 : index
    %c0_78 = arith.constant 0 : index
    %69 = vector.load %arg6[%c4_76, %c0_77, %c0_78] : memref<5x24x128xf32, #tpu.memory_space<vmem>>, vector<1x24x128xf32>
    %70 = vector.shape_cast %69 : vector<1x24x128xf32> to vector<24x128xf32>
    %cst_79 = arith.constant dense<0.000000e+00> : vector<8x128xf32>
    %71 = tpu.matmul %68, %70, %cst_79 {dimension_numbers = #tpu.dot_dimension_numbers<[1], [0], [0], [1], [0, 0, 1, 1], [], []>} : vector<8x24xf32>, vector<24x128xf32>, vector<8x128xf32> -> vector<8x128xf32>
    %72 = arith.addf %67, %71 : vector<8x128xf32>
    %c0_80 = arith.constant 0 : index
    %c0_81 = arith.constant 0 : index
    %73 = vector.load %arg7[%c0_80, %c0_81] : memref<1x128xf32, #tpu.memory_space<vmem>>, vector<1x128xf32>
    %74 = vector.broadcast %73 : vector<1x128xf32> to vector<8x128xf32>
    %75 = arith.addf %72, %74 : vector<8x128xf32>
    %cst_82 = arith.constant 0.000000e+00 : f32
    %76 = vector.broadcast %cst_82 : f32 to vector<8x128xf32>
    %77 = arith.maximumf %75, %76 : vector<8x128xf32>
    %c0_83 = arith.constant 0 : index
    %c0_84 = arith.constant 0 : index
    %c0_85 = arith.constant 0 : index
    %78 = vector.load %arg8[%c0_83, %c0_84, %c0_85] : memref<2x128x64xf32, #tpu.memory_space<vmem>>, vector<1x128x64xf32>
    %79 = vector.shape_cast %78 : vector<1x128x64xf32> to vector<128x64xf32>
    %cst_86 = arith.constant dense<0.000000e+00> : vector<8x64xf32>
    %80 = tpu.matmul %77, %79, %cst_86 {dimension_numbers = #tpu.dot_dimension_numbers<[1], [0], [0], [1], [0, 0, 1, 1], [], []>} : vector<8x128xf32>, vector<128x64xf32>, vector<8x64xf32> -> vector<8x64xf32>
    %c1_87 = arith.constant 1 : index
    %c0_88 = arith.constant 0 : index
    %c0_89 = arith.constant 0 : index
    %81 = vector.load %arg8[%c1_87, %c0_88, %c0_89] : memref<2x128x64xf32, #tpu.memory_space<vmem>>, vector<1x128x64xf32>
    %82 = vector.shape_cast %81 : vector<1x128x64xf32> to vector<128x64xf32>
    %cst_90 = arith.constant dense<0.000000e+00> : vector<8x64xf32>
    %83 = tpu.matmul %77, %82, %cst_90 {dimension_numbers = #tpu.dot_dimension_numbers<[1], [0], [0], [1], [0, 0, 1, 1], [], []>} : vector<8x128xf32>, vector<128x64xf32>, vector<8x64xf32> -> vector<8x64xf32>
    %84 = arith.maximumf %80, %83 : vector<8x64xf32>
    %c0_91 = arith.constant 0 : index
    %c0_92 = arith.constant 0 : index
    %85 = vector.load %arg10[%c0_91, %c0_92] : memref<1x64xf32, #tpu.memory_space<vmem>>, vector<1x64xf32>
    %86 = vector.extract_strided_slice %84 {offsets = [0, 0], sizes = [1, 64], strides = [1, 1]} : vector<8x64xf32> to vector<1x64xf32>
    %87 = vector.extract_strided_slice %84 {offsets = [1, 0], sizes = [1, 64], strides = [1, 1]} : vector<8x64xf32> to vector<1x64xf32>
    %88 = arith.maximumf %86, %87 : vector<1x64xf32>
    %c0_93 = arith.constant 0 : index
    %c0_94 = arith.constant 0 : index
    %c0_95 = arith.constant 0 : index
    %89 = vector.load %arg9[%c0_93, %c0_94, %c0_95] : memref<4x64x64xf32, #tpu.memory_space<vmem>>, vector<1x64x64xf32>
    %90 = vector.shape_cast %89 : vector<1x64x64xf32> to vector<64x64xf32>
    %cst_96 = arith.constant dense<0.000000e+00> : vector<1x64xf32>
    %91 = tpu.matmul %88, %90, %cst_96 {dimension_numbers = #tpu.dot_dimension_numbers<[1], [0], [0], [1], [0, 0, 1, 1], [], []>} : vector<1x64xf32>, vector<64x64xf32>, vector<1x64xf32> -> vector<1x64xf32>
    %92 = arith.addf %85, %91 : vector<1x64xf32>
    %93 = vector.extract_strided_slice %84 {offsets = [2, 0], sizes = [1, 64], strides = [1, 1]} : vector<8x64xf32> to vector<1x64xf32>
    %94 = vector.extract_strided_slice %84 {offsets = [3, 0], sizes = [1, 64], strides = [1, 1]} : vector<8x64xf32> to vector<1x64xf32>
    %95 = arith.maximumf %93, %94 : vector<1x64xf32>
    %c1_97 = arith.constant 1 : index
    %c0_98 = arith.constant 0 : index
    %c0_99 = arith.constant 0 : index
    %96 = vector.load %arg9[%c1_97, %c0_98, %c0_99] : memref<4x64x64xf32, #tpu.memory_space<vmem>>, vector<1x64x64xf32>
    %97 = vector.shape_cast %96 : vector<1x64x64xf32> to vector<64x64xf32>
    %cst_100 = arith.constant dense<0.000000e+00> : vector<1x64xf32>
    %98 = tpu.matmul %95, %97, %cst_100 {dimension_numbers = #tpu.dot_dimension_numbers<[1], [0], [0], [1], [0, 0, 1, 1], [], []>} : vector<1x64xf32>, vector<64x64xf32>, vector<1x64xf32> -> vector<1x64xf32>
    %99 = arith.addf %92, %98 : vector<1x64xf32>
    %100 = vector.extract_strided_slice %84 {offsets = [4, 0], sizes = [1, 64], strides = [1, 1]} : vector<8x64xf32> to vector<1x64xf32>
    %101 = vector.extract_strided_slice %84 {offsets = [5, 0], sizes = [1, 64], strides = [1, 1]} : vector<8x64xf32> to vector<1x64xf32>
    %102 = arith.maximumf %100, %101 : vector<1x64xf32>
    %c2_101 = arith.constant 2 : index
    %c0_102 = arith.constant 0 : index
    %c0_103 = arith.constant 0 : index
    %103 = vector.load %arg9[%c2_101, %c0_102, %c0_103] : memref<4x64x64xf32, #tpu.memory_space<vmem>>, vector<1x64x64xf32>
    %104 = vector.shape_cast %103 : vector<1x64x64xf32> to vector<64x64xf32>
    %cst_104 = arith.constant dense<0.000000e+00> : vector<1x64xf32>
    %105 = tpu.matmul %102, %104, %cst_104 {dimension_numbers = #tpu.dot_dimension_numbers<[1], [0], [0], [1], [0, 0, 1, 1], [], []>} : vector<1x64xf32>, vector<64x64xf32>, vector<1x64xf32> -> vector<1x64xf32>
    %106 = arith.addf %99, %105 : vector<1x64xf32>
    %107 = vector.extract_strided_slice %84 {offsets = [6, 0], sizes = [1, 64], strides = [1, 1]} : vector<8x64xf32> to vector<1x64xf32>
    %108 = vector.extract_strided_slice %84 {offsets = [7, 0], sizes = [1, 64], strides = [1, 1]} : vector<8x64xf32> to vector<1x64xf32>
    %109 = arith.maximumf %107, %108 : vector<1x64xf32>
    %c3_105 = arith.constant 3 : index
    %c0_106 = arith.constant 0 : index
    %c0_107 = arith.constant 0 : index
    %110 = vector.load %arg9[%c3_105, %c0_106, %c0_107] : memref<4x64x64xf32, #tpu.memory_space<vmem>>, vector<1x64x64xf32>
    %111 = vector.shape_cast %110 : vector<1x64x64xf32> to vector<64x64xf32>
    %cst_108 = arith.constant dense<0.000000e+00> : vector<1x64xf32>
    %112 = tpu.matmul %109, %111, %cst_108 {dimension_numbers = #tpu.dot_dimension_numbers<[1], [0], [0], [1], [0, 0, 1, 1], [], []>} : vector<1x64xf32>, vector<64x64xf32>, vector<1x64xf32> -> vector<1x64xf32>
    %113 = arith.addf %106, %112 : vector<1x64xf32>
    %cst_109 = arith.constant 0.000000e+00 : f32
    %114 = vector.broadcast %cst_109 : f32 to vector<1x64xf32>
    %115 = arith.maximumf %113, %114 : vector<1x64xf32>
    %c0_110 = arith.constant 0 : index
    %c0_111 = arith.constant 0 : index
    %116 = vector.load %arg11[%c0_110, %c0_111] : memref<64x2xf32, #tpu.memory_space<vmem>>, vector<64x2xf32>
    %cst_112 = arith.constant dense<0.000000e+00> : vector<1x2xf32>
    %117 = tpu.matmul %115, %116, %cst_112 {dimension_numbers = #tpu.dot_dimension_numbers<[1], [0], [0], [1], [0, 0, 1, 1], [], []>} : vector<1x64xf32>, vector<64x2xf32>, vector<1x2xf32> -> vector<1x2xf32>
    %c0_113 = arith.constant 0 : index
    %c0_114 = arith.constant 0 : index
    %118 = vector.load %arg12[%c0_113, %c0_114] : memref<1x2xf32, #tpu.memory_space<vmem>>, vector<1x2xf32>
    %119 = arith.addf %117, %118 : vector<1x2xf32>
    %120 = vector.shape_cast %119 : vector<1x2xf32> to vector<1x1x2xf32>
    %c0_115 = arith.constant 0 : index
    %c0_116 = arith.constant 0 : index
    %c0_117 = arith.constant 0 : index
    %121 = vector.load %arg13[%c0_115, %c0_116, %c0_117] : memref<1x1x2xf32, #tpu.memory_space<vmem>>, vector<1x1x2xf32>
    tpu.vector_store %arg13[%c0_115, %c0_116, %c0_117], %120 {strides = array<i32>} : memref<1x1x2xf32, #tpu.memory_space<vmem>>, vector<1x1x2xf32>,
    return
  }
  func.func @transform_0(%arg0: i32) -> (i32, i32, i32) {
    %c0_i32 = arith.constant 0 : i32
    %c0_i32_0 = arith.constant 0 : i32
    %c0_i32_1 = arith.constant 0 : i32
    return %arg0, %c0_i32, %c0_i32_0 : i32, i32, i32
  }
  func.func @transform_1(%arg0: i32) -> (i32, i32, i32) {
    %c0_i32 = arith.constant 0 : i32
    %c0_i32_0 = arith.constant 0 : i32
    %c0_i32_1 = arith.constant 0 : i32
    %c0_i32_2 = arith.constant 0 : i32
    return %c0_i32, %c0_i32_0, %c0_i32_1 : i32, i32, i32
  }
  func.func @transform_2(%arg0: i32) -> (i32, i32) {
    %c0_i32 = arith.constant 0 : i32
    %c0_i32_0 = arith.constant 0 : i32
    %c0_i32_1 = arith.constant 0 : i32
    return %c0_i32, %c0_i32_0 : i32, i32
  }
  func.func @transform_3(%arg0: i32) -> (i32, i32, i32) {
    %c0_i32 = arith.constant 0 : i32
    %c0_i32_0 = arith.constant 0 : i32
    %c0_i32_1 = arith.constant 0 : i32
    %c0_i32_2 = arith.constant 0 : i32
    return %c0_i32, %c0_i32_0, %c0_i32_1 : i32, i32, i32
  }
  func.func @transform_4(%arg0: i32) -> (i32, i32, i32) {
    %c0_i32 = arith.constant 0 : i32
    %c0_i32_0 = arith.constant 0 : i32
    %c0_i32_1 = arith.constant 0 : i32
    %c0_i32_2 = arith.constant 0 : i32
    return %c0_i32, %c0_i32_0, %c0_i32_1 : i32, i32, i32
  }
  func.func @transform_5(%arg0: i32) -> (i32, i32, i32) {
    %c0_i32 = arith.constant 0 : i32
    %c0_i32_0 = arith.constant 0 : i32
    %c0_i32_1 = arith.constant 0 : i32
    %c0_i32_2 = arith.constant 0 : i32
    return %c0_i32, %c0_i32_0, %c0_i32_1 : i32, i32, i32
  }
  func.func @transform_6(%arg0: i32) -> (i32, i32) {
    %c0_i32 = arith.constant 0 : i32
    %c0_i32_0 = arith.constant 0 : i32
    %c0_i32_1 = arith.constant 0 : i32
    return %c0_i32, %c0_i32_0 : i32, i32
  }
  func.func @transform_7(%arg0: i32) -> (i32, i32, i32) {
    %c0_i32 = arith.constant 0 : i32
    %c0_i32_0 = arith.constant 0 : i32
    %c0_i32_1 = arith.constant 0 : i32
    %c0_i32_2 = arith.constant 0 : i32
    return %c0_i32, %c0_i32_0, %c0_i32_1 : i32, i32, i32
  }
  func.func @transform_8(%arg0: i32) -> (i32, i32, i32) {
    %c0_i32 = arith.constant 0 : i32
    %c0_i32_0 = arith.constant 0 : i32
    %c0_i32_1 = arith.constant 0 : i32
    %c0_i32_2 = arith.constant 0 : i32
    return %c0_i32, %c0_i32_0, %c0_i32_1 : i32, i32, i32
  }
  func.func @transform_9(%arg0: i32) -> (i32, i32) {
    %c0_i32 = arith.constant 0 : i32
    %c0_i32_0 = arith.constant 0 : i32
    %c0_i32_1 = arith.constant 0 : i32
    return %c0_i32, %c0_i32_0 : i32, i32
  }
  func.func @transform_10(%arg0: i32) -> (i32, i32) {
    %c0_i32 = arith.constant 0 : i32
    %c0_i32_0 = arith.constant 0 : i32
    %c0_i32_1 = arith.constant 0 : i32
    return %c0_i32, %c0_i32_0 : i32, i32
  }
  func.func @transform_11(%arg0: i32) -> (i32, i32) {
    %c0_i32 = arith.constant 0 : i32
    %c0_i32_0 = arith.constant 0 : i32
    %c0_i32_1 = arith.constant 0 : i32
    return %c0_i32, %c0_i32_0 : i32, i32
  }
  func.func @transform_12(%arg0: i32) -> (i32, i32, i32) {
    %c0_i32 = arith.constant 0 : i32
    %c0_i32_0 = arith.constant 0 : i32
    %c0_i32_1 = arith.constant 0 : i32
    return %arg0, %c0_i32, %c0_i32_0 : i32, i32, i32
  }
}

module attributes {stable_mosaic.version = 11 : i64} {
  func.func @_qnn_head_kernel(%arg0: i32, %arg1: memref<1x1x8xf32, #tpu.memory_space<vmem>>, %arg2: memref<4x4xf32, #tpu.memory_space<vmem>>, %arg3: memref<1x1x2xf32, #tpu.memory_space<vmem>>) attributes {dimension_semantics = [#tpu.dimension_semantics<parallel>], iteration_bounds = array<i64: 2>, scalar_prefetch = 0 : i64, scratch_operands = 0 : i64, tpu.core_type = #tpu.core_type<tc>, window_params = [{transform_indices = @transform_0, window_bounds = array<i64: 1, 1, 8>}, {pipeline_mode = #tpu.pipeline_mode<synchronous>, transform_indices = @transform_1, window_bounds = array<i64: 4, 4>}, {transform_indices = @transform_2, window_bounds = array<i64: 1, 1, 2>}]} {
    %c0 = arith.constant 0 : index
    %c0_0 = arith.constant 0 : index
    %c0_1 = arith.constant 0 : index
    %0 = vector.load %arg1[%c0, %c0_0, %c0_1] : memref<1x1x8xf32, #tpu.memory_space<vmem>>, vector<1x1x8xf32>
    %1 = vector.shape_cast %0 : vector<1x1x8xf32> to vector<1x8xf32>
    %2 = vector.extract_strided_slice %1 {offsets = [0, 0], sizes = [1, 1], strides = [1, 1]} : vector<1x8xf32> to vector<1x1xf32>
    %3 = vector.extract_strided_slice %1 {offsets = [0, 1], sizes = [1, 1], strides = [1, 1]} : vector<1x8xf32> to vector<1x1xf32>
    %4 = vector.extract_strided_slice %1 {offsets = [0, 2], sizes = [1, 1], strides = [1, 1]} : vector<1x8xf32> to vector<1x1xf32>
    %5 = vector.extract_strided_slice %1 {offsets = [0, 3], sizes = [1, 1], strides = [1, 1]} : vector<1x8xf32> to vector<1x1xf32>
    %6 = vector.extract_strided_slice %1 {offsets = [0, 4], sizes = [1, 1], strides = [1, 1]} : vector<1x8xf32> to vector<1x1xf32>
    %7 = vector.extract_strided_slice %1 {offsets = [0, 5], sizes = [1, 1], strides = [1, 1]} : vector<1x8xf32> to vector<1x1xf32>
    %8 = vector.extract_strided_slice %1 {offsets = [0, 6], sizes = [1, 1], strides = [1, 1]} : vector<1x8xf32> to vector<1x1xf32>
    %9 = vector.extract_strided_slice %1 {offsets = [0, 7], sizes = [1, 1], strides = [1, 1]} : vector<1x8xf32> to vector<1x1xf32>
    %10 = tpu.iota {dimensions = array<i32: 1>} : vector<1x4xi32>
    %c1_i32 = arith.constant 1 : i32
    %11 = vector.broadcast %c1_i32 : i32 to vector<1x4xi32>
    %12 = arith.cmpi eq, %10, %11 : vector<1x4xi32>
    %c3_i32 = arith.constant 3 : i32
    %13 = vector.broadcast %c3_i32 : i32 to vector<1x4xi32>
    %14 = arith.cmpi eq, %10, %13 : vector<1x4xi32>
    %15 = arith.ori %12, %14 : vector<1x4xi1>
    %cst = arith.constant 1.000000e+00 : f32
    %cst_2 = arith.constant 0.000000e+00 : f32
    %16 = vector.broadcast %cst : f32 to vector<1x4xf32>
    %17 = vector.broadcast %cst_2 : f32 to vector<1x4xf32>
    %18 = arith.select %15, %16, %17 : vector<1x4xi1>, vector<1x4xf32>
    %c2_i32 = arith.constant 2 : i32
    %19 = vector.broadcast %c2_i32 : i32 to vector<1x4xi32>
    %20 = arith.cmpi sge, %10, %19 : vector<1x4xi32>
    %cst_3 = arith.constant 1.000000e+00 : f32
    %cst_4 = arith.constant 0.000000e+00 : f32
    %21 = vector.broadcast %cst_3 : f32 to vector<1x4xf32>
    %22 = vector.broadcast %cst_4 : f32 to vector<1x4xf32>
    %23 = arith.select %20, %21, %22 : vector<1x4xi1>, vector<1x4xf32>
    %c1_i32_5 = arith.constant 1 : i32
    %24 = vector.broadcast %c1_i32_5 : i32 to vector<1x4xi32>
    %25 = arith.cmpi eq, %10, %24 : vector<1x4xi32>
    %c2_i32_6 = arith.constant 2 : i32
    %26 = vector.broadcast %c2_i32_6 : i32 to vector<1x4xi32>
    %27 = arith.cmpi eq, %10, %26 : vector<1x4xi32>
    %28 = arith.ori %25, %27 : vector<1x4xi1>
    %cst_7 = arith.constant 1.000000e+00 : f32
    %cst_8 = arith.constant 0.000000e+00 : f32
    %29 = vector.broadcast %cst_7 : f32 to vector<1x4xf32>
    %30 = vector.broadcast %cst_8 : f32 to vector<1x4xf32>
    %31 = arith.select %28, %29, %30 : vector<1x4xi1>, vector<1x4xf32>
    %cst_9 = arith.constant 2.000000e+00 : f32
    %32 = vector.broadcast %cst_9 : f32 to vector<1x4xf32>
    %33 = arith.mulf %32, %31 : vector<1x4xf32>
    %cst_10 = arith.constant 1.000000e+00 : f32
    %34 = vector.broadcast %cst_10 : f32 to vector<1x4xf32>
    %35 = arith.subf %34, %33 : vector<1x4xf32>
    %cst_11 = arith.constant 1.000000e+00 : f32
    %36 = vector.broadcast %cst_11 : f32 to vector<1x4xf32>
    %cst_12 = arith.constant 5.000000e-01 : f32
    %37 = vector.broadcast %cst_12 : f32 to vector<1x4xf32>
    %38 = arith.mulf %37, %36 : vector<1x4xf32>
    %cst_13 = arith.constant 2.000000e+00 : f32
    %39 = vector.broadcast %cst_13 : f32 to vector<1x4xf32>
    %40 = arith.mulf %39, %18 : vector<1x4xf32>
    %41 = arith.subf %36, %40 : vector<1x4xf32>
    %cst_14 = arith.constant 5.000000e-01 : f32
    %42 = vector.broadcast %cst_14 : f32 to vector<1x4xf32>
    %43 = arith.mulf %42, %41 : vector<1x4xf32>
    %cst_15 = arith.constant 2.000000e+00 : f32
    %44 = vector.broadcast %cst_15 : f32 to vector<1x4xf32>
    %45 = arith.mulf %44, %23 : vector<1x4xf32>
    %46 = arith.subf %36, %45 : vector<1x4xf32>
    %cst_16 = arith.constant 5.000000e-01 : f32
    %47 = vector.broadcast %cst_16 : f32 to vector<1x4xf32>
    %48 = arith.mulf %47, %46 : vector<1x4xf32>
    %cst_17 = arith.constant 5.000000e-01 : f32
    %49 = vector.broadcast %cst_17 : f32 to vector<1x4xf32>
    %50 = arith.mulf %49, %35 : vector<1x4xf32>
    %cst_18 = arith.constant 5.000000e-01 : f32
    %51 = vector.broadcast %cst_18 : f32 to vector<1x4xf32>
    %52 = arith.mulf %51, %36 : vector<1x4xf32>
    %cst_19 = arith.constant 0.000000e+00 : f32
    %53 = vector.broadcast %cst_19 : f32 to vector<1x4xf32>
    %cst_20 = arith.constant 1.000000e+00 : f32
    %54 = vector.broadcast %cst_20 : f32 to vector<1x1xf32>
    %55 = arith.subf %2, %54 : vector<1x1xf32>
    %56 = vector.broadcast %55 : vector<1x1xf32> to vector<1x4xf32>
    %57 = arith.mulf %18, %56 : vector<1x4xf32>
    %cst_21 = arith.constant 1.000000e+00 : f32
    %58 = vector.broadcast %cst_21 : f32 to vector<1x4xf32>
    %59 = arith.addf %58, %57 : vector<1x4xf32>
    %60 = vector.broadcast %3 : vector<1x1xf32> to vector<1x4xf32>
    %61 = arith.mulf %18, %60 : vector<1x4xf32>
    %62 = arith.mulf %52, %59 : vector<1x4xf32>
    %63 = arith.mulf %53, %61 : vector<1x4xf32>
    %64 = arith.subf %62, %63 : vector<1x4xf32>
    %65 = arith.mulf %52, %61 : vector<1x4xf32>
    %66 = arith.mulf %53, %59 : vector<1x4xf32>
    %67 = arith.addf %65, %66 : vector<1x4xf32>
    %cst_22 = arith.constant 1.000000e+00 : f32
    %68 = vector.broadcast %cst_22 : f32 to vector<1x1xf32>
    %69 = arith.subf %4, %68 : vector<1x1xf32>
    %70 = vector.broadcast %69 : vector<1x1xf32> to vector<1x4xf32>
    %71 = arith.mulf %23, %70 : vector<1x4xf32>
    %cst_23 = arith.constant 1.000000e+00 : f32
    %72 = vector.broadcast %cst_23 : f32 to vector<1x4xf32>
    %73 = arith.addf %72, %71 : vector<1x4xf32>
    %74 = vector.broadcast %5 : vector<1x1xf32> to vector<1x4xf32>
    %75 = arith.mulf %23, %74 : vector<1x4xf32>
    %76 = arith.mulf %64, %73 : vector<1x4xf32>
    %77 = arith.mulf %67, %75 : vector<1x4xf32>
    %78 = arith.subf %76, %77 : vector<1x4xf32>
    %79 = arith.mulf %64, %75 : vector<1x4xf32>
    %80 = arith.mulf %67, %73 : vector<1x4xf32>
    %81 = arith.addf %79, %80 : vector<1x4xf32>
    %cst_24 = arith.constant 1.000000e+00 : f32
    %82 = vector.broadcast %cst_24 : f32 to vector<1x1xf32>
    %83 = arith.subf %6, %82 : vector<1x1xf32>
    %84 = vector.broadcast %83 : vector<1x1xf32> to vector<1x4xf32>
    %85 = arith.mulf %31, %84 : vector<1x4xf32>
    %cst_25 = arith.constant 1.000000e+00 : f32
    %86 = vector.broadcast %cst_25 : f32 to vector<1x4xf32>
    %87 = arith.addf %86, %85 : vector<1x4xf32>
    %88 = vector.broadcast %7 : vector<1x1xf32> to vector<1x4xf32>
    %89 = arith.mulf %31, %88 : vector<1x4xf32>
    %90 = arith.mulf %78, %87 : vector<1x4xf32>
    %91 = arith.mulf %81, %89 : vector<1x4xf32>
    %92 = arith.subf %90, %91 : vector<1x4xf32>
    %93 = arith.mulf %78, %89 : vector<1x4xf32>
    %94 = arith.mulf %81, %87 : vector<1x4xf32>
    %95 = arith.addf %93, %94 : vector<1x4xf32>
    %96 = vector.extract_strided_slice %92 {offsets = [0, 0], sizes = [1, 1], strides = [1, 1]} : vector<1x4xf32> to vector<1x1xf32>
    %97 = vector.broadcast %96 : vector<1x1xf32> to vector<1x4xf32>
    %98 = arith.mulf %97, %38 : vector<1x4xf32>
    %99 = vector.extract_strided_slice %95 {offsets = [0, 0], sizes = [1, 1], strides = [1, 1]} : vector<1x4xf32> to vector<1x1xf32>
    %100 = vector.broadcast %99 : vector<1x1xf32> to vector<1x4xf32>
    %101 = arith.mulf %100, %38 : vector<1x4xf32>
    %102 = vector.extract_strided_slice %92 {offsets = [0, 1], sizes = [1, 1], strides = [1, 1]} : vector<1x4xf32> to vector<1x1xf32>
    %103 = vector.broadcast %102 : vector<1x1xf32> to vector<1x4xf32>
    %104 = arith.mulf %103, %43 : vector<1x4xf32>
    %105 = arith.addf %98, %104 : vector<1x4xf32>
    %106 = vector.extract_strided_slice %95 {offsets = [0, 1], sizes = [1, 1], strides = [1, 1]} : vector<1x4xf32> to vector<1x1xf32>
    %107 = vector.broadcast %106 : vector<1x1xf32> to vector<1x4xf32>
    %108 = arith.mulf %107, %43 : vector<1x4xf32>
    %109 = arith.addf %101, %108 : vector<1x4xf32>
    %110 = vector.extract_strided_slice %92 {offsets = [0, 2], sizes = [1, 1], strides = [1, 1]} : vector<1x4xf32> to vector<1x1xf32>
    %111 = vector.broadcast %110 : vector<1x1xf32> to vector<1x4xf32>
    %112 = arith.mulf %111, %48 : vector<1x4xf32>
    %113 = arith.addf %105, %112 : vector<1x4xf32>
    %114 = vector.extract_strided_slice %95 {offsets = [0, 2], sizes = [1, 1], strides = [1, 1]} : vector<1x4xf32> to vector<1x1xf32>
    %115 = vector.broadcast %114 : vector<1x1xf32> to vector<1x4xf32>
    %116 = arith.mulf %115, %48 : vector<1x4xf32>
    %117 = arith.addf %109, %116 : vector<1x4xf32>
    %118 = vector.extract_strided_slice %92 {offsets = [0, 3], sizes = [1, 1], strides = [1, 1]} : vector<1x4xf32> to vector<1x1xf32>
    %119 = vector.broadcast %118 : vector<1x1xf32> to vector<1x4xf32>
    %120 = arith.mulf %119, %50 : vector<1x4xf32>
    %121 = arith.addf %113, %120 : vector<1x4xf32>
    %122 = vector.extract_strided_slice %95 {offsets = [0, 3], sizes = [1, 1], strides = [1, 1]} : vector<1x4xf32> to vector<1x1xf32>
    %123 = vector.broadcast %122 : vector<1x1xf32> to vector<1x4xf32>
    %124 = arith.mulf %123, %50 : vector<1x4xf32>
    %125 = arith.addf %117, %124 : vector<1x4xf32>
    %cst_26 = arith.constant 1.000000e+00 : f32
    %126 = vector.broadcast %cst_26 : f32 to vector<1x1xf32>
    %127 = arith.subf %2, %126 : vector<1x1xf32>
    %128 = vector.broadcast %127 : vector<1x1xf32> to vector<1x4xf32>
    %129 = arith.mulf %18, %128 : vector<1x4xf32>
    %cst_27 = arith.constant 1.000000e+00 : f32
    %130 = vector.broadcast %cst_27 : f32 to vector<1x4xf32>
    %131 = arith.addf %130, %129 : vector<1x4xf32>
    %132 = vector.broadcast %3 : vector<1x1xf32> to vector<1x4xf32>
    %133 = arith.mulf %18, %132 : vector<1x4xf32>
    %134 = arith.mulf %121, %131 : vector<1x4xf32>
    %135 = arith.mulf %125, %133 : vector<1x4xf32>
    %136 = arith.subf %134, %135 : vector<1x4xf32>
    %137 = arith.mulf %121, %133 : vector<1x4xf32>
    %138 = arith.mulf %125, %131 : vector<1x4xf32>
    %139 = arith.addf %137, %138 : vector<1x4xf32>
    %cst_28 = arith.constant 1.000000e+00 : f32
    %140 = vector.broadcast %cst_28 : f32 to vector<1x1xf32>
    %141 = arith.subf %4, %140 : vector<1x1xf32>
    %142 = vector.broadcast %141 : vector<1x1xf32> to vector<1x4xf32>
    %143 = arith.mulf %23, %142 : vector<1x4xf32>
    %cst_29 = arith.constant 1.000000e+00 : f32
    %144 = vector.broadcast %cst_29 : f32 to vector<1x4xf32>
    %145 = arith.addf %144, %143 : vector<1x4xf32>
    %146 = vector.broadcast %5 : vector<1x1xf32> to vector<1x4xf32>
    %147 = arith.mulf %23, %146 : vector<1x4xf32>
    %148 = arith.mulf %136, %145 : vector<1x4xf32>
    %149 = arith.mulf %139, %147 : vector<1x4xf32>
    %150 = arith.subf %148, %149 : vector<1x4xf32>
    %151 = arith.mulf %136, %147 : vector<1x4xf32>
    %152 = arith.mulf %139, %145 : vector<1x4xf32>
    %153 = arith.addf %151, %152 : vector<1x4xf32>
    %cst_30 = arith.constant 1.000000e+00 : f32
    %154 = vector.broadcast %cst_30 : f32 to vector<1x1xf32>
    %155 = arith.subf %6, %154 : vector<1x1xf32>
    %156 = vector.broadcast %155 : vector<1x1xf32> to vector<1x4xf32>
    %157 = arith.mulf %31, %156 : vector<1x4xf32>
    %cst_31 = arith.constant 1.000000e+00 : f32
    %158 = vector.broadcast %cst_31 : f32 to vector<1x4xf32>
    %159 = arith.addf %158, %157 : vector<1x4xf32>
    %160 = vector.broadcast %7 : vector<1x1xf32> to vector<1x4xf32>
    %161 = arith.mulf %31, %160 : vector<1x4xf32>
    %162 = arith.mulf %150, %159 : vector<1x4xf32>
    %163 = arith.mulf %153, %161 : vector<1x4xf32>
    %164 = arith.subf %162, %163 : vector<1x4xf32>
    %165 = arith.mulf %150, %161 : vector<1x4xf32>
    %166 = arith.mulf %153, %159 : vector<1x4xf32>
    %167 = arith.addf %165, %166 : vector<1x4xf32>
    %c0_32 = arith.constant 0 : index
    %c0_33 = arith.constant 0 : index
    %168 = vector.load %arg2[%c0_32, %c0_33] : memref<4x4xf32, #tpu.memory_space<vmem>>, vector<1x4xf32>
    %c1 = arith.constant 1 : index
    %c0_34 = arith.constant 0 : index
    %169 = vector.load %arg2[%c1, %c0_34] : memref<4x4xf32, #tpu.memory_space<vmem>>, vector<1x4xf32>
    %c2 = arith.constant 2 : index
    %c0_35 = arith.constant 0 : index
    %170 = vector.load %arg2[%c2, %c0_35] : memref<4x4xf32, #tpu.memory_space<vmem>>, vector<1x4xf32>
    %c3 = arith.constant 3 : index
    %c0_36 = arith.constant 0 : index
    %171 = vector.load %arg2[%c3, %c0_36] : memref<4x4xf32, #tpu.memory_space<vmem>>, vector<1x4xf32>
    %172 = vector.extract_strided_slice %164 {offsets = [0, 0], sizes = [1, 1], strides = [1, 1]} : vector<1x4xf32> to vector<1x1xf32>
    %173 = vector.broadcast %172 : vector<1x1xf32> to vector<1x4xf32>
    %174 = arith.mulf %173, %168 : vector<1x4xf32>
    %175 = vector.extract_strided_slice %167 {offsets = [0, 0], sizes = [1, 1], strides = [1, 1]} : vector<1x4xf32> to vector<1x1xf32>
    %176 = vector.broadcast %175 : vector<1x1xf32> to vector<1x4xf32>
    %177 = arith.mulf %176, %168 : vector<1x4xf32>
    %178 = vector.extract_strided_slice %164 {offsets = [0, 1], sizes = [1, 1], strides = [1, 1]} : vector<1x4xf32> to vector<1x1xf32>
    %179 = vector.broadcast %178 : vector<1x1xf32> to vector<1x4xf32>
    %180 = arith.mulf %179, %169 : vector<1x4xf32>
    %181 = arith.addf %174, %180 : vector<1x4xf32>
    %182 = vector.extract_strided_slice %167 {offsets = [0, 1], sizes = [1, 1], strides = [1, 1]} : vector<1x4xf32> to vector<1x1xf32>
    %183 = vector.broadcast %182 : vector<1x1xf32> to vector<1x4xf32>
    %184 = arith.mulf %183, %169 : vector<1x4xf32>
    %185 = arith.addf %177, %184 : vector<1x4xf32>
    %186 = vector.extract_strided_slice %164 {offsets = [0, 2], sizes = [1, 1], strides = [1, 1]} : vector<1x4xf32> to vector<1x1xf32>
    %187 = vector.broadcast %186 : vector<1x1xf32> to vector<1x4xf32>
    %188 = arith.mulf %187, %170 : vector<1x4xf32>
    %189 = arith.addf %181, %188 : vector<1x4xf32>
    %190 = vector.extract_strided_slice %167 {offsets = [0, 2], sizes = [1, 1], strides = [1, 1]} : vector<1x4xf32> to vector<1x1xf32>
    %191 = vector.broadcast %190 : vector<1x1xf32> to vector<1x4xf32>
    %192 = arith.mulf %191, %170 : vector<1x4xf32>
    %193 = arith.addf %185, %192 : vector<1x4xf32>
    %194 = vector.extract_strided_slice %164 {offsets = [0, 3], sizes = [1, 1], strides = [1, 1]} : vector<1x4xf32> to vector<1x1xf32>
    %195 = vector.broadcast %194 : vector<1x1xf32> to vector<1x4xf32>
    %196 = arith.mulf %195, %171 : vector<1x4xf32>
    %197 = arith.addf %189, %196 : vector<1x4xf32>
    %198 = vector.extract_strided_slice %167 {offsets = [0, 3], sizes = [1, 1], strides = [1, 1]} : vector<1x4xf32> to vector<1x1xf32>
    %199 = vector.broadcast %198 : vector<1x1xf32> to vector<1x4xf32>
    %200 = arith.mulf %199, %171 : vector<1x4xf32>
    %201 = arith.addf %193, %200 : vector<1x4xf32>
    %202 = arith.mulf %197, %197 : vector<1x4xf32>
    %203 = arith.mulf %201, %201 : vector<1x4xf32>
    %204 = arith.addf %202, %203 : vector<1x4xf32>
    %205 = arith.mulf %204, %35 : vector<1x4xf32>
    %cst_37 = arith.constant dense<0.000000e+00> : vector<1xf32>
    %206 = vector.multi_reduction <add>, %205, %cst_37 [1] : vector<1x4xf32> to vector<1xf32>
    %207 = vector.shape_cast %206 : vector<1xf32> to vector<1x1xf32>
    %208 = arith.mulf %207, %8 : vector<1x1xf32>
    %209 = arith.addf %208, %9 : vector<1x1xf32>
    %210 = tpu.iota {dimensions = array<i32: 1>} : vector<1x2xi32>
    %c0_i32 = arith.constant 0 : i32
    %211 = vector.broadcast %c0_i32 : i32 to vector<1x2xi32>
    %212 = arith.cmpi eq, %210, %211 : vector<1x2xi32>
    %cst_38 = arith.constant 1.000000e+00 : f32
    %213 = vector.broadcast %cst_38 : f32 to vector<1x1xf32>
    %214 = arith.subf %213, %209 : vector<1x1xf32>
    %215 = vector.shape_cast %209 : vector<1x1xf32> to vector<1x1xf32>
    %216 = vector.broadcast %215 : vector<1x1xf32> to vector<1x2xf32>
    %217 = vector.shape_cast %214 : vector<1x1xf32> to vector<1x1xf32>
    %218 = vector.broadcast %217 : vector<1x1xf32> to vector<1x2xf32>
    %219 = arith.select %212, %216, %218 : vector<1x2xi1>, vector<1x2xf32>
    %220 = vector.shape_cast %219 : vector<1x2xf32> to vector<1x1x2xf32>
    %c0_39 = arith.constant 0 : index
    %c0_40 = arith.constant 0 : index
    %c0_41 = arith.constant 0 : index
    %221 = vector.load %arg3[%c0_39, %c0_40, %c0_41] : memref<1x1x2xf32, #tpu.memory_space<vmem>>, vector<1x1x2xf32>
    tpu.vector_store %arg3[%c0_39, %c0_40, %c0_41], %220 {strides = array<i32>} : memref<1x1x2xf32, #tpu.memory_space<vmem>>, vector<1x1x2xf32>,
    return
  }
  func.func @transform_0(%arg0: i32) -> (i32, i32, i32) {
    %c0_i32 = arith.constant 0 : i32
    %c0_i32_0 = arith.constant 0 : i32
    %c0_i32_1 = arith.constant 0 : i32
    return %arg0, %c0_i32, %c0_i32_0 : i32, i32, i32
  }
  func.func @transform_1(%arg0: i32) -> (i32, i32) {
    %c0_i32 = arith.constant 0 : i32
    %c0_i32_0 = arith.constant 0 : i32
    %c0_i32_1 = arith.constant 0 : i32
    return %c0_i32, %c0_i32_0 : i32, i32
  }
  func.func @transform_2(%arg0: i32) -> (i32, i32, i32) {
    %c0_i32 = arith.constant 0 : i32
    %c0_i32_0 = arith.constant 0 : i32
    %c0_i32_1 = arith.constant 0 : i32
    return %arg0, %c0_i32, %c0_i32_0 : i32, i32, i32
  }
}

</mosaic_0001>

<llo_original>
// kernel: net_forward.3
$region0: #{net_forward.3}
  #allocation0 [shape = 'u32[]', space=smem, size = 0x4, offset = 0x4, fixed_abs, tag = 'smem constant byte address 0x4 - core index']
  #allocation1 [shape = 'u32[144,128]{1,0:T(1,128)}', space=vmem, size = 0x12000, scoped, tag = 'internal scratch']
  %s0 = inlined_call_operand.vmem [shape: f32[2,1,8], index: 0, kind: input, shape index: {}]
  %s1 = inlined_call_operand.vmem [shape: f32[4,4], index: 1, kind: input, shape index: {}]
  %s2 = inlined_call_operand.hbm [shape: f32[2,1,2], index: 2, kind: output, shape index: {}]
  %s3 = sld [smem:[#allocation0]]
  $region41: #{net_forward.3} parent=0
    _
  %s5 = ssub.s32 1, %s3
  %s6 = scalar_select 0, %s5, %s3
  $region1: #{net_forward.3} parent=0
    #allocation2 [shape = 'u8[1024]{0}', space=vmem, size = 0x400, scoped, tag = 'output window, operand 0']
    #allocation3 [shape = 's32[2]{0}', space=sflag, size = 0x8, scoped, tag = 'scoped memory for net_forward.3']
    %7 = vsyncpa [#allocation3], 0
    %s8 = scalar_lea.sflag [#allocation3], 1
    %9 = vsyncpa %s8, 0
    loop: start=0, step=1, limit=4
    $region2: #{net_forward.3} parent=1 // loop_pre_header
      _
    $region3: #{net_forward.3} parent=1 // loop_header
      %s11 = sphi 0, %s15
      %p12 = scmp.ge.s32.totalorder %s11, 4
      %s21 = sphi 0, %s23
      %s24 = sphi 0, %s21
      %s25 = sphi 0, %s24
      %s41 = sphi 0, %s25
      %s45 = sphi 0, %s45
      %s47 = sphi 0, %s45
      %s48 = sphi 0, %s47
      %s62 = sphi 0, %s48
      %s68 = sphi 0, %s70
      %s71 = sphi 0, %s68
      %s72 = sphi 0, %s71
      %s88 = sphi 0, %s72
    $region4: #{net_forward.3} parent=1 // loop_header_branch
      %14 = sbr.rel (%p12) target = $region8
    $region5: #{net_forward.3} parent=1 // loop_body
      %s16 = ssub.s32 %s11, 1
      %s17 = ssub.s32 %s11, 2
      %s18 = sadd.s32 %s11, 1
      %s19 = ssub.s32 %s11, %s18
      %p20 = scmp.eq.s32.totalorder %s19, 0
      %s22 = sadd.s32 %s21, 1
      %s23 = scalar_select %p20, %s21, %s22
      %p26 = pneg %p20
      %p27 = scmp.eq.s32.totalorder %s11, 1
      %p28 = por %p26, %p27
      %p29 = scmp.ne.s32.totalorder %s21, %s24
      %p30 = scmp.eq.s32.totalorder %s11, 0
      %p31 = por %p29, %p30
      %p32 = scmp.ne.s32.totalorder %s21, %s24
      %p33 = scmp.eq.s32.totalorder %s16, 1
      %p34 = por %p32, %p33
      %p35 = scmp.ne.s32.totalorder %s24, %s25
      %p36 = scmp.eq.s32.totalorder %s16, 0
      %p37 = por %p35, %p36
      %p38 = scmp.ne.s32.totalorder %s24, %s25
      %p39 = scmp.eq.s32.totalorder %s17, 1
      %p40 = por %p38, %p39
      %p42 = scmp.ne.s32.totalorder %s25, %s41
      %p43 = scmp.eq.s32.totalorder %s17, 0
      %p44 = por %p42, %p43
      %s46 = sadd.s32 %s45, 1
      %p49 = scmp.eq.s32.totalorder %s11, 1
      %p50 = scmp.ne.s32.totalorder %s45, %s47
      %p51 = scmp.eq.s32.totalorder %s11, 0
      %p52 = por %p50, %p51
      %p53 = scmp.ne.s32.totalorder %s45, %s47
      %p54 = scmp.eq.s32.totalorder %s16, 1
      %p55 = por %p53, %p54
      %p56 = scmp.ne.s32.totalorder %s47, %s48
      %p57 = scmp.eq.s32.totalorder %s16, 0
      %p58 = por %p56, %p57
      %p59 = scmp.ne.s32.totalorder %s47, %s48
      %p60 = scmp.eq.s32.totalorder %s17, 1
      %p61 = por %p59, %p60
      %p63 = scmp.ne.s32.totalorder %s48, %s62
      %p64 = scmp.eq.s32.totalorder %s17, 0
      %p65 = por %p63, %p64
      %s66 = ssub.s32 %s11, %s18
      %p67 = scmp.eq.s32.totalorder %s66, 0
      %s69 = sadd.s32 %s68, 1
      %s70 = scalar_select %p67, %s68, %s69
      %p73 = pneg %p67
      %p74 = scmp.eq.s32.totalorder %s11, 1
      %p75 = por %p73, %p74
      %p76 = scmp.ne.s32.totalorder %s68, %s71
      %p77 = scmp.eq.s32.totalorder %s11, 0
      %p78 = por %p76, %p77
      %p79 = scmp.ne.s32.totalorder %s68, %s71
      %p80 = scmp.eq.s32.totalorder %s16, 1
      %p81 = por %p79, %p80
      %p82 = scmp.ne.s32.totalorder %s71, %s72
      %p83 = scmp.eq.s32.totalorder %s16, 0
      %p84 = por %p82, %p83
      %p85 = scmp.ne.s32.totalorder %s71, %s72
      %p86 = scmp.eq.s32.totalorder %s17, 1
      %p87 = por %p85, %p86
      %p89 = scmp.ne.s32.totalorder %s72, %s88
      %p90 = scmp.eq.s32.totalorder %s17, 0
      %p91 = por %p89, %p90
      %p92 = scmp.le.s32.totalorder 1, %s11
      %p93 = scmp.lt.s32.totalorder %s11, 3
      %p94 = pnand %p92, %p93
      %p95 = pneg %p94
      // Predicated region
      $region9: #{net_forward.3} parent=5 // pred_check
        _
      $region10: #{net_forward.3} parent=5 // pred_check_branch
        %97 = sbr.rel (%p94) target = $region12
      $region11: #{net_forward.3} parent=5 // pred_region
        %s98 = ssub.s32 %s11, 1
        // Predicated region
        $region13: #{net_forward.3} parent=11 // pred_check
          %p99 = pneg %p58
        $region14: #{net_forward.3} parent=11 // pred_check_branch
          %101 = sbr.rel (%p99) target = $region16
        $region15: #{net_forward.3} parent=11 // pred_region
          _
        $region16: #{net_forward.3} parent=11 // pred_fallthru
          _
      $region12: #{net_forward.3} parent=5 // pred_fallthru
        _
      %p102 = scmp.lt.s32.totalorder %s11, 2
      // Predicated region
      $region17: #{net_forward.3} parent=5 // pred_check
        %p103 = pneg %p102
      $region18: #{net_forward.3} parent=5 // pred_check_branch
        %105 = sbr.rel (%p103) target = $region20
      $region19: #{net_forward.3} parent=5 // pred_region
        // Predicated region
        $region21: #{net_forward.3} parent=19 // pred_check
          %p106 = pneg %p31
        $region22: #{net_forward.3} parent=19 // pred_check_branch
          %108 = sbr.rel (%p106) target = $region24
        $region23: #{net_forward.3} parent=19 // pred_region
          %p109 = scmp.lt.s32.totalorder %s11, 1
          %s110 = scalar_select %p109, %s11, 1
          %s111 = scalar_lea.vmem %s0, %s110
        $region24: #{net_forward.3} parent=19 // pred_fallthru
          _
      $region20: #{net_forward.3} parent=5 // pred_fallthru
        _
      %p112 = scmp.le.s32.totalorder 1, %s11
      %p113 = scmp.lt.s32.totalorder %s11, 3
      %p114 = pnand %p112, %p113
      %p115 = pneg %p114
      // Predicated region
      $region25: #{net_forward.3} parent=5 // pred_check
        _
      $region26: #{net_forward.3} parent=5 // pred_check_branch
        %117 = sbr.rel (%p114) target = $region28
      $region27: #{net_forward.3} parent=5 // pred_region
        %s118 = ssub.s32 %s11, 1
        %p119 = scmp.lt.s32.totalorder %s16, 1
        %s120 = scalar_select %p119, %s16, 1
        %s121 = scalar_lea.vmem %s0, %s120
        %p122 = pneg %p37
        %p123 = pneg %p34
        %p124 = pneg %p58
        %p125 = pneg %p55
        %p126 = pneg %p84
        %p127 = pneg %p81
        %s128 = sand.u32 %s71, 1
        %s129 = scalar_lea.sflag [#allocation3], %s128
        %s130 = sand.u32 %s71, 1
        %s131 = scalar_lea.vmem [#allocation2], %s130
        %p132 = scmp.lt.s32.totalorder %s16, 1
        %s133 = scalar_select %p132, %s16, 1
        %s134 = scalar_lea.vmem %s0, %s133
        %v135 = vld [vmem:[%s134] sm:$0x1]
        %v136 = vlaneseq
        %v137 = vand.u32 %v136, 127
        %vm138 = vcmp.eq.s32.totalorder %v137, 1
        %vm139 = vcmp.eq.s32.totalorder %v137, 3
        %vm140 = vmor %vm138, %vm139
        %v141 = vsel %vm140, 1.0, 0.0
        %vm142 = vcmp.ge.s32.totalorder %v137, 2
        %v143 = vsel %vm142, 1.0, 0.0
        %vm144 = vcmp.eq.s32.totalorder %v137, 2
        %vm145 = vmor %vm138, %vm144
        %v146 = vsel %vm145, 1.0, 0.0
        %v147 = vmul.f32 %v146, 2.0
        %v148 = vsub.f32 1.0, %v147
        %v149 = vmul.f32 %v141, 2.0
        %v150 = vsub.f32 1.0, %v149
        %v151 = vmul.f32 %v150, 0.5
        %v152 = vmul.f32 %v143, 2.0
        %v153 = vsub.f32 1.0, %v152
        %v154 = vmul.f32 %v153, 0.5
        %v155 = vmul.f32 %v148, 0.5
        %v156 = vsub.f32 %v135, 1.0
        %158 = vset.pattern.permute.xlu0 0
        %159 = vperm.xlu0 %158, %v156
        %v160 = vpop.permute.xlu0 %159
        %v162 = vlaneseq
        %v163 = vshrl.u32 %v162, 7
        %v164 = vsub.s32 0, %v163
        %v165 = vrot.slane %v160, %v164
        %v166 = vmul.f32 %v141, %v165
        %v167 = vadd.f32 %v166, 1.0
        %169 = vset.pattern.permute.xlu0 1
        %170 = vperm.xlu0 %169, %v135
        %v171 = vpop.permute.xlu0 %170
        %v173 = vlaneseq
        %v174 = vshrl.u32 %v173, 7
        %v175 = vsub.s32 0, %v174
        %v176 = vrot.slane %v171, %v175
        %v177 = vmul.f32 %v141, %v176
        %v178 = vmul.f32 %v167, 0.5
        %v179 = vmul.f32 %v177, 0.0
        %v180 = vsub.f32 %v178, %v179
        %v181 = vmul.f32 %v177, 0.5
        %v182 = vmul.f32 %v167, 0.0
        %v183 = vadd.f32 %v181, %v182
        %184 = vset.pattern.permute.xlu0 2
        %185 = vperm.xlu0 %184, %v156
        %v186 = vpop.permute.xlu0 %185
        %v188 = vlaneseq
        %v189 = vshrl.u32 %v188, 7
        %v190 = vsub.s32 0, %v189
        %v191 = vrot.slane %v186, %v190
        %v192 = vmul.f32 %v143, %v191
        %v193 = vadd.f32 %v192, 1.0
        %194 = vset.pattern.permute.xlu0 3
        %195 = vperm.xlu0 %194, %v135
        %v196 = vpop.permute.xlu0 %195
        %v198 = vlaneseq
        %v199 = vshrl.u32 %v198, 7
        %v200 = vsub.s32 0, %v199
        %v201 = vrot.slane %v196, %v200
        %v202 = vmul.f32 %v143, %v201
        %v203 = vmul.f32 %v180, %v193
        %v204 = vmul.f32 %v183, %v202
        %v205 = vsub.f32 %v203, %v204
        %v206 = vmul.f32 %v180, %v202
        %v207 = vmul.f32 %v183, %v193
        %v208 = vadd.f32 %v206, %v207
        %209 = vset.pattern.permute.xlu0 4
        %210 = vperm.xlu0 %209, %v156
        %v211 = vpop.permute.xlu0 %210
        %v213 = vlaneseq
        %v214 = vshrl.u32 %v213, 7
        %v215 = vsub.s32 0, %v214
        %v216 = vrot.slane %v211, %v215
        %v217 = vmul.f32 %v146, %v216
        %v218 = vadd.f32 %v217, 1.0
        %219 = vset.pattern.permute.xlu0 5
        %220 = vperm.xlu0 %219, %v135
        %v221 = vpop.permute.xlu0 %220
        %v223 = vlaneseq
        %v224 = vshrl.u32 %v223, 7
        %v225 = vsub.s32 0, %v224
        %v226 = vrot.slane %v221, %v225
        %v227 = vmul.f32 %v146, %v226
        %v228 = vmul.f32 %v205, %v218
        %v229 = vmul.f32 %v208, %v227
        %v230 = vsub.f32 %v228, %v229
        %v231 = vmul.f32 %v205, %v227
        %v232 = vmul.f32 %v208, %v218
        %v233 = vadd.f32 %v231, %v232
        %235 = vset.pattern.permute.xlu0 0
        %236 = vperm.xlu0 %235, %v230
        %v237 = vpop.permute.xlu0 %236
        %v239 = vmul.f32 %v237, 0.5
        %241 = vset.pattern.permute.xlu0 0
        %242 = vperm.xlu0 %241, %v233
        %v243 = vpop.permute.xlu0 %242
        %v245 = vmul.f32 %v243, 0.5
        %246 = vset.pattern.permute.xlu0 1
        %247 = vperm.xlu0 %246, %v230
        %v248 = vpop.permute.xlu0 %247
        %v250 = vmul.f32 %v248, %v151
        %v251 = vadd.f32 %v239, %v250
        %252 = vset.pattern.permute.xlu0 1
        %253 = vperm.xlu0 %252, %v233
        %v254 = vpop.permute.xlu0 %253
        %v256 = vmul.f32 %v254, %v151
        %v257 = vadd.f32 %v245, %v256
        %258 = vset.pattern.permute.xlu0 2
        %259 = vperm.xlu0 %258, %v230
        %v260 = vpop.permute.xlu0 %259
        %v262 = vmul.f32 %v260, %v154
        %v263 = vadd.f32 %v251, %v262
        %264 = vset.pattern.permute.xlu0 2
        %265 = vperm.xlu0 %264, %v233
        %v266 = vpop.permute.xlu0 %265
        %v268 = vmul.f32 %v266, %v154
        %v269 = vadd.f32 %v257, %v268
        %270 = vset.pattern.permute.xlu0 3
        %271 = vperm.xlu0 %270, %v230
        %v272 = vpop.permute.xlu0 %271
        %v274 = vmul.f32 %v272, %v155
        %v275 = vadd.f32 %v263, %v274
        %276 = vset.pattern.permute.xlu0 3
        %277 = vperm.xlu0 %276, %v233
        %v278 = vpop.permute.xlu0 %277
        %v280 = vmul.f32 %v278, %v155
        %v281 = vadd.f32 %v269, %v280
        %v282 = vmul.f32 %v275, %v167
        %v283 = vmul.f32 %v281, %v177
        %v284 = vsub.f32 %v282, %v283
        %v285 = vmul.f32 %v275, %v177
        %v286 = vmul.f32 %v281, %v167
        %v287 = vadd.f32 %v285, %v286
        %v288 = vmul.f32 %v284, %v193
        %v289 = vmul.f32 %v287, %v202
        %v290 = vsub.f32 %v288, %v289
        %v291 = vmul.f32 %v284, %v202
        %v292 = vmul.f32 %v287, %v193
        %v293 = vadd.f32 %v291, %v292
        %v294 = vmul.f32 %v290, %v218
        %v295 = vmul.f32 %v293, %v227
        %v296 = vsub.f32 %v294, %v295
        %v297 = vmul.f32 %v290, %v227
        %v298 = vmul.f32 %v293, %v218
        %v299 = vadd.f32 %v297, %v298
        %v300 = vld [vmem:[%s1] sm:$0x1]
        %v301 = vld [vmem:[%s1 + $0x1] sm:$0x1]
        %v302 = vld [vmem:[%s1 + $0x2] sm:$0x1]
        %v303 = vld [vmem:[%s1 + $0x3] sm:$0x1]
        %305 = vset.pattern.permute.xlu0 0
        %306 = vperm.xlu0 %305, %v296
        %v307 = vpop.permute.xlu0 %306
        %v309 = vmul.f32 %v307, %v300
        %311 = vset.pattern.permute.xlu0 0
        %312 = vperm.xlu0 %311, %v299
        %v313 = vpop.permute.xlu0 %312
        %v315 = vmul.f32 %v313, %v300
        %316 = vset.pattern.permute.xlu0 1
        %317 = vperm.xlu0 %316, %v296
        %v318 = vpop.permute.xlu0 %317
        %v320 = vmul.f32 %v318, %v301
        %v321 = vadd.f32 %v309, %v320
        %322 = vset.pattern.permute.xlu0 1
        %323 = vperm.xlu0 %322, %v299
        %v324 = vpop.permute.xlu0 %323
        %v326 = vmul.f32 %v324, %v301
        %v327 = vadd.f32 %v315, %v326
        %328 = vset.pattern.permute.xlu0 2
        %329 = vperm.xlu0 %328, %v296
        %v330 = vpop.permute.xlu0 %329
        %v332 = vmul.f32 %v330, %v302
        %v333 = vadd.f32 %v321, %v332
        %334 = vset.pattern.permute.xlu0 2
        %335 = vperm.xlu0 %334, %v299
        %v336 = vpop.permute.xlu0 %335
        %v338 = vmul.f32 %v336, %v302
        %v339 = vadd.f32 %v327, %v338
        %340 = vset.pattern.permute.xlu0 3
        %341 = vperm.xlu0 %340, %v296
        %v342 = vpop.permute.xlu0 %341
        %v344 = vmul.f32 %v342, %v303
        %v345 = vadd.f32 %v333, %v344
        %346 = vset.pattern.permute.xlu0 3
        %347 = vperm.xlu0 %346, %v299
        %v348 = vpop.permute.xlu0 %347
        %v350 = vmul.f32 %v348, %v303
        %v351 = vadd.f32 %v339, %v350
        %v352 = vmul.f32 %v345, %v345
        %v353 = vmul.f32 %v351, %v351
        %v354 = vadd.f32 %v352, %v353
        %v355 = vmul.f32 %v354, %v148
        %vm356 = vcmask 24576
        %v357 = vsel %vm356, %v355, 0.0
        %358 = vadd.xlane.f32.xlu0 %v357
        %v359 = vpop.xlane.xlu0 %358
        %v360 = vlaneseq
        %v361 = vshrl.u32 %v360, 7
        %v362 = vsub.s32 0, %v361
        %v363 = vrot.slane %v135, %v362
        %364 = vrot.lane.b32.xlu0 %v363, 122
        %v365 = vpop.permute.xlu0 %364
        %v367 = vmul.f32 %v359, %v365
        %368 = vrot.lane.b32.xlu0 %v363, 121
        %v369 = vpop.permute.xlu0 %368
        %v371 = vadd.f32 %v367, %v369
        %vm372 = vcmp.eq.s32.totalorder %v137, 0
        %v373 = vsub.f32 1.0, %v371
        %375 = vset.pattern.permute.xlu0 0
        %376 = vperm.xlu0 %375, %v371
        %v377 = vpop.permute.xlu0 %376
        %380 = vset.pattern.permute.xlu0 0
        %381 = vperm.xlu0 %380, %v373
        %v382 = vpop.permute.xlu0 %381
        %v384 = vsel %vm372, %v377, %v382
        %vm385 = vcmask 8192
        %386 = vst.msk [vmem:[%s131] sm:$0x1] %vm385, %v384
        %s387 = sand.u32 %s71, 1
        %s388 = scalar_lea.sflag [#allocation3], %s387
        %s389 = sand.u32 %s71, 1
        %s390 = scalar_lea.vmem [#allocation2], %s389
        // Predicated region
        $region29: #{net_forward.3} parent=27 // pred_check
          %p391 = pneg %p81
        $region30: #{net_forward.3} parent=27 // pred_check_branch
          %393 = sbr.rel (%p391) target = $region32
        $region31: #{net_forward.3} parent=27 // pred_region
          %s395 = ssub.s32 16, 16
          %396 = vsyncadd %s388, %s395
          %s397 = smul.addr %s16, 16
          %s398 = scalar_lea.hbm %s2, %s397
          %s400 = sshll.u32 %s390, 4
          %s401 = int_to_ptr.vmem [resolvable:$true] %s400
          %403 = dma.vmem_to_hbm [thread:$0]  %s401, 16, %s398, %s388
        $region32: #{net_forward.3} parent=27 // pred_fallthru
          _
      $region28: #{net_forward.3} parent=5 // pred_fallthru
        _
      %p404 = scmp.le.s32.totalorder 2, %s11
      // Predicated region
      $region33: #{net_forward.3} parent=5 // pred_check
        %p405 = pneg %p404
      $region34: #{net_forward.3} parent=5 // pred_check_branch
        %407 = sbr.rel (%p405) target = $region36
      $region35: #{net_forward.3} parent=5 // pred_region
        %s408 = ssub.s32 %s11, 2
        // Predicated region
        $region37: #{net_forward.3} parent=35 // pred_check
          %p409 = pneg %p87
        $region38: #{net_forward.3} parent=35 // pred_check_branch
          %411 = sbr.rel (%p409) target = $region40
        $region39: #{net_forward.3} parent=35 // pred_region
          %s412 = sand.u32 %s72, 1
          %s413 = scalar_lea.sflag [#allocation3], %s412
          %s414 = sand.u32 %s72, 1
          %s415 = scalar_lea.vmem [#allocation2], %s414
          %416 = dma.done %s413, 16
        $region40: #{net_forward.3} parent=35 // pred_fallthru
          _
      $region36: #{net_forward.3} parent=5 // pred_fallthru
        _
    $region6: #{net_forward.3} parent=1 // loop_footer
      %s15 = sadd.s32 1, %s11
    $region7: #{net_forward.3} parent=1 // loop_footer_branch
      %10 = sbr.rel target = $region3
    $region8: #{net_forward.3} parent=1 // loop_exit
      _
    %417 = vsyncpa [#allocation3], 1
    %s418 = scalar_lea.sflag [#allocation3], 1
    %419 = vsyncpa %s418, 1

// kernel: net_forward.2
$region0: #{net_forward.2}
  #allocation0 [shape = 'u32[]', space=smem, size = 0x4, offset = 0x4, fixed_abs, tag = 'smem constant byte address 0x4 - core index']
  #allocation1 [shape = 'u32[144,128]{1,0:T(1,128)}', space=vmem, size = 0x12000, scoped, tag = 'internal scratch']
  #allocation2 [shape = 'f32[12,24]{1,0:T(8,128)}', space=vmem, size = 0x2000, scoped, tag = 'scratch operand']
  %s0 = inlined_call_operand.vmem [shape: f32[2,28,28], index: 0, kind: input, shape index: {}]
  %s1 = inlined_call_operand.vmem [shape: f32[5,28,48], index: 1, kind: input, shape index: {}]
  %s2 = inlined_call_operand.vmem [shape: f32[1,48], index: 2, kind: input, shape index: {}]
  %s3 = inlined_call_operand.vmem [shape: f32[2,48,24], index: 3, kind: input, shape index: {}]
  %s4 = inlined_call_operand.vmem [shape: f32[2,12,24], index: 4, kind: input, shape index: {}]
  %s5 = inlined_call_operand.vmem [shape: f32[5,24,128], index: 5, kind: input, shape index: {}]
  %s6 = inlined_call_operand.vmem [shape: f32[1,128], index: 6, kind: input, shape index: {}]
  %s7 = inlined_call_operand.vmem [shape: f32[2,128,64], index: 7, kind: input, shape index: {}]
  %s8 = inlined_call_operand.vmem [shape: f32[4,64,64], index: 8, kind: input, shape index: {}]
  %s9 = inlined_call_operand.vmem [shape: f32[1,64], index: 9, kind: input, shape index: {}]
  %s10 = inlined_call_operand.vmem [shape: f32[64,2], index: 10, kind: input, shape index: {}]
  %s11 = inlined_call_operand.vmem [shape: f32[1,2], index: 11, kind: input, shape index: {}]
  %s12 = inlined_call_operand.vmem [shape: f32[2,1,2], index: 12, kind: output, shape index: {}]
  %s13 = sld [smem:[#allocation0]]
  $region81: #{net_forward.2} parent=0
    _
  %s15 = ssub.s32 1, %s13
  %s16 = scalar_select 0, %s15, %s13
  loop: start=0, step=1, limit=4
  $region2: #{net_forward.2} parent=0 // loop_pre_header
    _
  $region3: #{net_forward.2} parent=0 // loop_header
    %s18 = sphi 0, %s22
    %p19 = scmp.ge.s32.totalorder %s18, 4
    %s28 = sphi 0, %s30
    %s31 = sphi 0, %s28
    %s32 = sphi 0, %s31
    %s48 = sphi 0, %s32
    %s52 = sphi 0, %s52
    %s54 = sphi 0, %s52
    %s55 = sphi 0, %s54
    %s69 = sphi 0, %s55
    %s73 = sphi 0, %s73
    %s75 = sphi 0, %s73
    %s76 = sphi 0, %s75
    %s90 = sphi 0, %s76
    %s94 = sphi 0, %s94
    %s96 = sphi 0, %s94
    %s97 = sphi 0, %s96
    %s111 = sphi 0, %s97
    %s115 = sphi 0, %s115
    %s117 = sphi 0, %s115
    %s118 = sphi 0, %s117
    %s132 = sphi 0, %s118
    %s136 = sphi 0, %s136
    %s138 = sphi 0, %s136
    %s139 = sphi 0, %s138
    %s153 = sphi 0, %s139
    %s157 = sphi 0, %s157
    %s159 = sphi 0, %s157
    %s160 = sphi 0, %s159
    %s174 = sphi 0, %s160
    %s178 = sphi 0, %s178
    %s180 = sphi 0, %s178
    %s181 = sphi 0, %s180
    %s195 = sphi 0, %s181
    %s199 = sphi 0, %s199
    %s201 = sphi 0, %s199
    %s202 = sphi 0, %s201
    %s216 = sphi 0, %s202
    %s220 = sphi 0, %s220
    %s222 = sphi 0, %s220
    %s223 = sphi 0, %s222
    %s237 = sphi 0, %s223
    %s241 = sphi 0, %s241
    %s243 = sphi 0, %s241
    %s244 = sphi 0, %s243
    %s258 = sphi 0, %s244
    %s262 = sphi 0, %s262
    %s264 = sphi 0, %s262
    %s265 = sphi 0, %s264
    %s279 = sphi 0, %s265
    %s285 = sphi 0, %s287
    %s288 = sphi 0, %s285
    %s289 = sphi 0, %s288
    %s305 = sphi 0, %s289
  $region4: #{net_forward.2} parent=0 // loop_header_branch
    %21 = sbr.rel (%p19) target = $region8
  $region5: #{net_forward.2} parent=0 // loop_body
    %s23 = ssub.s32 %s18, 1
    %s24 = ssub.s32 %s18, 2
    %s25 = sadd.s32 %s18, 1
    %s26 = ssub.s32 %s18, %s25
    %p27 = scmp.eq.s32.totalorder %s26, 0
    %s29 = sadd.s32 %s28, 1
    %s30 = scalar_select %p27, %s28, %s29
    %p33 = pneg %p27
    %p34 = scmp.eq.s32.totalorder %s18, 1
    %p35 = por %p33, %p34
    %p36 = scmp.ne.s32.totalorder %s28, %s31
    %p37 = scmp.eq.s32.totalorder %s18, 0
    %p38 = por %p36, %p37
    %p39 = scmp.ne.s32.totalorder %s28, %s31
    %p40 = scmp.eq.s32.totalorder %s23, 1
    %p41 = por %p39, %p40
    %p42 = scmp.ne.s32.totalorder %s31, %s32
    %p43 = scmp.eq.s32.totalorder %s23, 0
    %p44 = por %p42, %p43
    %p45 = scmp.ne.s32.totalorder %s31, %s32
    %p46 = scmp.eq.s32.totalorder %s24, 1
    %p47 = por %p45, %p46
    %p49 = scmp.ne.s32.totalorder %s32, %s48
    %p50 = scmp.eq.s32.totalorder %s24, 0
    %p51 = por %p49, %p50
    %s53 = sadd.s32 %s52, 1
    %p56 = scmp.eq.s32.totalorder %s18, 1
    %p57 = scmp.ne.s32.totalorder %s52, %s54
    %p58 = scmp.eq.s32.totalorder %s18, 0
    %p59 = por %p57, %p58
    %p60 = scmp.ne.s32.totalorder %s52, %s54
    %p61 = scmp.eq.s32.totalorder %s23, 1
    %p62 = por %p60, %p61
    %p63 = scmp.ne.s32.totalorder %s54, %s55
    %p64 = scmp.eq.s32.totalorder %s23, 0
    %p65 = por %p63, %p64
    %p66 = scmp.ne.s32.totalorder %s54, %s55
    %p67 = scmp.eq.s32.totalorder %s24, 1
    %p68 = por %p66, %p67
    %p70 = scmp.ne.s32.totalorder %s55, %s69
    %p71 = scmp.eq.s32.totalorder %s24, 0
    %p72 = por %p70, %p71
    %s74 = sadd.s32 %s73, 1
    %p77 = scmp.eq.s32.totalorder %s18, 1
    %p78 = scmp.ne.s32.totalorder %s73, %s75
    %p79 = scmp.eq.s32.totalorder %s18, 0
    %p80 = por %p78, %p79
    %p81 = scmp.ne.s32.totalorder %s73, %s75
    %p82 = scmp.eq.s32.totalorder %s23, 1
    %p83 = por %p81, %p82
    %p84 = scmp.ne.s32.totalorder %s75, %s76
    %p85 = scmp.eq.s32.totalorder %s23, 0
    %p86 = por %p84, %p85
    %p87 = scmp.ne.s32.totalorder %s75, %s76
    %p88 = scmp.eq.s32.totalorder %s24, 1
    %p89 = por %p87, %p88
    %p91 = scmp.ne.s32.totalorder %s76, %s90
    %p92 = scmp.eq.s32.totalorder %s24, 0
    %p93 = por %p91, %p92
    %s95 = sadd.s32 %s94, 1
    %p98 = scmp.eq.s32.totalorder %s18, 1
    %p99 = scmp.ne.s32.totalorder %s94, %s96
    %p100 = scmp.eq.s32.totalorder %s18, 0
    %p101 = por %p99, %p100
    %p102 = scmp.ne.s32.totalorder %s94, %s96
    %p103 = scmp.eq.s32.totalorder %s23, 1
    %p104 = por %p102, %p103
    %p105 = scmp.ne.s32.totalorder %s96, %s97
    %p106 = scmp.eq.s32.totalorder %s23, 0
    %p107 = por %p105, %p106
    %p108 = scmp.ne.s32.totalorder %s96, %s97
    %p109 = scmp.eq.s32.totalorder %s24, 1
    %p110 = por %p108, %p109
    %p112 = scmp.ne.s32.totalorder %s97, %s111
    %p113 = scmp.eq.s32.totalorder %s24, 0
    %p114 = por %p112, %p113
    %s116 = sadd.s32 %s115, 1
    %p119 = scmp.eq.s32.totalorder %s18, 1
    %p120 = scmp.ne.s32.totalorder %s115, %s117
    %p121 = scmp.eq.s32.totalorder %s18, 0
    %p122 = por %p120, %p121
    %p123 = scmp.ne.s32.totalorder %s115, %s117
    %p124 = scmp.eq.s32.totalorder %s23, 1
    %p125 = por %p123, %p124
    %p126 = scmp.ne.s32.totalorder %s117, %s118
    %p127 = scmp.eq.s32.totalorder %s23, 0
    %p128 = por %p126, %p127
    %p129 = scmp.ne.s32.totalorder %s117, %s118
    %p130 = scmp.eq.s32.totalorder %s24, 1
    %p131 = por %p129, %p130
    %p133 = scmp.ne.s32.totalorder %s118, %s132
    %p134 = scmp.eq.s32.totalorder %s24, 0
    %p135 = por %p133, %p134
    %s137 = sadd.s32 %s136, 1
    %p140 = scmp.eq.s32.totalorder %s18, 1
    %p141 = scmp.ne.s32.totalorder %s136, %s138
    %p142 = scmp.eq.s32.totalorder %s18, 0
    %p143 = por %p141, %p142
    %p144 = scmp.ne.s32.totalorder %s136, %s138
    %p145 = scmp.eq.s32.totalorder %s23, 1
    %p146 = por %p144, %p145
    %p147 = scmp.ne.s32.totalorder %s138, %s139
    %p148 = scmp.eq.s32.totalorder %s23, 0
    %p149 = por %p147, %p148
    %p150 = scmp.ne.s32.totalorder %s138, %s139
    %p151 = scmp.eq.s32.totalorder %s24, 1
    %p152 = por %p150, %p151
    %p154 = scmp.ne.s32.totalorder %s139, %s153
    %p155 = scmp.eq.s32.totalorder %s24, 0
    %p156 = por %p154, %p155
    %s158 = sadd.s32 %s157, 1
    %p161 = scmp.eq.s32.totalorder %s18, 1
    %p162 = scmp.ne.s32.totalorder %s157, %s159
    %p163 = scmp.eq.s32.totalorder %s18, 0
    %p164 = por %p162, %p163
    %p165 = scmp.ne.s32.totalorder %s157, %s159
    %p166 = scmp.eq.s32.totalorder %s23, 1
    %p167 = por %p165, %p166
    %p168 = scmp.ne.s32.totalorder %s159, %s160
    %p169 = scmp.eq.s32.totalorder %s23, 0
    %p170 = por %p168, %p169
    %p171 = scmp.ne.s32.totalorder %s159, %s160
    %p172 = scmp.eq.s32.totalorder %s24, 1
    %p173 = por %p171, %p172
    %p175 = scmp.ne.s32.totalorder %s160, %s174
    %p176 = scmp.eq.s32.totalorder %s24, 0
    %p177 = por %p175, %p176
    %s179 = sadd.s32 %s178, 1
    %p182 = scmp.eq.s32.totalorder %s18, 1
    %p183 = scmp.ne.s32.totalorder %s178, %s180
    %p184 = scmp.eq.s32.totalorder %s18, 0
    %p185 = por %p183, %p184
    %p186 = scmp.ne.s32.totalorder %s178, %s180
    %p187 = scmp.eq.s32.totalorder %s23, 1
    %p188 = por %p186, %p187
    %p189 = scmp.ne.s32.totalorder %s180, %s181
    %p190 = scmp.eq.s32.totalorder %s23, 0
    %p191 = por %p189, %p190
    %p192 = scmp.ne.s32.totalorder %s180, %s181
    %p193 = scmp.eq.s32.totalorder %s24, 1
    %p194 = por %p192, %p193
    %p196 = scmp.ne.s32.totalorder %s181, %s195
    %p197 = scmp.eq.s32.totalorder %s24, 0
    %p198 = por %p196, %p197
    %s200 = sadd.s32 %s199, 1
    %p203 = scmp.eq.s32.totalorder %s18, 1
    %p204 = scmp.ne.s32.totalorder %s199, %s201
    %p205 = scmp.eq.s32.totalorder %s18, 0
    %p206 = por %p204, %p205
    %p207 = scmp.ne.s32.totalorder %s199, %s201
    %p208 = scmp.eq.s32.totalorder %s23, 1
    %p209 = por %p207, %p208
    %p210 = scmp.ne.s32.totalorder %s201, %s202
    %p211 = scmp.eq.s32.totalorder %s23, 0
    %p212 = por %p210, %p211
    %p213 = scmp.ne.s32.totalorder %s201, %s202
    %p214 = scmp.eq.s32.totalorder %s24, 1
    %p215 = por %p213, %p214
    %p217 = scmp.ne.s32.totalorder %s202, %s216
    %p218 = scmp.eq.s32.totalorder %s24, 0
    %p219 = por %p217, %p218
    %s221 = sadd.s32 %s220, 1
    %p224 = scmp.eq.s32.totalorder %s18, 1
    %p225 = scmp.ne.s32.totalorder %s220, %s222
    %p226 = scmp.eq.s32.totalorder %s18, 0
    %p227 = por %p225, %p226
    %p228 = scmp.ne.s32.totalorder %s220, %s222
    %p229 = scmp.eq.s32.totalorder %s23, 1
    %p230 = por %p228, %p229
    %p231 = scmp.ne.s32.totalorder %s222, %s223
    %p232 = scmp.eq.s32.totalorder %s23, 0
    %p233 = por %p231, %p232
    %p234 = scmp.ne.s32.totalorder %s222, %s223
    %p235 = scmp.eq.s32.totalorder %s24, 1
    %p236 = por %p234, %p235
    %p238 = scmp.ne.s32.totalorder %s223, %s237
    %p239 = scmp.eq.s32.totalorder %s24, 0
    %p240 = por %p238, %p239
    %s242 = sadd.s32 %s241, 1
    %p245 = scmp.eq.s32.totalorder %s18, 1
    %p246 = scmp.ne.s32.totalorder %s241, %s243
    %p247 = scmp.eq.s32.totalorder %s18, 0
    %p248 = por %p246, %p247
    %p249 = scmp.ne.s32.totalorder %s241, %s243
    %p250 = scmp.eq.s32.totalorder %s23, 1
    %p251 = por %p249, %p250
    %p252 = scmp.ne.s32.totalorder %s243, %s244
    %p253 = scmp.eq.s32.totalorder %s23, 0
    %p254 = por %p252, %p253
    %p255 = scmp.ne.s32.totalorder %s243, %s244
    %p256 = scmp.eq.s32.totalorder %s24, 1
    %p257 = por %p255, %p256
    %p259 = scmp.ne.s32.totalorder %s244, %s258
    %p260 = scmp.eq.s32.totalorder %s24, 0
    %p261 = por %p259, %p260
    %s263 = sadd.s32 %s262, 1
    %p266 = scmp.eq.s32.totalorder %s18, 1
    %p267 = scmp.ne.s32.totalorder %s262, %s264
    %p268 = scmp.eq.s32.totalorder %s18, 0
    %p269 = por %p267, %p268
    %p270 = scmp.ne.s32.totalorder %s262, %s264
    %p271 = scmp.eq.s32.totalorder %s23, 1
    %p272 = por %p270, %p271
    %p273 = scmp.ne.s32.totalorder %s264, %s265
    %p274 = scmp.eq.s32.totalorder %s23, 0
    %p275 = por %p273, %p274
    %p276 = scmp.ne.s32.totalorder %s264, %s265
    %p277 = scmp.eq.s32.totalorder %s24, 1
    %p278 = por %p276, %p277
    %p280 = scmp.ne.s32.totalorder %s265, %s279
    %p281 = scmp.eq.s32.totalorder %s24, 0
    %p282 = por %p280, %p281
    %s283 = ssub.s32 %s18, %s25
    %p284 = scmp.eq.s32.totalorder %s283, 0
    %s286 = sadd.s32 %s285, 1
    %s287 = scalar_select %p284, %s285, %s286
    %p290 = pneg %p284
    %p291 = scmp.eq.s32.totalorder %s18, 1
    %p292 = por %p290, %p291
    %p293 = scmp.ne.s32.totalorder %s285, %s288
    %p294 = scmp.eq.s32.totalorder %s18, 0
    %p295 = por %p293, %p294
    %p296 = scmp.ne.s32.totalorder %s285, %s288
    %p297 = scmp.eq.s32.totalorder %s23, 1
    %p298 = por %p296, %p297
    %p299 = scmp.ne.s32.totalorder %s288, %s289
    %p300 = scmp.eq.s32.totalorder %s23, 0
    %p301 = por %p299, %p300
    %p302 = scmp.ne.s32.totalorder %s288, %s289
    %p303 = scmp.eq.s32.totalorder %s24, 1
    %p304 = por %p302, %p303
    %p306 = scmp.ne.s32.totalorder %s289, %s305
    %p307 = scmp.eq.s32.totalorder %s24, 0
    %p308 = por %p306, %p307
    %p309 = scmp.le.s32.totalorder 1, %s18
    %p310 = scmp.lt.s32.totalorder %s18, 3
    %p311 = pnand %p309, %p310
    %p312 = pneg %p311
    // Predicated region
    $region9: #{net_forward.2} parent=5 // pred_check
      _
    $region10: #{net_forward.2} parent=5 // pred_check_branch
      %314 = sbr.rel (%p311) target = $region12
    $region11: #{net_forward.2} parent=5 // pred_region
      %s315 = ssub.s32 %s18, 1
      // Predicated region
      $region13: #{net_forward.2} parent=11 // pred_check
        %p316 = pneg %p65
      $region14: #{net_forward.2} parent=11 // pred_check_branch
        %318 = sbr.rel (%p316) target = $region16
      $region15: #{net_forward.2} parent=11 // pred_region
        _
      $region16: #{net_forward.2} parent=11 // pred_fallthru
        _
      // Predicated region
      $region17: #{net_forward.2} parent=11 // pred_check
        %p319 = pneg %p86
      $region18: #{net_forward.2} parent=11 // pred_check_branch
        %321 = sbr.rel (%p319) target = $region20
      $region19: #{net_forward.2} parent=11 // pred_region
        _
      $region20: #{net_forward.2} parent=11 // pred_fallthru
        _
      // Predicated region
      $region21: #{net_forward.2} parent=11 // pred_check
        %p322 = pneg %p107
      $region22: #{net_forward.2} parent=11 // pred_check_branch
        %324 = sbr.rel (%p322) target = $region24
      $region23: #{net_forward.2} parent=11 // pred_region
        _
      $region24: #{net_forward.2} parent=11 // pred_fallthru
        _
      // Predicated region
      $region25: #{net_forward.2} parent=11 // pred_check
        %p325 = pneg %p128
      $region26: #{net_forward.2} parent=11 // pred_check_branch
        %327 = sbr.rel (%p325) target = $region28
      $region27: #{net_forward.2} parent=11 // pred_region
        _
      $region28: #{net_forward.2} parent=11 // pred_fallthru
        _
      // Predicated region
      $region29: #{net_forward.2} parent=11 // pred_check
        %p328 = pneg %p149
      $region30: #{net_forward.2} parent=11 // pred_check_branch
        %330 = sbr.rel (%p328) target = $region32
      $region31: #{net_forward.2} parent=11 // pred_region
        _
      $region32: #{net_forward.2} parent=11 // pred_fallthru
        _
      // Predicated region
      $region33: #{net_forward.2} parent=11 // pred_check
        %p331 = pneg %p170
      $region34: #{net_forward.2} parent=11 // pred_check_branch
        %333 = sbr.rel (%p331) target = $region36
      $region35: #{net_forward.2} parent=11 // pred_region
        _
      $region36: #{net_forward.2} parent=11 // pred_fallthru
        _
      // Predicated region
      $region37: #{net_forward.2} parent=11 // pred_check
        %p334 = pneg %p191
      $region38: #{net_forward.2} parent=11 // pred_check_branch
        %336 = sbr.rel (%p334) target = $region40
      $region39: #{net_forward.2} parent=11 // pred_region
        _
      $region40: #{net_forward.2} parent=11 // pred_fallthru
        _
      // Predicated region
      $region41: #{net_forward.2} parent=11 // pred_check
        %p337 = pneg %p212
      $region42: #{net_forward.2} parent=11 // pred_check_branch
        %339 = sbr.rel (%p337) target = $region44
      $region43: #{net_forward.2} parent=11 // pred_region
        _
      $region44: #{net_forward.2} parent=11 // pred_fallthru
        _
      // Predicated region
      $region45: #{net_forward.2} parent=11 // pred_check
        %p340 = pneg %p233
      $region46: #{net_forward.2} parent=11 // pred_check_branch
        %342 = sbr.rel (%p340) target = $region48
      $region47: #{net_forward.2} parent=11 // pred_region
        _
      $region48: #{net_forward.2} parent=11 // pred_fallthru
        _
      // Predicated region
      $region49: #{net_forward.2} parent=11 // pred_check
        %p343 = pneg %p254
      $region50: #{net_forward.2} parent=11 // pred_check_branch
        %345 = sbr.rel (%p343) target = $region52
      $region51: #{net_forward.2} parent=11 // pred_region
        _
      $region52: #{net_forward.2} parent=11 // pred_fallthru
        _
      // Predicated region
      $region53: #{net_forward.2} parent=11 // pred_check
        %p346 = pneg %p275
      $region54: #{net_forward.2} parent=11 // pred_check_branch
        %348 = sbr.rel (%p346) target = $region56
      $region55: #{net_forward.2} parent=11 // pred_region
        _
      $region56: #{net_forward.2} parent=11 // pred_fallthru
        _
    $region12: #{net_forward.2} parent=5 // pred_fallthru
      _
    %p349 = scmp.lt.s32.totalorder %s18, 2
    // Predicated region
    $region57: #{net_forward.2} parent=5 // pred_check
      %p350 = pneg %p349
    $region58: #{net_forward.2} parent=5 // pred_check_branch
      %352 = sbr.rel (%p350) target = $region60
    $region59: #{net_forward.2} parent=5 // pred_region
      // Predicated region
      $region61: #{net_forward.2} parent=59 // pred_check
        %p353 = pneg %p38
      $region62: #{net_forward.2} parent=59 // pred_check_branch
        %355 = sbr.rel (%p353) target = $region64
      $region63: #{net_forward.2} parent=59 // pred_region
        %p356 = scmp.lt.s32.totalorder %s18, 1
        %s357 = scalar_select %p356, %s18, 1
        %s358 = smul.addr %s357, 4
        %s359 = smul.addr %s358, 8
        %s360 = scalar_lea.vmem %s0, %s359
      $region64: #{net_forward.2} parent=59 // pred_fallthru
        _
    $region60: #{net_forward.2} parent=5 // pred_fallthru
      _
    %p361 = scmp.le.s32.totalorder 1, %s18
    %p362 = scmp.lt.s32.totalorder %s18, 3
    %p363 = pnand %p361, %p362
    %p364 = pneg %p363
    // Predicated region
    $region65: #{net_forward.2} parent=5 // pred_check
      _
    $region66: #{net_forward.2} parent=5 // pred_check_branch
      %366 = sbr.rel (%p363) target = $region68
    $region67: #{net_forward.2} parent=5 // pred_region
      %s367 = ssub.s32 %s18, 1
      %p368 = scmp.lt.s32.totalorder %s23, 1
      %s369 = scalar_select %p368, %s23, 1
      %s370 = smul.addr %s369, 4
      %s371 = smul.addr %s370, 8
      %s372 = scalar_lea.vmem %s0, %s371
      %p373 = pneg %p44
      %p374 = pneg %p41
      %p375 = pneg %p65
      %p376 = pneg %p62
      %p377 = pneg %p86
      %p378 = pneg %p83
      %p379 = pneg %p107
      %p380 = pneg %p104
      %p381 = pneg %p128
      %p382 = pneg %p125
      %p383 = pneg %p149
      %p384 = pneg %p146
      %p385 = pneg %p170
      %p386 = pneg %p167
      %p387 = pneg %p191
      %p388 = pneg %p188
      %p389 = pneg %p212
      %p390 = pneg %p209
      %p391 = pneg %p233
      %p392 = pneg %p230
      %p393 = pneg %p254
      %p394 = pneg %p251
      %p395 = pneg %p275
      %p396 = pneg %p272
      %p397 = pneg %p301
      %p398 = pneg %p298
      %p399 = scmp.lt.s32.totalorder %s23, 1
      %s400 = scalar_select %p399, %s23, 1
      %s401 = scalar_lea.vmem %s12, %s400
      %p402 = scmp.lt.s32.totalorder %s23, 1
      %s403 = scalar_select %p402, %s23, 1
      %s404 = smul.addr %s403, 4
      %s405 = smul.addr %s404, 8
      %s406 = scalar_lea.vmem %s0, %s405
      %p407 = scmp.lt.s32.totalorder %s23, 1
      %s408 = scalar_select %p407, %s23, 1
      %s409 = scalar_lea.vmem %s12, %s408
      %v410 = vld [vmem:[%s406] sm:$0xff]
      %v411 = vld [vmem:[%s406 + $0x8] sm:$0xff]
      %v412 = vld [vmem:[%s406 + $0x10] sm:$0xff]
      %v413 = vld [vmem:[%s1] sm:$0xff]
      %v414 = vld [vmem:[%s1 + $0x8] sm:$0xff]
      %v415 = vld [vmem:[%s1 + $0x10] sm:$0xff]
      %v416 = vld [vmem:[%s1 + $0x18] sm:$0xf]
      %v417 = vld [vmem:[%s406 + $0x1] sm:$0xff]
      %v418 = vld [vmem:[%s406 + $0x9] sm:$0xff]
      %v419 = vld [vmem:[%s406 + $0x11] sm:$0xff]
      %s420 = scalar_lea.vmem %s1, 32
      %v421 = vld [vmem:[%s420] sm:$0xff]
      %v422 = vld [vmem:[%s420 + $0x8] sm:$0xff]
      %v423 = vld [vmem:[%s420 + $0x10] sm:$0xff]
      %v424 = vld [vmem:[%s420 + $0x18] sm:$0xf]
      %vm425 = vcmask 228352
      %v427 = vsel %vm425, %v417, 0
      %v430 = vsel %vm425, %v418, 0
      %v433 = vsel %vm425, %v419, 0
      %vm435 = vcmask 1043456
      %v437 = vsel %vm435, %v424, 0
      %439 = vmatprep.subr.mxu0 0.0
      %440 = vmatpush1.msra.mxu0 0.0
      %441 = vmatprep.subr.mxu0 0.0
      %442 = vmatpush1.msra.mxu0 0.0
      %443 = vmatprep.subr.mxu0 0.0
      %444 = vmatpush1.msra.mxu0 0.0
      %445 = vmatprep.subr.mxu0 0.0
      %446 = vmatpush1.msra.mxu0 0.0
      %447 = vmatprep.subr.mxu0 0.0
      %448 = vmatpush1.msra.mxu0 0.0
      %449 = vmatprep.subr.mxu0 0.0
      %450 = vmatpush1.msra.mxu0 0.0
      %451 = vmatprep.subr.mxu0 0.0
      %452 = vmatpush1.msra.mxu0 0.0
      %453 = vmatprep.subr.mxu0 0.0
      %454 = vmatpush1.msra.mxu0 0.0
      %455 = vmatprep.subr.mxu0 0.0
      %456 = vmatpush1.msra.mxu0 0.0
      %457 = vmatprep.subr.mxu0 0.0
      %458 = vmatpush1.msra.mxu0 0.0
      %459 = vmatprep.subr.mxu0 0.0
      %460 = vmatpush1.msra.mxu0 0.0
      %461 = vmatprep.subr.mxu0 0.0
      %462 = vmatpush1.msra.mxu0 0.0
      %463 = vmatprep.subr.mxu0 0.0
      %464 = vmatpush1.msra.mxu0 %v437
      %465 = vmatprep.subr.mxu0 0.0
      %466 = vmatpush1.msra.mxu0 %v423
      %467 = vmatprep.subr.mxu0 0.0
      %468 = vmatpush1.msra.mxu0 %v422
      %469 = vmatprep.subr.mxu0 0.0
      %470 = vmatpush1.msra.mxu0 %v421
      %471 = vmatprep.subr.mxu0 0.0
      %472 = vmatpush2.msra.mxu0 0.0
      %473 = vmatprep.subr.mxu0 0.0
      %474 = vmatpush2.msra.mxu0 0.0
      %475 = vmatprep.subr.mxu0 0.0
      %476 = vmatpush2.msra.mxu0 0.0
      %477 = vmatprep.subr.mxu0 0.0
      %478 = vmatpush2.msra.mxu0 0.0
      %479 = vmatprep.subr.mxu0 0.0
      %480 = vmatpush2.msra.mxu0 0.0
      %481 = vmatprep.subr.mxu0 0.0
      %482 = vmatpush2.msra.mxu0 0.0
      %483 = vmatprep.subr.mxu0 0.0
      %484 = vmatpush2.msra.mxu0 0.0
      %485 = vmatprep.subr.mxu0 0.0
      %486 = vmatpush2.msra.mxu0 0.0
      %487 = vmatprep.subr.mxu0 0.0
      %488 = vmatpush2.msra.mxu0 0.0
      %489 = vmatprep.subr.mxu0 0.0
      %490 = vmatpush2.msra.mxu0 0.0
      %491 = vmatprep.subr.mxu0 0.0
      %492 = vmatpush2.msra.mxu0 0.0
      %493 = vmatprep.subr.mxu0 0.0
      %494 = vmatpush2.msra.mxu0 0.0
      %495 = vmatprep.subr.mxu0 0.0
      %496 = vmatpush2.msra.mxu0 0.0
      %497 = vmatprep.subr.mxu0 0.0
      %498 = vmatpush2.msra.mxu0 0.0
      %499 = vmatprep.subr.mxu0 0.0
      %500 = vmatpush2.msra.mxu0 0.0
      %501 = vmatprep.subr.mxu0 0.0
      %502 = vmatpush2.msra.mxu0 0.0
      %503 = vmatprep.mubr.f32.mxu0 0.0
      %504 = vmatmul.mubr.f32.gmra.mxu0 %v427
      %v505 = vpop.f32.mrf.mxu0
      %v506 = vadd.f32 0.0, %v505
      %v507 = vpop.f32.mrf.mxu0
      %508 = vmatprep.mubr.f32.mxu0 0.0
      %509 = vmatmul.mubr.f32.gmra.mxu0 %v430
      %v510 = vpop.f32.mrf.mxu0
      %v511 = vadd.f32 0.0, %v510
      %v512 = vpop.f32.mrf.mxu0
      %513 = vmatprep.mubr.f32.mxu0 0.0
      %514 = vmatmul.mubr.f32.gmra.mxu0 %v433
      %v515 = vpop.f32.mrf.mxu0
      %v516 = vadd.f32 0.0, %v515
      %v517 = vpop.f32.mrf.mxu0
      %518 = vdwg.mxu0
      %v520 = vsel %vm425, %v410, 0
      %v523 = vsel %vm425, %v411, 0
      %v526 = vsel %vm425, %v412, 0
      %v529 = vsel %vm435, %v416, 0
      %531 = vmatprep.subr.mxu0 0.0
      %532 = vmatpush1.msra.mxu0 0.0
      %533 = vmatprep.subr.mxu0 0.0
      %534 = vmatpush1.msra.mxu0 0.0
      %535 = vmatprep.subr.mxu0 0.0
      %536 = vmatpush1.msra.mxu0 0.0
      %537 = vmatprep.subr.mxu0 0.0
      %538 = vmatpush1.msra.mxu0 0.0
      %539 = vmatprep.subr.mxu0 0.0
      %540 = vmatpush1.msra.mxu0 0.0
      %541 = vmatprep.subr.mxu0 0.0
      %542 = vmatpush1.msra.mxu0 0.0
      %543 = vmatprep.subr.mxu0 0.0
      %544 = vmatpush1.msra.mxu0 0.0
      %545 = vmatprep.subr.mxu0 0.0
      %546 = vmatpush1.msra.mxu0 0.0
      %547 = vmatprep.subr.mxu0 0.0
      %548 = vmatpush1.msra.mxu0 0.0
      %549 = vmatprep.subr.mxu0 0.0
      %550 = vmatpush1.msra.mxu0 0.0
      %551 = vmatprep.subr.mxu0 0.0
      %552 = vmatpush1.msra.mxu0 0.0
      %553 = vmatprep.subr.mxu0 0.0
      %554 = vmatpush1.msra.mxu0 0.0
      %555 = vmatprep.subr.mxu0 0.0
      %556 = vmatpush1.msra.mxu0 %v529
      %557 = vmatprep.subr.mxu0 0.0
      %558 = vmatpush1.msra.mxu0 %v415
      %559 = vmatprep.subr.mxu0 0.0
      %560 = vmatpush1.msra.mxu0 %v414
      %561 = vmatprep.subr.mxu0 0.0
      %562 = vmatpush1.msra.mxu0 %v413
      %563 = vmatprep.subr.mxu0 0.0
      %564 = vmatpush2.msra.mxu0 0.0
      %565 = vmatprep.subr.mxu0 0.0
      %566 = vmatpush2.msra.mxu0 0.0
      %567 = vmatprep.subr.mxu0 0.0
      %568 = vmatpush2.msra.mxu0 0.0
      %569 = vmatprep.subr.mxu0 0.0
      %570 = vmatpush2.msra.mxu0 0.0
      %571 = vmatprep.subr.mxu0 0.0
      %572 = vmatpush2.msra.mxu0 0.0
      %573 = vmatprep.subr.mxu0 0.0
      %574 = vmatpush2.msra.mxu0 0.0
      %575 = vmatprep.subr.mxu0 0.0
      %576 = vmatpush2.msra.mxu0 0.0
      %577 = vmatprep.subr.mxu0 0.0
      %578 = vmatpush2.msra.mxu0 0.0
      %579 = vmatprep.subr.mxu0 0.0
      %580 = vmatpush2.msra.mxu0 0.0
      %581 = vmatprep.subr.mxu0 0.0
      %582 = vmatpush2.msra.mxu0 0.0
      %583 = vmatprep.subr.mxu0 0.0
      %584 = vmatpush2.msra.mxu0 0.0
      %585 = vmatprep.subr.mxu0 0.0
      %586 = vmatpush2.msra.mxu0 0.0
      %587 = vmatprep.subr.mxu0 0.0
      %588 = vmatpush2.msra.mxu0 0.0
      %589 = vmatprep.subr.mxu0 0.0
      %590 = vmatpush2.msra.mxu0 0.0
      %591 = vmatprep.subr.mxu0 0.0
      %592 = vmatpush2.msra.mxu0 0.0
      %593 = vmatprep.subr.mxu0 0.0
      %594 = vmatpush2.msra.mxu0 0.0
      %595 = vmatprep.mubr.f32.mxu0 0.0
      %596 = vmatmul.mubr.f32.gmra.mxu0 %v520
      %v597 = vpop.f32.mrf.mxu0
      %v598 = vadd.f32 %v506, %v597
      %v599 = vpop.f32.mrf.mxu0
      %600 = vmatprep.mubr.f32.mxu0 0.0
      %601 = vmatmul.mubr.f32.gmra.mxu0 %v523
      %v602 = vpop.f32.mrf.mxu0
      %v603 = vadd.f32 %v511, %v602
      %v604 = vpop.f32.mrf.mxu0
      %605 = vmatprep.mubr.f32.mxu0 0.0
      %606 = vmatmul.mubr.f32.gmra.mxu0 %v526
      %v607 = vpop.f32.mrf.mxu0
      %v608 = vadd.f32 %v516, %v607
      %v609 = vpop.f32.mrf.mxu0
      %610 = vdwg.mxu0
      %v611 = vld [vmem:[%s406 + $0x2] sm:$0xff]
      %v612 = vld [vmem:[%s406 + $0xa] sm:$0xff]
      %v613 = vld [vmem:[%s406 + $0x12] sm:$0xff]
      %s614 = scalar_lea.vmem %s1, 64
      %v615 = vld [vmem:[%s614] sm:$0xff]
      %v616 = vld [vmem:[%s614 + $0x8] sm:$0xff]
      %v617 = vld [vmem:[%s614 + $0x10] sm:$0xff]
      %v618 = vld [vmem:[%s614 + $0x18] sm:$0xf]
      %v620 = vsel %vm425, %v611, 0
      %v623 = vsel %vm425, %v612, 0
      %v626 = vsel %vm425, %v613, 0
      %v629 = vsel %vm435, %v618, 0
      %631 = vmatprep.subr.mxu0 0.0
      %632 = vmatpush1.msra.mxu0 0.0
      %633 = vmatprep.subr.mxu0 0.0
      %634 = vmatpush1.msra.mxu0 0.0
      %635 = vmatprep.subr.mxu0 0.0
      %636 = vmatpush1.msra.mxu0 0.0
      %637 = vmatprep.subr.mxu0 0.0
      %638 = vmatpush1.msra.mxu0 0.0
      %639 = vmatprep.subr.mxu0 0.0
      %640 = vmatpush1.msra.mxu0 0.0
      %641 = vmatprep.subr.mxu0 0.0
      %642 = vmatpush1.msra.mxu0 0.0
      %643 = vmatprep.subr.mxu0 0.0
      %644 = vmatpush1.msra.mxu0 0.0
      %645 = vmatprep.subr.mxu0 0.0
      %646 = vmatpush1.msra.mxu0 0.0
      %647 = vmatprep.subr.mxu0 0.0
      %648 = vmatpush1.msra.mxu0 0.0
      %649 = vmatprep.subr.mxu0 0.0
      %650 = vmatpush1.msra.mxu0 0.0
      %651 = vmatprep.subr.mxu0 0.0
      %652 = vmatpush1.msra.mxu0 0.0
      %653 = vmatprep.subr.mxu0 0.0
      %654 = vmatpush1.msra.mxu0 0.0
      %655 = vmatprep.subr.mxu0 0.0
      %656 = vmatpush1.msra.mxu0 %v629
      %657 = vmatprep.subr.mxu0 0.0
      %658 = vmatpush1.msra.mxu0 %v617
      %659 = vmatprep.subr.mxu0 0.0
      %660 = vmatpush1.msra.mxu0 %v616
      %661 = vmatprep.subr.mxu0 0.0
      %662 = vmatpush1.msra.mxu0 %v615
      %663 = vmatprep.subr.mxu0 0.0
      %664 = vmatpush2.msra.mxu0 0.0
      %665 = vmatprep.subr.mxu0 0.0
      %666 = vmatpush2.msra.mxu0 0.0
      %667 = vmatprep.subr.mxu0 0.0
      %668 = vmatpush2.msra.mxu0 0.0
      %669 = vmatprep.subr.mxu0 0.0
      %670 = vmatpush2.msra.mxu0 0.0
      %671 = vmatprep.subr.mxu0 0.0
      %672 = vmatpush2.msra.mxu0 0.0
      %673 = vmatprep.subr.mxu0 0.0
      %674 = vmatpush2.msra.mxu0 0.0
      %675 = vmatprep.subr.mxu0 0.0
      %676 = vmatpush2.msra.mxu0 0.0
      %677 = vmatprep.subr.mxu0 0.0
      %678 = vmatpush2.msra.mxu0 0.0
      %679 = vmatprep.subr.mxu0 0.0
      %680 = vmatpush2.msra.mxu0 0.0
      %681 = vmatprep.subr.mxu0 0.0
      %682 = vmatpush2.msra.mxu0 0.0
      %683 = vmatprep.subr.mxu0 0.0
      %684 = vmatpush2.msra.mxu0 0.0
      %685 = vmatprep.subr.mxu0 0.0
      %686 = vmatpush2.msra.mxu0 0.0
      %687 = vmatprep.subr.mxu0 0.0
      %688 = vmatpush2.msra.mxu0 0.0
      %689 = vmatprep.subr.mxu0 0.0
      %690 = vmatpush2.msra.mxu0 0.0
      %691 = vmatprep.subr.mxu0 0.0
      %692 = vmatpush2.msra.mxu0 0.0
      %693 = vmatprep.subr.mxu0 0.0
      %694 = vmatpush2.msra.mxu0 0.0
      %695 = vmatprep.mubr.f32.mxu0 0.0
      %696 = vmatmul.mubr.f32.gmra.mxu0 %v620
      %v697 = vpop.f32.mrf.mxu0
      %v698 = vadd.f32 0.0, %v697
      %v699 = vpop.f32.mrf.mxu0
      %700 = vmatprep.mubr.f32.mxu0 0.0
      %701 = vmatmul.mubr.f32.gmra.mxu0 %v623
      %v702 = vpop.f32.mrf.mxu0
      %v703 = vadd.f32 0.0, %v702
      %v704 = vpop.f32.mrf.mxu0
      %705 = vmatprep.mubr.f32.mxu0 0.0
      %706 = vmatmul.mubr.f32.gmra.mxu0 %v626
      %v707 = vpop.f32.mrf.mxu0
      %v708 = vadd.f32 0.0, %v707
      %v709 = vpop.f32.mrf.mxu0
      %710 = vdwg.mxu0
      %v711 = vadd.f32 %v598, %v698
      %v712 = vadd.f32 %v603, %v703
      %v713 = vadd.f32 %v608, %v708
      %v714 = vld [vmem:[%s406 + $0x3] sm:$0xff]
      %v715 = vld [vmem:[%s406 + $0xb] sm:$0xff]
      %v716 = vld [vmem:[%s406 + $0x13] sm:$0xff]
      %s717 = scalar_lea.vmem %s1, 96
      %v718 = vld [vmem:[%s717] sm:$0xff]
      %v719 = vld [vmem:[%s717 + $0x8] sm:$0xff]
      %v720 = vld [vmem:[%s717 + $0x10] sm:$0xff]
      %v721 = vld [vmem:[%s717 + $0x18] sm:$0xf]
      %v723 = vsel %vm425, %v714, 0
      %v726 = vsel %vm425, %v715, 0
      %v729 = vsel %vm425, %v716, 0
      %v732 = vsel %vm435, %v721, 0
      %734 = vmatprep.subr.mxu0 0.0
      %735 = vmatpush1.msra.mxu0 0.0
      %736 = vmatprep.subr.mxu0 0.0
      %737 = vmatpush1.msra.mxu0 0.0
      %738 = vmatprep.subr.mxu0 0.0
      %739 = vmatpush1.msra.mxu0 0.0
      %740 = vmatprep.subr.mxu0 0.0
      %741 = vmatpush1.msra.mxu0 0.0
      %742 = vmatprep.subr.mxu0 0.0
      %743 = vmatpush1.msra.mxu0 0.0
      %744 = vmatprep.subr.mxu0 0.0
      %745 = vmatpush1.msra.mxu0 0.0
      %746 = vmatprep.subr.mxu0 0.0
      %747 = vmatpush1.msra.mxu0 0.0
      %748 = vmatprep.subr.mxu0 0.0
      %749 = vmatpush1.msra.mxu0 0.0
      %750 = vmatprep.subr.mxu0 0.0
      %751 = vmatpush1.msra.mxu0 0.0
      %752 = vmatprep.subr.mxu0 0.0
      %753 = vmatpush1.msra.mxu0 0.0
      %754 = vmatprep.subr.mxu0 0.0
      %755 = vmatpush1.msra.mxu0 0.0
      %756 = vmatprep.subr.mxu0 0.0
      %757 = vmatpush1.msra.mxu0 0.0
      %758 = vmatprep.subr.mxu0 0.0
      %759 = vmatpush1.msra.mxu0 %v732
      %760 = vmatprep.subr.mxu0 0.0
      %761 = vmatpush1.msra.mxu0 %v720
      %762 = vmatprep.subr.mxu0 0.0
      %763 = vmatpush1.msra.mxu0 %v719
      %764 = vmatprep.subr.mxu0 0.0
      %765 = vmatpush1.msra.mxu0 %v718
      %766 = vmatprep.subr.mxu0 0.0
      %767 = vmatpush2.msra.mxu0 0.0
      %768 = vmatprep.subr.mxu0 0.0
      %769 = vmatpush2.msra.mxu0 0.0
      %770 = vmatprep.subr.mxu0 0.0
      %771 = vmatpush2.msra.mxu0 0.0
      %772 = vmatprep.subr.mxu0 0.0
      %773 = vmatpush2.msra.mxu0 0.0
      %774 = vmatprep.subr.mxu0 0.0
      %775 = vmatpush2.msra.mxu0 0.0
      %776 = vmatprep.subr.mxu0 0.0
      %777 = vmatpush2.msra.mxu0 0.0
      %778 = vmatprep.subr.mxu0 0.0
      %779 = vmatpush2.msra.mxu0 0.0
      %780 = vmatprep.subr.mxu0 0.0
      %781 = vmatpush2.msra.mxu0 0.0
      %782 = vmatprep.subr.mxu0 0.0
      %783 = vmatpush2.msra.mxu0 0.0
      %784 = vmatprep.subr.mxu0 0.0
      %785 = vmatpush2.msra.mxu0 0.0
      %786 = vmatprep.subr.mxu0 0.0
      %787 = vmatpush2.msra.mxu0 0.0
      %788 = vmatprep.subr.mxu0 0.0
      %789 = vmatpush2.msra.mxu0 0.0
      %790 = vmatprep.subr.mxu0 0.0
      %791 = vmatpush2.msra.mxu0 0.0
      %792 = vmatprep.subr.mxu0 0.0
      %793 = vmatpush2.msra.mxu0 0.0
      %794 = vmatprep.subr.mxu0 0.0
      %795 = vmatpush2.msra.mxu0 0.0
      %796 = vmatprep.subr.mxu0 0.0
      %797 = vmatpush2.msra.mxu0 0.0
      %798 = vmatprep.mubr.f32.mxu0 0.0
      %799 = vmatmul.mubr.f32.gmra.mxu0 %v723
      %v800 = vpop.f32.mrf.mxu0
      %v801 = vadd.f32 0.0, %v800
      %v802 = vpop.f32.mrf.mxu0
      %803 = vmatprep.mubr.f32.mxu0 0.0
      %804 = vmatmul.mubr.f32.gmra.mxu0 %v726
      %v805 = vpop.f32.mrf.mxu0
      %v806 = vadd.f32 0.0, %v805
      %v807 = vpop.f32.mrf.mxu0
      %808 = vmatprep.mubr.f32.mxu0 0.0
      %809 = vmatmul.mubr.f32.gmra.mxu0 %v729
      %v810 = vpop.f32.mrf.mxu0
      %v811 = vadd.f32 0.0, %v810
      %v812 = vpop.f32.mrf.mxu0
      %813 = vdwg.mxu0
      %v814 = vadd.f32 %v711, %v801
      %v815 = vadd.f32 %v712, %v806
      %v816 = vadd.f32 %v713, %v811
      %v817 = vld [vmem:[%s406 + $0x4] sm:$0xff]
      %v818 = vld [vmem:[%s406 + $0xc] sm:$0xff]
      %v819 = vld [vmem:[%s406 + $0x14] sm:$0xff]
      %s820 = scalar_lea.vmem %s1, 128
      %v821 = vld [vmem:[%s820] sm:$0xff]
      %v822 = vld [vmem:[%s820 + $0x8] sm:$0xff]
      %v823 = vld [vmem:[%s820 + $0x10] sm:$0xff]
      %v824 = vld [vmem:[%s820 + $0x18] sm:$0xf]
      %v826 = vsel %vm425, %v817, 0
      %v829 = vsel %vm425, %v818, 0
      %v832 = vsel %vm425, %v819, 0
      %v835 = vsel %vm435, %v824, 0
      %837 = vmatprep.subr.mxu0 0.0
      %838 = vmatpush1.msra.mxu0 0.0
      %839 = vmatprep.subr.mxu0 0.0
      %840 = vmatpush1.msra.mxu0 0.0
      %841 = vmatprep.subr.mxu0 0.0
      %842 = vmatpush1.msra.mxu0 0.0
      %843 = vmatprep.subr.mxu0 0.0
      %844 = vmatpush1.msra.mxu0 0.0
      %845 = vmatprep.subr.mxu0 0.0
      %846 = vmatpush1.msra.mxu0 0.0
      %847 = vmatprep.subr.mxu0 0.0
      %848 = vmatpush1.msra.mxu0 0.0
      %849 = vmatprep.subr.mxu0 0.0
      %850 = vmatpush1.msra.mxu0 0.0
      %851 = vmatprep.subr.mxu0 0.0
      %852 = vmatpush1.msra.mxu0 0.0
      %853 = vmatprep.subr.mxu0 0.0
      %854 = vmatpush1.msra.mxu0 0.0
      %855 = vmatprep.subr.mxu0 0.0
      %856 = vmatpush1.msra.mxu0 0.0
      %857 = vmatprep.subr.mxu0 0.0
      %858 = vmatpush1.msra.mxu0 0.0
      %859 = vmatprep.subr.mxu0 0.0
      %860 = vmatpush1.msra.mxu0 0.0
      %861 = vmatprep.subr.mxu0 0.0
      %862 = vmatpush1.msra.mxu0 %v835
      %863 = vmatprep.subr.mxu0 0.0
      %864 = vmatpush1.msra.mxu0 %v823
      %865 = vmatprep.subr.mxu0 0.0
      %866 = vmatpush1.msra.mxu0 %v822
      %867 = vmatprep.subr.mxu0 0.0
      %868 = vmatpush1.msra.mxu0 %v821
      %869 = vmatprep.subr.mxu0 0.0
      %870 = vmatpush2.msra.mxu0 0.0
      %871 = vmatprep.subr.mxu0 0.0
      %872 = vmatpush2.msra.mxu0 0.0
      %873 = vmatprep.subr.mxu0 0.0
      %874 = vmatpush2.msra.mxu0 0.0
      %875 = vmatprep.subr.mxu0 0.0
      %876 = vmatpush2.msra.mxu0 0.0
      %877 = vmatprep.subr.mxu0 0.0
      %878 = vmatpush2.msra.mxu0 0.0
      %879 = vmatprep.subr.mxu0 0.0
      %880 = vmatpush2.msra.mxu0 0.0
      %881 = vmatprep.subr.mxu0 0.0
      %882 = vmatpush2.msra.mxu0 0.0
      %883 = vmatprep.subr.mxu0 0.0
      %884 = vmatpush2.msra.mxu0 0.0
      %885 = vmatprep.subr.mxu0 0.0
      %886 = vmatpush2.msra.mxu0 0.0
      %887 = vmatprep.subr.mxu0 0.0
      %888 = vmatpush2.msra.mxu0 0.0
      %889 = vmatprep.subr.mxu0 0.0
      %890 = vmatpush2.msra.mxu0 0.0
      %891 = vmatprep.subr.mxu0 0.0
      %892 = vmatpush2.msra.mxu0 0.0
      %893 = vmatprep.subr.mxu0 0.0
      %894 = vmatpush2.msra.mxu0 0.0
      %895 = vmatprep.subr.mxu0 0.0
      %896 = vmatpush2.msra.mxu0 0.0
      %897 = vmatprep.subr.mxu0 0.0
      %898 = vmatpush2.msra.mxu0 0.0
      %899 = vmatprep.subr.mxu0 0.0
      %900 = vmatpush2.msra.mxu0 0.0
      %901 = vmatprep.mubr.f32.mxu0 0.0
      %902 = vmatmul.mubr.f32.gmra.mxu0 %v826
      %v903 = vpop.f32.mrf.mxu0
      %v904 = vadd.f32 0.0, %v903
      %v905 = vpop.f32.mrf.mxu0
      %906 = vmatprep.mubr.f32.mxu0 0.0
      %907 = vmatmul.mubr.f32.gmra.mxu0 %v829
      %v908 = vpop.f32.mrf.mxu0
      %v909 = vadd.f32 0.0, %v908
      %v910 = vpop.f32.mrf.mxu0
      %911 = vmatprep.mubr.f32.mxu0 0.0
      %912 = vmatmul.mubr.f32.gmra.mxu0 %v832
      %v913 = vpop.f32.mrf.mxu0
      %v914 = vadd.f32 0.0, %v913
      %v915 = vpop.f32.mrf.mxu0
      %916 = vdwg.mxu0
      %v917 = vadd.f32 %v814, %v904
      %v918 = vadd.f32 %v815, %v909
      %v919 = vadd.f32 %v816, %v914
      %v920 = vld [vmem:[%s2] sm:$0x1]
      %v922 = vlaneseq
      %v923 = vshrl.u32 %v922, 7
      %v924 = vsub.s32 0, %v923
      %v925 = vrot.slane %v920, %v924
      %v927 = vadd.f32 %v917, %v925
      %v928 = vadd.f32 %v918, %v925
      %v929 = vadd.f32 %v919, %v925
      %v930 = vmax.f32 %v927, 0.0
      %v931 = vmax.f32 %v928, 0.0
      %v932 = vmax.f32 %v929, 0.0
      %v933 = vld [vmem:[%s3] sm:$0xff]
      %v934 = vld [vmem:[%s3 + $0x8] sm:$0xff]
      %v935 = vld [vmem:[%s3 + $0x10] sm:$0xff]
      %v936 = vld [vmem:[%s3 + $0x18] sm:$0xff]
      %v937 = vld [vmem:[%s3 + $0x20] sm:$0xff]
      %v938 = vld [vmem:[%s3 + $0x28] sm:$0xff]
      %vm939 = vcmask 392192
      %v941 = vsel %vm939, %v930, 0
      %v944 = vsel %vm939, %v931, 0
      %v947 = vsel %vm939, %v932, 0
      %949 = vmatprep.subr.mxu0 0.0
      %950 = vmatpush1.msra.mxu0 0.0
      %951 = vmatprep.subr.mxu0 0.0
      %952 = vmatpush1.msra.mxu0 0.0
      %953 = vmatprep.subr.mxu0 0.0
      %954 = vmatpush1.msra.mxu0 0.0
      %955 = vmatprep.subr.mxu0 0.0
      %956 = vmatpush1.msra.mxu0 0.0
      %957 = vmatprep.subr.mxu0 0.0
      %958 = vmatpush1.msra.mxu0 0.0
      %959 = vmatprep.subr.mxu0 0.0
      %960 = vmatpush1.msra.mxu0 0.0
      %961 = vmatprep.subr.mxu0 0.0
      %962 = vmatpush1.msra.mxu0 0.0
      %963 = vmatprep.subr.mxu0 0.0
      %964 = vmatpush1.msra.mxu0 0.0
      %965 = vmatprep.subr.mxu0 0.0
      %966 = vmatpush1.msra.mxu0 0.0
      %967 = vmatprep.subr.mxu0 0.0
      %968 = vmatpush1.msra.mxu0 0.0
      %969 = vmatprep.subr.mxu0 0.0
      %970 = vmatpush1.msra.mxu0 %v938
      %971 = vmatprep.subr.mxu0 0.0
      %972 = vmatpush1.msra.mxu0 %v937
      %973 = vmatprep.subr.mxu0 0.0
      %974 = vmatpush1.msra.mxu0 %v936
      %975 = vmatprep.subr.mxu0 0.0
      %976 = vmatpush1.msra.mxu0 %v935
      %977 = vmatprep.subr.mxu0 0.0
      %978 = vmatpush1.msra.mxu0 %v934
      %979 = vmatprep.subr.mxu0 0.0
      %980 = vmatpush1.msra.mxu0 %v933
      %981 = vmatprep.subr.mxu0 0.0
      %982 = vmatpush2.msra.mxu0 0.0
      %983 = vmatprep.subr.mxu0 0.0
      %984 = vmatpush2.msra.mxu0 0.0
      %985 = vmatprep.subr.mxu0 0.0
      %986 = vmatpush2.msra.mxu0 0.0
      %987 = vmatprep.subr.mxu0 0.0
      %988 = vmatpush2.msra.mxu0 0.0
      %989 = vmatprep.subr.mxu0 0.0
      %990 = vmatpush2.msra.mxu0 0.0
      %991 = vmatprep.subr.mxu0 0.0
      %992 = vmatpush2.msra.mxu0 0.0
      %993 = vmatprep.subr.mxu0 0.0
      %994 = vmatpush2.msra.mxu0 0.0
      %995 = vmatprep.subr.mxu0 0.0
      %996 = vmatpush2.msra.mxu0 0.0
      %997 = vmatprep.subr.mxu0 0.0
      %998 = vmatpush2.msra.mxu0 0.0
      %999 = vmatprep.subr.mxu0 0.0
      %1000 = vmatpush2.msra.mxu0 0.0
      %1001 = vmatprep.subr.mxu0 0.0
      %1002 = vmatpush2.msra.mxu0 0.0
      %1003 = vmatprep.subr.mxu0 0.0
      %1004 = vmatpush2.msra.mxu0 0.0
      %1005 = vmatprep.subr.mxu0 0.0
      %1006 = vmatpush2.msra.mxu0 0.0
      %1007 = vmatprep.subr.mxu0 0.0
      %1008 = vmatpush2.msra.mxu0 0.0
      %1009 = vmatprep.subr.mxu0 0.0
      %1010 = vmatpush2.msra.mxu0 0.0
      %1011 = vmatprep.subr.mxu0 0.0
      %1012 = vmatpush2.msra.mxu0 0.0
      %1013 = vmatprep.mubr.f32.mxu0 0.0
      %1014 = vmatmul.mubr.f32.gmra.mxu0 %v941
      %v1015 = vpop.f32.mrf.mxu0
      %v1016 = vadd.f32 0.0, %v1015
      %v1017 = vpop.f32.mrf.mxu0
      %1018 = vmatprep.mubr.f32.mxu0 0.0
      %1019 = vmatmul.mubr.f32.gmra.mxu0 %v944
      %v1020 = vpop.f32.mrf.mxu0
      %v1021 = vadd.f32 0.0, %v1020
      %v1022 = vpop.f32.mrf.mxu0
      %1023 = vmatprep.mubr.f32.mxu0 0.0
      %1024 = vmatmul.mubr.f32.gmra.mxu0 %v947
      %v1025 = vpop.f32.mrf.mxu0
      %v1026 = vadd.f32 0.0, %v1025
      %v1027 = vpop.f32.mrf.mxu0
      %1028 = vdwg.mxu0
      %s1029 = scalar_lea.vmem %s3, 48
      %v1030 = vld [vmem:[%s1029] sm:$0xff]
      %v1031 = vld [vmem:[%s1029 + $0x8] sm:$0xff]
      %v1032 = vld [vmem:[%s1029 + $0x10] sm:$0xff]
      %v1033 = vld [vmem:[%s1029 + $0x18] sm:$0xff]
      %v1034 = vld [vmem:[%s1029 + $0x20] sm:$0xff]
      %v1035 = vld [vmem:[%s1029 + $0x28] sm:$0xff]
      %1036 = vmatprep.subr.mxu0 0.0
      %1037 = vmatpush1.msra.mxu0 0.0
      %1038 = vmatprep.subr.mxu0 0.0
      %1039 = vmatpush1.msra.mxu0 0.0
      %1040 = vmatprep.subr.mxu0 0.0
      %1041 = vmatpush1.msra.mxu0 0.0
      %1042 = vmatprep.subr.mxu0 0.0
      %1043 = vmatpush1.msra.mxu0 0.0
      %1044 = vmatprep.subr.mxu0 0.0
      %1045 = vmatpush1.msra.mxu0 0.0
      %1046 = vmatprep.subr.mxu0 0.0
      %1047 = vmatpush1.msra.mxu0 0.0
      %1048 = vmatprep.subr.mxu0 0.0
      %1049 = vmatpush1.msra.mxu0 0.0
      %1050 = vmatprep.subr.mxu0 0.0
      %1051 = vmatpush1.msra.mxu0 0.0
      %1052 = vmatprep.subr.mxu0 0.0
      %1053 = vmatpush1.msra.mxu0 0.0
      %1054 = vmatprep.subr.mxu0 0.0
      %1055 = vmatpush1.msra.mxu0 0.0
      %1056 = vmatprep.subr.mxu0 0.0
      %1057 = vmatpush1.msra.mxu0 %v1035
      %1058 = vmatprep.subr.mxu0 0.0
      %1059 = vmatpush1.msra.mxu0 %v1034
      %1060 = vmatprep.subr.mxu0 0.0
      %1061 = vmatpush1.msra.mxu0 %v1033
      %1062 = vmatprep.subr.mxu0 0.0
      %1063 = vmatpush1.msra.mxu0 %v1032
      %1064 = vmatprep.subr.mxu0 0.0
      %1065 = vmatpush1.msra.mxu0 %v1031
      %1066 = vmatprep.subr.mxu0 0.0
      %1067 = vmatpush1.msra.mxu0 %v1030
      %1068 = vmatprep.subr.mxu0 0.0
      %1069 = vmatpush2.msra.mxu0 0.0
      %1070 = vmatprep.subr.mxu0 0.0
      %1071 = vmatpush2.msra.mxu0 0.0
      %1072 = vmatprep.subr.mxu0 0.0
      %1073 = vmatpush2.msra.mxu0 0.0
      %1074 = vmatprep.subr.mxu0 0.0
      %1075 = vmatpush2.msra.mxu0 0.0
      %1076 = vmatprep.subr.mxu0 0.0
      %1077 = vmatpush2.msra.mxu0 0.0
      %1078 = vmatprep.subr.mxu0 0.0
      %1079 = vmatpush2.msra.mxu0 0.0
      %1080 = vmatprep.subr.mxu0 0.0
      %1081 = vmatpush2.msra.mxu0 0.0
      %1082 = vmatprep.subr.mxu0 0.0
      %1083 = vmatpush2.msra.mxu0 0.0
      %1084 = vmatprep.subr.mxu0 0.0
      %1085 = vmatpush2.msra.mxu0 0.0
      %1086 = vmatprep.subr.mxu0 0.0
      %1087 = vmatpush2.msra.mxu0 0.0
      %1088 = vmatprep.subr.mxu0 0.0
      %1089 = vmatpush2.msra.mxu0 0.0
      %1090 = vmatprep.subr.mxu0 0.0
      %1091 = vmatpush2.msra.mxu0 0.0
      %1092 = vmatprep.subr.mxu0 0.0
      %1093 = vmatpush2.msra.mxu0 0.0
      %1094 = vmatprep.subr.mxu0 0.0
      %1095 = vmatpush2.msra.mxu0 0.0
      %1096 = vmatprep.subr.mxu0 0.0
      %1097 = vmatpush2.msra.mxu0 0.0
      %1098 = vmatprep.subr.mxu0 0.0
      %1099 = vmatpush2.msra.mxu0 0.0
      %1100 = vmatprep.mubr.f32.mxu0 0.0
      %1101 = vmatmul.mubr.f32.gmra.mxu0 %v941
      %v1102 = vpop.f32.mrf.mxu0
      %v1103 = vadd.f32 0.0, %v1102
      %v1104 = vpop.f32.mrf.mxu0
      %1105 = vmatprep.mubr.f32.mxu0 0.0
      %1106 = vmatmul.mubr.f32.gmra.mxu0 %v944
      %v1107 = vpop.f32.mrf.mxu0
      %v1108 = vadd.f32 0.0, %v1107
      %v1109 = vpop.f32.mrf.mxu0
      %1110 = vmatprep.mubr.f32.mxu0 0.0
      %1111 = vmatmul.mubr.f32.gmra.mxu0 %v947
      %v1112 = vpop.f32.mrf.mxu0
      %v1113 = vadd.f32 0.0, %v1112
      %v1114 = vpop.f32.mrf.mxu0
      %1115 = vdwg.mxu0
      %v1116 = vmax.f32 %v1016, %v1103
      %v1117 = vmax.f32 %v1021, %v1108
      %v1118 = vmax.f32 %v1026, %v1113
      %v1119 = vld [vmem:[%s4] sm:$0xff]
      %v1120 = vld [vmem:[%s4 + $0x8] sm:$0xf]
      %vm1121 = vcmask 195584
      %v1123 = vsel %vm1121, %v1119, 0
      %v1126 = vsel %vm1121, %v1120, 0
      %1128 = vmatprep.subr.mxu0 0.0
      %1129 = vmatpush1.msra.mxu0 0.0
      %1130 = vmatprep.subr.mxu0 0.0
      %1131 = vmatpush1.msra.mxu0 0.0
      %1132 = vmatprep.subr.mxu0 0.0
      %1133 = vmatpush1.msra.mxu0 0.0
      %1134 = vmatprep.subr.mxu0 0.0
      %1135 = vmatpush1.msra.mxu0 0.0
      %1136 = vmatprep.subr.mxu0 0.0
      %1137 = vmatpush1.msra.mxu0 0.0
      %1138 = vmatprep.subr.mxu0 0.0
      %1139 = vmatpush1.msra.mxu0 0.0
      %1140 = vmatprep.subr.mxu0 0.0
      %1141 = vmatpush1.msra.mxu0 0.0
      %1142 = vmatprep.subr.mxu0 0.0
      %1143 = vmatpush1.msra.mxu0 0.0
      %1144 = vmatprep.subr.mxu0 0.0
      %1145 = vmatpush1.msra.mxu0 0.0
      %1146 = vmatprep.subr.mxu0 0.0
      %1147 = vmatpush1.msra.mxu0 0.0
      %1148 = vmatprep.subr.mxu0 0.0
      %1149 = vmatpush1.msra.mxu0 0.0
      %1150 = vmatprep.subr.mxu0 0.0
      %1151 = vmatpush1.msra.mxu0 0.0
      %1152 = vmatprep.subr.mxu0 0.0
      %1153 = vmatpush1.msra.mxu0 0.0
      %1154 = vmatprep.subr.mxu0 0.0
      %1155 = vmatpush1.msra.mxu0 %v1118
      %1156 = vmatprep.subr.mxu0 0.0
      %1157 = vmatpush1.msra.mxu0 %v1117
      %1158 = vmatprep.subr.mxu0 0.0
      %1159 = vmatpush1.msra.mxu0 %v1116
      %1160 = vmatprep.subr.mxu0 0.0
      %1161 = vmatpush2.msra.mxu0 0.0
      %1162 = vmatprep.subr.mxu0 0.0
      %1163 = vmatpush2.msra.mxu0 0.0
      %1164 = vmatprep.subr.mxu0 0.0
      %1165 = vmatpush2.msra.mxu0 0.0
      %1166 = vmatprep.subr.mxu0 0.0
      %1167 = vmatpush2.msra.mxu0 0.0
      %1168 = vmatprep.subr.mxu0 0.0
      %1169 = vmatpush2.msra.mxu0 0.0
      %1170 = vmatprep.subr.mxu0 0.0
      %1171 = vmatpush2.msra.mxu0 0.0
      %1172 = vmatprep.subr.mxu0 0.0
      %1173 = vmatpush2.msra.mxu0 0.0
      %1174 = vmatprep.subr.mxu0 0.0
      %1175 = vmatpush2.msra.mxu0 0.0
      %1176 = vmatprep.subr.mxu0 0.0
      %1177 = vmatpush2.msra.mxu0 0.0
      %1178 = vmatprep.subr.mxu0 0.0
      %1179 = vmatpush2.msra.mxu0 0.0
      %1180 = vmatprep.subr.mxu0 0.0
      %1181 = vmatpush2.msra.mxu0 0.0
      %1182 = vmatprep.subr.mxu0 0.0
      %1183 = vmatpush2.msra.mxu0 0.0
      %1184 = vmatprep.subr.mxu0 0.0
      %1185 = vmatpush2.msra.mxu0 0.0
      %1186 = vmatprep.subr.mxu0 0.0
      %1187 = vmatpush2.msra.mxu0 0.0
      %1188 = vmatprep.subr.mxu0 0.0
      %1189 = vmatpush2.msra.mxu0 0.0
      %1190 = vmatprep.subr.mxu0 0.0
      %1191 = vmatpush2.msra.mxu0 0.0
      %1192 = vmatprep.mubr.f32.mxu0 0.0
      %1193 = vmatmul.mubr.f32.gmra.mxu0 %v1123
      %v1194 = vpop.f32.mrf.mxu0
      %v1195 = vadd.f32 0.0, %v1194
      %v1196 = vpop.f32.mrf.mxu0
      %1197 = vmatprep.mubr.f32.mxu0 0.0
      %1198 = vmatmul.mubr.f32.gmra.mxu0 %v1126
      %v1199 = vpop.f32.mrf.mxu0
      %v1200 = vadd.f32 0.0, %v1199
      %v1201 = vpop.f32.mrf.mxu0
      %1202 = vdwg.mxu0
      %s1203 = scalar_lea.vmem %s4, 16
      %v1204 = vld [vmem:[%s1203] sm:$0xff]
      %v1205 = vld [vmem:[%s1203 + $0x8] sm:$0xf]
      %v1207 = vsel %vm1121, %v1204, 0
      %v1210 = vsel %vm1121, %v1205, 0
      %1212 = vmatprep.subr.mxu0 0.0
      %1213 = vmatpush1.msra.mxu0 0.0
      %1214 = vmatprep.subr.mxu0 0.0
      %1215 = vmatpush1.msra.mxu0 0.0
      %1216 = vmatprep.subr.mxu0 0.0
      %1217 = vmatpush1.msra.mxu0 0.0
      %1218 = vmatprep.subr.mxu0 0.0
      %1219 = vmatpush1.msra.mxu0 0.0
      %1220 = vmatprep.subr.mxu0 0.0
      %1221 = vmatpush1.msra.mxu0 0.0
      %1222 = vmatprep.subr.mxu0 0.0
      %1223 = vmatpush1.msra.mxu0 0.0
      %1224 = vmatprep.subr.mxu0 0.0
      %1225 = vmatpush1.msra.mxu0 0.0
      %1226 = vmatprep.subr.mxu0 0.0
      %1227 = vmatpush1.msra.mxu0 0.0
      %1228 = vmatprep.subr.mxu0 0.0
      %1229 = vmatpush1.msra.mxu0 0.0
      %1230 = vmatprep.subr.mxu0 0.0
      %1231 = vmatpush1.msra.mxu0 0.0
      %1232 = vmatprep.subr.mxu0 0.0
      %1233 = vmatpush1.msra.mxu0 0.0
      %1234 = vmatprep.subr.mxu0 0.0
      %1235 = vmatpush1.msra.mxu0 0.0
      %1236 = vmatprep.subr.mxu0 0.0
      %1237 = vmatpush1.msra.mxu0 0.0
      %1238 = vmatprep.subr.mxu0 0.0
      %1239 = vmatpush1.msra.mxu0 %v1118
      %1240 = vmatprep.subr.mxu0 0.0
      %1241 = vmatpush1.msra.mxu0 %v1117
      %1242 = vmatprep.subr.mxu0 0.0
      %1243 = vmatpush1.msra.mxu0 %v1116
      %1244 = vmatprep.subr.mxu0 0.0
      %1245 = vmatpush2.msra.mxu0 0.0
      %1246 = vmatprep.subr.mxu0 0.0
      %1247 = vmatpush2.msra.mxu0 0.0
      %1248 = vmatprep.subr.mxu0 0.0
      %1249 = vmatpush2.msra.mxu0 0.0
      %1250 = vmatprep.subr.mxu0 0.0
      %1251 = vmatpush2.msra.mxu0 0.0
      %1252 = vmatprep.subr.mxu0 0.0
      %1253 = vmatpush2.msra.mxu0 0.0
      %1254 = vmatprep.subr.mxu0 0.0
      %1255 = vmatpush2.msra.mxu0 0.0
      %1256 = vmatprep.subr.mxu0 0.0
      %1257 = vmatpush2.msra.mxu0 0.0
      %1258 = vmatprep.subr.mxu0 0.0
      %1259 = vmatpush2.msra.mxu0 0.0
      %1260 = vmatprep.subr.mxu0 0.0
      %1261 = vmatpush2.msra.mxu0 0.0
      %1262 = vmatprep.subr.mxu0 0.0
      %1263 = vmatpush2.msra.mxu0 0.0
      %1264 = vmatprep.subr.mxu0 0.0
      %1265 = vmatpush2.msra.mxu0 0.0
      %1266 = vmatprep.subr.mxu0 0.0
      %1267 = vmatpush2.msra.mxu0 0.0
      %1268 = vmatprep.subr.mxu0 0.0
      %1269 = vmatpush2.msra.mxu0 0.0
      %1270 = vmatprep.subr.mxu0 0.0
      %1271 = vmatpush2.msra.mxu0 0.0
      %1272 = vmatprep.subr.mxu0 0.0
      %1273 = vmatpush2.msra.mxu0 0.0
      %1274 = vmatprep.subr.mxu0 0.0
      %1275 = vmatpush2.msra.mxu0 0.0
      %1276 = vmatprep.mubr.f32.mxu0 0.0
      %1277 = vmatmul.mubr.f32.gmra.mxu0 %v1207
      %v1278 = vpop.f32.mrf.mxu0
      %v1279 = vadd.f32 0.0, %v1278
      %v1280 = vpop.f32.mrf.mxu0
      %1281 = vmatprep.mubr.f32.mxu0 0.0
      %1282 = vmatmul.mubr.f32.gmra.mxu0 %v1210
      %v1283 = vpop.f32.mrf.mxu0
      %v1284 = vadd.f32 0.0, %v1283
      %v1285 = vpop.f32.mrf.mxu0
      %1286 = vdwg.mxu0
      %v1287 = vmax.f32 %v1195, %v1279
      %v1288 = vmax.f32 %v1200, %v1284
      %1289 = vst.msk [vmem:[#allocation2] sm:$0xff] %vm1121, %v1287
      %vm1290 = vcmask 191488
      %1291 = vst.msk [vmem:[#allocation2 + $0x8] sm:$0xf] %vm1290, %v1288
      %v1292 = vld [vmem:[#allocation2] sm:$0xff]
      %v1293 = vld [vmem:[%s5] sm:$0xff]
      %v1294 = vld [vmem:[%s5 + $0x8] sm:$0xff]
      %v1295 = vld [vmem:[%s5 + $0x10] sm:$0xff]
      %v1296 = vld [vmem:[#allocation2 + $0x1] sm:$0xff]
      %s1297 = scalar_lea.vmem %s5, 24
      %v1298 = vld [vmem:[%s1297] sm:$0xff]
      %v1299 = vld [vmem:[%s1297 + $0x8] sm:$0xff]
      %v1300 = vld [vmem:[%s1297 + $0x10] sm:$0xff]
      %v1302 = vsel %vm1121, %v1296, 0
      %1304 = vmatprep.subr.mxu0 0.0
      %1305 = vmatpush1.msra.mxu0 0.0
      %1306 = vmatprep.subr.mxu0 0.0
      %1307 = vmatpush1.msra.mxu0 0.0
      %1308 = vmatprep.subr.mxu0 0.0
      %1309 = vmatpush1.msra.mxu0 0.0
      %1310 = vmatprep.subr.mxu0 0.0
      %1311 = vmatpush1.msra.mxu0 0.0
      %1312 = vmatprep.subr.mxu0 0.0
      %1313 = vmatpush1.msra.mxu0 0.0
      %1314 = vmatprep.subr.mxu0 0.0
      %1315 = vmatpush1.msra.mxu0 0.0
      %1316 = vmatprep.subr.mxu0 0.0
      %1317 = vmatpush1.msra.mxu0 0.0
      %1318 = vmatprep.subr.mxu0 0.0
      %1319 = vmatpush1.msra.mxu0 0.0
      %1320 = vmatprep.subr.mxu0 0.0
      %1321 = vmatpush1.msra.mxu0 0.0
      %1322 = vmatprep.subr.mxu0 0.0
      %1323 = vmatpush1.msra.mxu0 0.0
      %1324 = vmatprep.subr.mxu0 0.0
      %1325 = vmatpush1.msra.mxu0 0.0
      %1326 = vmatprep.subr.mxu0 0.0
      %1327 = vmatpush1.msra.mxu0 0.0
      %1328 = vmatprep.subr.mxu0 0.0
      %1329 = vmatpush1.msra.mxu0 0.0
      %1330 = vmatprep.subr.mxu0 0.0
      %1331 = vmatpush1.msra.mxu0 %v1300
      %1332 = vmatprep.subr.mxu0 0.0
      %1333 = vmatpush1.msra.mxu0 %v1299
      %1334 = vmatprep.subr.mxu0 0.0
      %1335 = vmatpush1.msra.mxu0 %v1298
      %1336 = vmatprep.subr.mxu0 0.0
      %1337 = vmatpush2.msra.mxu0 0.0
      %1338 = vmatprep.subr.mxu0 0.0
      %1339 = vmatpush2.msra.mxu0 0.0
      %1340 = vmatprep.subr.mxu0 0.0
      %1341 = vmatpush2.msra.mxu0 0.0
      %1342 = vmatprep.subr.mxu0 0.0
      %1343 = vmatpush2.msra.mxu0 0.0
      %1344 = vmatprep.subr.mxu0 0.0
      %1345 = vmatpush2.msra.mxu0 0.0
      %1346 = vmatprep.subr.mxu0 0.0
      %1347 = vmatpush2.msra.mxu0 0.0
      %1348 = vmatprep.subr.mxu0 0.0
      %1349 = vmatpush2.msra.mxu0 0.0
      %1350 = vmatprep.subr.mxu0 0.0
      %1351 = vmatpush2.msra.mxu0 0.0
      %1352 = vmatprep.subr.mxu0 0.0
      %1353 = vmatpush2.msra.mxu0 0.0
      %1354 = vmatprep.subr.mxu0 0.0
      %1355 = vmatpush2.msra.mxu0 0.0
      %1356 = vmatprep.subr.mxu0 0.0
      %1357 = vmatpush2.msra.mxu0 0.0
      %1358 = vmatprep.subr.mxu0 0.0
      %1359 = vmatpush2.msra.mxu0 0.0
      %1360 = vmatprep.subr.mxu0 0.0
      %1361 = vmatpush2.msra.mxu0 0.0
      %1362 = vmatprep.subr.mxu0 0.0
      %1363 = vmatpush2.msra.mxu0 0.0
      %1364 = vmatprep.subr.mxu0 0.0
      %1365 = vmatpush2.msra.mxu0 0.0
      %1366 = vmatprep.subr.mxu0 0.0
      %1367 = vmatpush2.msra.mxu0 0.0
      %1368 = vmatprep.mubr.f32.mxu0 0.0
      %1369 = vmatmul.mubr.f32.gmra.mxu0 %v1302
      %v1370 = vpop.f32.mrf.mxu0
      %v1371 = vadd.f32 0.0, %v1370
      %v1372 = vpop.f32.mrf.mxu0
      %1373 = vdwg.mxu0
      %v1375 = vsel %vm1121, %v1292, 0
      %1377 = vmatprep.subr.mxu0 0.0
      %1378 = vmatpush1.msra.mxu0 0.0
      %1379 = vmatprep.subr.mxu0 0.0
      %1380 = vmatpush1.msra.mxu0 0.0
      %1381 = vmatprep.subr.mxu0 0.0
      %1382 = vmatpush1.msra.mxu0 0.0
      %1383 = vmatprep.subr.mxu0 0.0
      %1384 = vmatpush1.msra.mxu0 0.0
      %1385 = vmatprep.subr.mxu0 0.0
      %1386 = vmatpush1.msra.mxu0 0.0
      %1387 = vmatprep.subr.mxu0 0.0
      %1388 = vmatpush1.msra.mxu0 0.0
      %1389 = vmatprep.subr.mxu0 0.0
      %1390 = vmatpush1.msra.mxu0 0.0
      %1391 = vmatprep.subr.mxu0 0.0
      %1392 = vmatpush1.msra.mxu0 0.0
      %1393 = vmatprep.subr.mxu0 0.0
      %1394 = vmatpush1.msra.mxu0 0.0
      %1395 = vmatprep.subr.mxu0 0.0
      %1396 = vmatpush1.msra.mxu0 0.0
      %1397 = vmatprep.subr.mxu0 0.0
      %1398 = vmatpush1.msra.mxu0 0.0
      %1399 = vmatprep.subr.mxu0 0.0
      %1400 = vmatpush1.msra.mxu0 0.0
      %1401 = vmatprep.subr.mxu0 0.0
      %1402 = vmatpush1.msra.mxu0 0.0
      %1403 = vmatprep.subr.mxu0 0.0
      %1404 = vmatpush1.msra.mxu0 %v1295
      %1405 = vmatprep.subr.mxu0 0.0
      %1406 = vmatpush1.msra.mxu0 %v1294
      %1407 = vmatprep.subr.mxu0 0.0
      %1408 = vmatpush1.msra.mxu0 %v1293
      %1409 = vmatprep.subr.mxu0 0.0
      %1410 = vmatpush2.msra.mxu0 0.0
      %1411 = vmatprep.subr.mxu0 0.0
      %1412 = vmatpush2.msra.mxu0 0.0
      %1413 = vmatprep.subr.mxu0 0.0
      %1414 = vmatpush2.msra.mxu0 0.0
      %1415 = vmatprep.subr.mxu0 0.0
      %1416 = vmatpush2.msra.mxu0 0.0
      %1417 = vmatprep.subr.mxu0 0.0
      %1418 = vmatpush2.msra.mxu0 0.0
      %1419 = vmatprep.subr.mxu0 0.0
      %1420 = vmatpush2.msra.mxu0 0.0
      %1421 = vmatprep.subr.mxu0 0.0
      %1422 = vmatpush2.msra.mxu0 0.0
      %1423 = vmatprep.subr.mxu0 0.0
      %1424 = vmatpush2.msra.mxu0 0.0
      %1425 = vmatprep.subr.mxu0 0.0
      %1426 = vmatpush2.msra.mxu0 0.0
      %1427 = vmatprep.subr.mxu0 0.0
      %1428 = vmatpush2.msra.mxu0 0.0
      %1429 = vmatprep.subr.mxu0 0.0
      %1430 = vmatpush2.msra.mxu0 0.0
      %1431 = vmatprep.subr.mxu0 0.0
      %1432 = vmatpush2.msra.mxu0 0.0
      %1433 = vmatprep.subr.mxu0 0.0
      %1434 = vmatpush2.msra.mxu0 0.0
      %1435 = vmatprep.subr.mxu0 0.0
      %1436 = vmatpush2.msra.mxu0 0.0
      %1437 = vmatprep.subr.mxu0 0.0
      %1438 = vmatpush2.msra.mxu0 0.0
      %1439 = vmatprep.subr.mxu0 0.0
      %1440 = vmatpush2.msra.mxu0 0.0
      %1441 = vmatprep.mubr.f32.mxu0 0.0
      %1442 = vmatmul.mubr.f32.gmra.mxu0 %v1375
      %v1443 = vpop.f32.mrf.mxu0
      %v1444 = vadd.f32 %v1371, %v1443
      %v1445 = vpop.f32.mrf.mxu0
      %1446 = vdwg.mxu0
      %v1447 = vld [vmem:[#allocation2 + $0x2] sm:$0xff]
      %s1448 = scalar_lea.vmem %s5, 48
      %v1449 = vld [vmem:[%s1448] sm:$0xff]
      %v1450 = vld [vmem:[%s1448 + $0x8] sm:$0xff]
      %v1451 = vld [vmem:[%s1448 + $0x10] sm:$0xff]
      %v1453 = vsel %vm1121, %v1447, 0
      %1455 = vmatprep.subr.mxu0 0.0
      %1456 = vmatpush1.msra.mxu0 0.0
      %1457 = vmatprep.subr.mxu0 0.0
      %1458 = vmatpush1.msra.mxu0 0.0
      %1459 = vmatprep.subr.mxu0 0.0
      %1460 = vmatpush1.msra.mxu0 0.0
      %1461 = vmatprep.subr.mxu0 0.0
      %1462 = vmatpush1.msra.mxu0 0.0
      %1463 = vmatprep.subr.mxu0 0.0
      %1464 = vmatpush1.msra.mxu0 0.0
      %1465 = vmatprep.subr.mxu0 0.0
      %1466 = vmatpush1.msra.mxu0 0.0
      %1467 = vmatprep.subr.mxu0 0.0
      %1468 = vmatpush1.msra.mxu0 0.0
      %1469 = vmatprep.subr.mxu0 0.0
      %1470 = vmatpush1.msra.mxu0 0.0
      %1471 = vmatprep.subr.mxu0 0.0
      %1472 = vmatpush1.msra.mxu0 0.0
      %1473 = vmatprep.subr.mxu0 0.0
      %1474 = vmatpush1.msra.mxu0 0.0
      %1475 = vmatprep.subr.mxu0 0.0
      %1476 = vmatpush1.msra.mxu0 0.0
      %1477 = vmatprep.subr.mxu0 0.0
      %1478 = vmatpush1.msra.mxu0 0.0
      %1479 = vmatprep.subr.mxu0 0.0
      %1480 = vmatpush1.msra.mxu0 0.0
      %1481 = vmatprep.subr.mxu0 0.0
      %1482 = vmatpush1.msra.mxu0 %v1451
      %1483 = vmatprep.subr.mxu0 0.0
      %1484 = vmatpush1.msra.mxu0 %v1450
      %1485 = vmatprep.subr.mxu0 0.0
      %1486 = vmatpush1.msra.mxu0 %v1449
      %1487 = vmatprep.subr.mxu0 0.0
      %1488 = vmatpush2.msra.mxu0 0.0
      %1489 = vmatprep.subr.mxu0 0.0
      %1490 = vmatpush2.msra.mxu0 0.0
      %1491 = vmatprep.subr.mxu0 0.0
      %1492 = vmatpush2.msra.mxu0 0.0
      %1493 = vmatprep.subr.mxu0 0.0
      %1494 = vmatpush2.msra.mxu0 0.0
      %1495 = vmatprep.subr.mxu0 0.0
      %1496 = vmatpush2.msra.mxu0 0.0
      %1497 = vmatprep.subr.mxu0 0.0
      %1498 = vmatpush2.msra.mxu0 0.0
      %1499 = vmatprep.subr.mxu0 0.0
      %1500 = vmatpush2.msra.mxu0 0.0
      %1501 = vmatprep.subr.mxu0 0.0
      %1502 = vmatpush2.msra.mxu0 0.0
      %1503 = vmatprep.subr.mxu0 0.0
      %1504 = vmatpush2.msra.mxu0 0.0
      %1505 = vmatprep.subr.mxu0 0.0
      %1506 = vmatpush2.msra.mxu0 0.0
      %1507 = vmatprep.subr.mxu0 0.0
      %1508 = vmatpush2.msra.mxu0 0.0
      %1509 = vmatprep.subr.mxu0 0.0
      %1510 = vmatpush2.msra.mxu0 0.0
      %1511 = vmatprep.subr.mxu0 0.0
      %1512 = vmatpush2.msra.mxu0 0.0
      %1513 = vmatprep.subr.mxu0 0.0
      %1514 = vmatpush2.msra.mxu0 0.0
      %1515 = vmatprep.subr.mxu0 0.0
      %1516 = vmatpush2.msra.mxu0 0.0
      %1517 = vmatprep.subr.mxu0 0.0
      %1518 = vmatpush2.msra.mxu0 0.0
      %1519 = vmatprep.mubr.f32.mxu0 0.0
      %1520 = vmatmul.mubr.f32.gmra.mxu0 %v1453
      %v1521 = vpop.f32.mrf.mxu0
      %v1522 = vadd.f32 0.0, %v1521
      %v1523 = vpop.f32.mrf.mxu0
      %1524 = vdwg.mxu0
      %v1525 = vadd.f32 %v1444, %v1522
      %v1526 = vld [vmem:[#allocation2 + $0x3] sm:$0xff]
      %s1527 = scalar_lea.vmem %s5, 72
      %v1528 = vld [vmem:[%s1527] sm:$0xff]
      %v1529 = vld [vmem:[%s1527 + $0x8] sm:$0xff]
      %v1530 = vld [vmem:[%s1527 + $0x10] sm:$0xff]
      %v1532 = vsel %vm1121, %v1526, 0
      %1534 = vmatprep.subr.mxu0 0.0
      %1535 = vmatpush1.msra.mxu0 0.0
      %1536 = vmatprep.subr.mxu0 0.0
      %1537 = vmatpush1.msra.mxu0 0.0
      %1538 = vmatprep.subr.mxu0 0.0
      %1539 = vmatpush1.msra.mxu0 0.0
      %1540 = vmatprep.subr.mxu0 0.0
      %1541 = vmatpush1.msra.mxu0 0.0
      %1542 = vmatprep.subr.mxu0 0.0
      %1543 = vmatpush1.msra.mxu0 0.0
      %1544 = vmatprep.subr.mxu0 0.0
      %1545 = vmatpush1.msra.mxu0 0.0
      %1546 = vmatprep.subr.mxu0 0.0
      %1547 = vmatpush1.msra.mxu0 0.0
      %1548 = vmatprep.subr.mxu0 0.0
      %1549 = vmatpush1.msra.mxu0 0.0
      %1550 = vmatprep.subr.mxu0 0.0
      %1551 = vmatpush1.msra.mxu0 0.0
      %1552 = vmatprep.subr.mxu0 0.0
      %1553 = vmatpush1.msra.mxu0 0.0
      %1554 = vmatprep.subr.mxu0 0.0
      %1555 = vmatpush1.msra.mxu0 0.0
      %1556 = vmatprep.subr.mxu0 0.0
      %1557 = vmatpush1.msra.mxu0 0.0
      %1558 = vmatprep.subr.mxu0 0.0
      %1559 = vmatpush1.msra.mxu0 0.0
      %1560 = vmatprep.subr.mxu0 0.0
      %1561 = vmatpush1.msra.mxu0 %v1530
      %1562 = vmatprep.subr.mxu0 0.0
      %1563 = vmatpush1.msra.mxu0 %v1529
      %1564 = vmatprep.subr.mxu0 0.0
      %1565 = vmatpush1.msra.mxu0 %v1528
      %1566 = vmatprep.subr.mxu0 0.0
      %1567 = vmatpush2.msra.mxu0 0.0
      %1568 = vmatprep.subr.mxu0 0.0
      %1569 = vmatpush2.msra.mxu0 0.0
      %1570 = vmatprep.subr.mxu0 0.0
      %1571 = vmatpush2.msra.mxu0 0.0
      %1572 = vmatprep.subr.mxu0 0.0
      %1573 = vmatpush2.msra.mxu0 0.0
      %1574 = vmatprep.subr.mxu0 0.0
      %1575 = vmatpush2.msra.mxu0 0.0
      %1576 = vmatprep.subr.mxu0 0.0
      %1577 = vmatpush2.msra.mxu0 0.0
      %1578 = vmatprep.subr.mxu0 0.0
      %1579 = vmatpush2.msra.mxu0 0.0
      %1580 = vmatprep.subr.mxu0 0.0
      %1581 = vmatpush2.msra.mxu0 0.0
      %1582 = vmatprep.subr.mxu0 0.0
      %1583 = vmatpush2.msra.mxu0 0.0
      %1584 = vmatprep.subr.mxu0 0.0
      %1585 = vmatpush2.msra.mxu0 0.0
      %1586 = vmatprep.subr.mxu0 0.0
      %1587 = vmatpush2.msra.mxu0 0.0
      %1588 = vmatprep.subr.mxu0 0.0
      %1589 = vmatpush2.msra.mxu0 0.0
      %1590 = vmatprep.subr.mxu0 0.0
      %1591 = vmatpush2.msra.mxu0 0.0
      %1592 = vmatprep.subr.mxu0 0.0
      %1593 = vmatpush2.msra.mxu0 0.0
      %1594 = vmatprep.subr.mxu0 0.0
      %1595 = vmatpush2.msra.mxu0 0.0
      %1596 = vmatprep.subr.mxu0 0.0
      %1597 = vmatpush2.msra.mxu0 0.0
      %1598 = vmatprep.mubr.f32.mxu0 0.0
      %1599 = vmatmul.mubr.f32.gmra.mxu0 %v1532
      %v1600 = vpop.f32.mrf.mxu0
      %v1601 = vadd.f32 0.0, %v1600
      %v1602 = vpop.f32.mrf.mxu0
      %1603 = vdwg.mxu0
      %v1604 = vadd.f32 %v1525, %v1601
      %v1605 = vld [vmem:[#allocation2 + $0x4] sm:$0xff]
      %s1606 = scalar_lea.vmem %s5, 96
      %v1607 = vld [vmem:[%s1606] sm:$0xff]
      %v1608 = vld [vmem:[%s1606 + $0x8] sm:$0xff]
      %v1609 = vld [vmem:[%s1606 + $0x10] sm:$0xff]
      %v1611 = vsel %vm1121, %v1605, 0
      %1613 = vmatprep.subr.mxu0 0.0
      %1614 = vmatpush1.msra.mxu0 0.0
      %1615 = vmatprep.subr.mxu0 0.0
      %1616 = vmatpush1.msra.mxu0 0.0
      %1617 = vmatprep.subr.mxu0 0.0
      %1618 = vmatpush1.msra.mxu0 0.0
      %1619 = vmatprep.subr.mxu0 0.0
      %1620 = vmatpush1.msra.mxu0 0.0
      %1621 = vmatprep.subr.mxu0 0.0
      %1622 = vmatpush1.msra.mxu0 0.0
      %1623 = vmatprep.subr.mxu0 0.0
      %1624 = vmatpush1.msra.mxu0 0.0
      %1625 = vmatprep.subr.mxu0 0.0
      %1626 = vmatpush1.msra.mxu0 0.0
      %1627 = vmatprep.subr.mxu0 0.0
      %1628 = vmatpush1.msra.mxu0 0.0
      %1629 = vmatprep.subr.mxu0 0.0
      %1630 = vmatpush1.msra.mxu0 0.0
      %1631 = vmatprep.subr.mxu0 0.0
      %1632 = vmatpush1.msra.mxu0 0.0
      %1633 = vmatprep.subr.mxu0 0.0
      %1634 = vmatpush1.msra.mxu0 0.0
      %1635 = vmatprep.subr.mxu0 0.0
      %1636 = vmatpush1.msra.mxu0 0.0
      %1637 = vmatprep.subr.mxu0 0.0
      %1638 = vmatpush1.msra.mxu0 0.0
      %1639 = vmatprep.subr.mxu0 0.0
      %1640 = vmatpush1.msra.mxu0 %v1609
      %1641 = vmatprep.subr.mxu0 0.0
      %1642 = vmatpush1.msra.mxu0 %v1608
      %1643 = vmatprep.subr.mxu0 0.0
      %1644 = vmatpush1.msra.mxu0 %v1607
      %1645 = vmatprep.subr.mxu0 0.0
      %1646 = vmatpush2.msra.mxu0 0.0
      %1647 = vmatprep.subr.mxu0 0.0
      %1648 = vmatpush2.msra.mxu0 0.0
      %1649 = vmatprep.subr.mxu0 0.0
      %1650 = vmatpush2.msra.mxu0 0.0
      %1651 = vmatprep.subr.mxu0 0.0
      %1652 = vmatpush2.msra.mxu0 0.0
      %1653 = vmatprep.subr.mxu0 0.0
      %1654 = vmatpush2.msra.mxu0 0.0
      %1655 = vmatprep.subr.mxu0 0.0
      %1656 = vmatpush2.msra.mxu0 0.0
      %1657 = vmatprep.subr.mxu0 0.0
      %1658 = vmatpush2.msra.mxu0 0.0
      %1659 = vmatprep.subr.mxu0 0.0
      %1660 = vmatpush2.msra.mxu0 0.0
      %1661 = vmatprep.subr.mxu0 0.0
      %1662 = vmatpush2.msra.mxu0 0.0
      %1663 = vmatprep.subr.mxu0 0.0
      %1664 = vmatpush2.msra.mxu0 0.0
      %1665 = vmatprep.subr.mxu0 0.0
      %1666 = vmatpush2.msra.mxu0 0.0
      %1667 = vmatprep.subr.mxu0 0.0
      %1668 = vmatpush2.msra.mxu0 0.0
      %1669 = vmatprep.subr.mxu0 0.0
      %1670 = vmatpush2.msra.mxu0 0.0
      %1671 = vmatprep.subr.mxu0 0.0
      %1672 = vmatpush2.msra.mxu0 0.0
      %1673 = vmatprep.subr.mxu0 0.0
      %1674 = vmatpush2.msra.mxu0 0.0
      %1675 = vmatprep.subr.mxu0 0.0
      %1676 = vmatpush2.msra.mxu0 0.0
      %1677 = vmatprep.mubr.f32.mxu0 0.0
      %1678 = vmatmul.mubr.f32.gmra.mxu0 %v1611
      %v1679 = vpop.f32.mrf.mxu0
      %v1680 = vadd.f32 0.0, %v1679
      %v1681 = vpop.f32.mrf.mxu0
      %1682 = vdwg.mxu0
      %v1683 = vadd.f32 %v1604, %v1680
      %v1684 = vld [vmem:[%s6] sm:$0x1]
      %v1686 = vlaneseq
      %v1687 = vshrl.u32 %v1686, 7
      %v1688 = vsub.s32 0, %v1687
      %v1689 = vrot.slane %v1684, %v1688
      %v1691 = vadd.f32 %v1683, %v1689
      %v1692 = vmax.f32 %v1691, 0.0
      %v1693 = vld [vmem:[%s7] sm:$0xff]
      %v1694 = vld [vmem:[%s7 + $0x8] sm:$0xff]
      %v1695 = vld [vmem:[%s7 + $0x10] sm:$0xff]
      %v1696 = vld [vmem:[%s7 + $0x18] sm:$0xff]
      %v1697 = vld [vmem:[%s7 + $0x20] sm:$0xff]
      %v1698 = vld [vmem:[%s7 + $0x28] sm:$0xff]
      %v1699 = vld [vmem:[%s7 + $0x30] sm:$0xff]
      %v1700 = vld [vmem:[%s7 + $0x38] sm:$0xff]
      %v1701 = vld [vmem:[%s7 + $0x40] sm:$0xff]
      %v1702 = vld [vmem:[%s7 + $0x48] sm:$0xff]
      %v1703 = vld [vmem:[%s7 + $0x50] sm:$0xff]
      %v1704 = vld [vmem:[%s7 + $0x58] sm:$0xff]
      %v1705 = vld [vmem:[%s7 + $0x60] sm:$0xff]
      %v1706 = vld [vmem:[%s7 + $0x68] sm:$0xff]
      %v1707 = vld [vmem:[%s7 + $0x70] sm:$0xff]
      %v1708 = vld [vmem:[%s7 + $0x78] sm:$0xff]
      %1709 = vmatprep.subr.mxu0 0.0
      %1710 = vmatpush1.msra.mxu0 %v1708
      %1711 = vmatprep.subr.mxu0 0.0
      %1712 = vmatpush1.msra.mxu0 %v1707
      %1713 = vmatprep.subr.mxu0 0.0
      %1714 = vmatpush1.msra.mxu0 %v1706
      %1715 = vmatprep.subr.mxu0 0.0
      %1716 = vmatpush1.msra.mxu0 %v1705
      %1717 = vmatprep.subr.mxu0 0.0
      %1718 = vmatpush1.msra.mxu0 %v1704
      %1719 = vmatprep.subr.mxu0 0.0
      %1720 = vmatpush1.msra.mxu0 %v1703
      %1721 = vmatprep.subr.mxu0 0.0
      %1722 = vmatpush1.msra.mxu0 %v1702
      %1723 = vmatprep.subr.mxu0 0.0
      %1724 = vmatpush1.msra.mxu0 %v1701
      %1725 = vmatprep.subr.mxu0 0.0
      %1726 = vmatpush1.msra.mxu0 %v1700
      %1727 = vmatprep.subr.mxu0 0.0
      %1728 = vmatpush1.msra.mxu0 %v1699
      %1729 = vmatprep.subr.mxu0 0.0
      %1730 = vmatpush1.msra.mxu0 %v1698
      %1731 = vmatprep.subr.mxu0 0.0
      %1732 = vmatpush1.msra.mxu0 %v1697
      %1733 = vmatprep.subr.mxu0 0.0
      %1734 = vmatpush1.msra.mxu0 %v1696
      %1735 = vmatprep.subr.mxu0 0.0
      %1736 = vmatpush1.msra.mxu0 %v1695
      %1737 = vmatprep.subr.mxu0 0.0
      %1738 = vmatpush1.msra.mxu0 %v1694
      %1739 = vmatprep.subr.mxu0 0.0
      %1740 = vmatpush1.msra.mxu0 %v1693
      %1741 = vmatprep.subr.mxu0 0.0
      %1742 = vmatpush2.msra.mxu0 0.0
      %1743 = vmatprep.subr.mxu0 0.0
      %1744 = vmatpush2.msra.mxu0 0.0
      %1745 = vmatprep.subr.mxu0 0.0
      %1746 = vmatpush2.msra.mxu0 0.0
      %1747 = vmatprep.subr.mxu0 0.0
      %1748 = vmatpush2.msra.mxu0 0.0
      %1749 = vmatprep.subr.mxu0 0.0
      %1750 = vmatpush2.msra.mxu0 0.0
      %1751 = vmatprep.subr.mxu0 0.0
      %1752 = vmatpush2.msra.mxu0 0.0
      %1753 = vmatprep.subr.mxu0 0.0
      %1754 = vmatpush2.msra.mxu0 0.0
      %1755 = vmatprep.subr.mxu0 0.0
      %1756 = vmatpush2.msra.mxu0 0.0
      %1757 = vmatprep.subr.mxu0 0.0
      %1758 = vmatpush2.msra.mxu0 0.0
      %1759 = vmatprep.subr.mxu0 0.0
      %1760 = vmatpush2.msra.mxu0 0.0
      %1761 = vmatprep.subr.mxu0 0.0
      %1762 = vmatpush2.msra.mxu0 0.0
      %1763 = vmatprep.subr.mxu0 0.0
      %1764 = vmatpush2.msra.mxu0 0.0
      %1765 = vmatprep.subr.mxu0 0.0
      %1766 = vmatpush2.msra.mxu0 0.0
      %1767 = vmatprep.subr.mxu0 0.0
      %1768 = vmatpush2.msra.mxu0 0.0
      %1769 = vmatprep.subr.mxu0 0.0
      %1770 = vmatpush2.msra.mxu0 0.0
      %1771 = vmatprep.subr.mxu0 0.0
      %1772 = vmatpush2.msra.mxu0 0.0
      %1773 = vmatprep.mubr.f32.mxu0 0.0
      %1774 = vmatmul.mubr.f32.gmra.mxu0 %v1692
      %v1775 = vpop.f32.mrf.mxu0
      %v1776 = vadd.f32 0.0, %v1775
      %v1777 = vpop.f32.mrf.mxu0
      %1778 = vdwg.mxu0
      %s1779 = scalar_lea.vmem %s7, 128
      %v1780 = vld [vmem:[%s1779] sm:$0xff]
      %v1781 = vld [vmem:[%s1779 + $0x8] sm:$0xff]
      %v1782 = vld [vmem:[%s1779 + $0x10] sm:$0xff]
      %v1783 = vld [vmem:[%s1779 + $0x18] sm:$0xff]
      %v1784 = vld [vmem:[%s1779 + $0x20] sm:$0xff]
      %v1785 = vld [vmem:[%s1779 + $0x28] sm:$0xff]
      %v1786 = vld [vmem:[%s1779 + $0x30] sm:$0xff]
      %v1787 = vld [vmem:[%s1779 + $0x38] sm:$0xff]
      %v1788 = vld [vmem:[%s1779 + $0x40] sm:$0xff]
      %v1789 = vld [vmem:[%s1779 + $0x48] sm:$0xff]
      %v1790 = vld [vmem:[%s1779 + $0x50] sm:$0xff]
      %v1791 = vld [vmem:[%s1779 + $0x58] sm:$0xff]
      %v1792 = vld [vmem:[%s1779 + $0x60] sm:$0xff]
      %v1793 = vld [vmem:[%s1779 + $0x68] sm:$0xff]
      %v1794 = vld [vmem:[%s1779 + $0x70] sm:$0xff]
      %v1795 = vld [vmem:[%s1779 + $0x78] sm:$0xff]
      %1796 = vmatprep.subr.mxu0 0.0
      %1797 = vmatpush1.msra.mxu0 %v1795
      %1798 = vmatprep.subr.mxu0 0.0
      %1799 = vmatpush1.msra.mxu0 %v1794
      %1800 = vmatprep.subr.mxu0 0.0
      %1801 = vmatpush1.msra.mxu0 %v1793
      %1802 = vmatprep.subr.mxu0 0.0
      %1803 = vmatpush1.msra.mxu0 %v1792
      %1804 = vmatprep.subr.mxu0 0.0
      %1805 = vmatpush1.msra.mxu0 %v1791
      %1806 = vmatprep.subr.mxu0 0.0
      %1807 = vmatpush1.msra.mxu0 %v1790
      %1808 = vmatprep.subr.mxu0 0.0
      %1809 = vmatpush1.msra.mxu0 %v1789
      %1810 = vmatprep.subr.mxu0 0.0
      %1811 = vmatpush1.msra.mxu0 %v1788
      %1812 = vmatprep.subr.mxu0 0.0
      %1813 = vmatpush1.msra.mxu0 %v1787
      %1814 = vmatprep.subr.mxu0 0.0
      %1815 = vmatpush1.msra.mxu0 %v1786
      %1816 = vmatprep.subr.mxu0 0.0
      %1817 = vmatpush1.msra.mxu0 %v1785
      %1818 = vmatprep.subr.mxu0 0.0
      %1819 = vmatpush1.msra.mxu0 %v1784
      %1820 = vmatprep.subr.mxu0 0.0
      %1821 = vmatpush1.msra.mxu0 %v1783
      %1822 = vmatprep.subr.mxu0 0.0
      %1823 = vmatpush1.msra.mxu0 %v1782
      %1824 = vmatprep.subr.mxu0 0.0
      %1825 = vmatpush1.msra.mxu0 %v1781
      %1826 = vmatprep.subr.mxu0 0.0
      %1827 = vmatpush1.msra.mxu0 %v1780
      %1828 = vmatprep.subr.mxu0 0.0
      %1829 = vmatpush2.msra.mxu0 0.0
      %1830 = vmatprep.subr.mxu0 0.0
      %1831 = vmatpush2.msra.mxu0 0.0
      %1832 = vmatprep.subr.mxu0 0.0
      %1833 = vmatpush2.msra.mxu0 0.0
      %1834 = vmatprep.subr.mxu0 0.0
      %1835 = vmatpush2.msra.mxu0 0.0
      %1836 = vmatprep.subr.mxu0 0.0
      %1837 = vmatpush2.msra.mxu0 0.0
      %1838 = vmatprep.subr.mxu0 0.0
      %1839 = vmatpush2.msra.mxu0 0.0
      %1840 = vmatprep.subr.mxu0 0.0
      %1841 = vmatpush2.msra.mxu0 0.0
      %1842 = vmatprep.subr.mxu0 0.0
      %1843 = vmatpush2.msra.mxu0 0.0
      %1844 = vmatprep.subr.mxu0 0.0
      %1845 = vmatpush2.msra.mxu0 0.0
      %1846 = vmatprep.subr.mxu0 0.0
      %1847 = vmatpush2.msra.mxu0 0.0
      %1848 = vmatprep.subr.mxu0 0.0
      %1849 = vmatpush2.msra.mxu0 0.0
      %1850 = vmatprep.subr.mxu0 0.0
      %1851 = vmatpush2.msra.mxu0 0.0
      %1852 = vmatprep.subr.mxu0 0.0
      %1853 = vmatpush2.msra.mxu0 0.0
      %1854 = vmatprep.subr.mxu0 0.0
      %1855 = vmatpush2.msra.mxu0 0.0
      %1856 = vmatprep.subr.mxu0 0.0
      %1857 = vmatpush2.msra.mxu0 0.0
      %1858 = vmatprep.subr.mxu0 0.0
      %1859 = vmatpush2.msra.mxu0 0.0
      %1860 = vmatprep.mubr.f32.mxu0 0.0
      %1861 = vmatmul.mubr.f32.gmra.mxu0 %v1692
      %v1862 = vpop.f32.mrf.mxu0
      %v1863 = vadd.f32 0.0, %v1862
      %v1864 = vpop.f32.mrf.mxu0
      %1865 = vdwg.mxu0
      %v1866 = vmax.f32 %v1776, %v1863
      %v1867 = vld [vmem:[%s9] sm:$0x1]
      %v1869 = vrot.slane %v1866, 1
      %v1871 = vmax.f32 %v1866, %v1869
      %v1872 = vld [vmem:[%s8] sm:$0xff]
      %v1873 = vld [vmem:[%s8 + $0x8] sm:$0xff]
      %v1874 = vld [vmem:[%s8 + $0x10] sm:$0xff]
      %v1875 = vld [vmem:[%s8 + $0x18] sm:$0xff]
      %v1876 = vld [vmem:[%s8 + $0x20] sm:$0xff]
      %v1877 = vld [vmem:[%s8 + $0x28] sm:$0xff]
      %v1878 = vld [vmem:[%s8 + $0x30] sm:$0xff]
      %v1879 = vld [vmem:[%s8 + $0x38] sm:$0xff]
      %vm1880 = vcmask 523264
      %v1882 = vsel %vm1880, %v1871, 0
      %1884 = vmatprep.subr.mxu0 0.0
      %1885 = vmatpush1.msra.mxu0 0.0
      %1886 = vmatprep.subr.mxu0 0.0
      %1887 = vmatpush1.msra.mxu0 0.0
      %1888 = vmatprep.subr.mxu0 0.0
      %1889 = vmatpush1.msra.mxu0 0.0
      %1890 = vmatprep.subr.mxu0 0.0
      %1891 = vmatpush1.msra.mxu0 0.0
      %1892 = vmatprep.subr.mxu0 0.0
      %1893 = vmatpush1.msra.mxu0 0.0
      %1894 = vmatprep.subr.mxu0 0.0
      %1895 = vmatpush1.msra.mxu0 0.0
      %1896 = vmatprep.subr.mxu0 0.0
      %1897 = vmatpush1.msra.mxu0 0.0
      %1898 = vmatprep.subr.mxu0 0.0
      %1899 = vmatpush1.msra.mxu0 0.0
      %1900 = vmatprep.subr.mxu0 0.0
      %1901 = vmatpush1.msra.mxu0 %v1879
      %1902 = vmatprep.subr.mxu0 0.0
      %1903 = vmatpush1.msra.mxu0 %v1878
      %1904 = vmatprep.subr.mxu0 0.0
      %1905 = vmatpush1.msra.mxu0 %v1877
      %1906 = vmatprep.subr.mxu0 0.0
      %1907 = vmatpush1.msra.mxu0 %v1876
      %1908 = vmatprep.subr.mxu0 0.0
      %1909 = vmatpush1.msra.mxu0 %v1875
      %1910 = vmatprep.subr.mxu0 0.0
      %1911 = vmatpush1.msra.mxu0 %v1874
      %1912 = vmatprep.subr.mxu0 0.0
      %1913 = vmatpush1.msra.mxu0 %v1873
      %1914 = vmatprep.subr.mxu0 0.0
      %1915 = vmatpush1.msra.mxu0 %v1872
      %1916 = vmatprep.subr.mxu0 0.0
      %1917 = vmatpush2.msra.mxu0 0.0
      %1918 = vmatprep.subr.mxu0 0.0
      %1919 = vmatpush2.msra.mxu0 0.0
      %1920 = vmatprep.subr.mxu0 0.0
      %1921 = vmatpush2.msra.mxu0 0.0
      %1922 = vmatprep.subr.mxu0 0.0
      %1923 = vmatpush2.msra.mxu0 0.0
      %1924 = vmatprep.subr.mxu0 0.0
      %1925 = vmatpush2.msra.mxu0 0.0
      %1926 = vmatprep.subr.mxu0 0.0
      %1927 = vmatpush2.msra.mxu0 0.0
      %1928 = vmatprep.subr.mxu0 0.0
      %1929 = vmatpush2.msra.mxu0 0.0
      %1930 = vmatprep.subr.mxu0 0.0
      %1931 = vmatpush2.msra.mxu0 0.0
      %1932 = vmatprep.subr.mxu0 0.0
      %1933 = vmatpush2.msra.mxu0 0.0
      %1934 = vmatprep.subr.mxu0 0.0
      %1935 = vmatpush2.msra.mxu0 0.0
      %1936 = vmatprep.subr.mxu0 0.0
      %1937 = vmatpush2.msra.mxu0 0.0
      %1938 = vmatprep.subr.mxu0 0.0
      %1939 = vmatpush2.msra.mxu0 0.0
      %1940 = vmatprep.subr.mxu0 0.0
      %1941 = vmatpush2.msra.mxu0 0.0
      %1942 = vmatprep.subr.mxu0 0.0
      %1943 = vmatpush2.msra.mxu0 0.0
      %1944 = vmatprep.subr.mxu0 0.0
      %1945 = vmatpush2.msra.mxu0 0.0
      %1946 = vmatprep.subr.mxu0 0.0
      %1947 = vmatpush2.msra.mxu0 0.0
      %1948 = vmatprep.mubr.f32.mxu0 0.0
      %1949 = vmatmul.mubr.f32.gmra.mxu0 %v1882
      %v1950 = vpop.f32.mrf.mxu0
      %v1951 = vadd.f32 0.0, %v1950
      %v1952 = vpop.f32.mrf.mxu0
      %1953 = vdwg.mxu0
      %v1954 = vadd.f32 %v1867, %v1951
      %s1955 = scalar_lea.vmem %s8, 64
      %v1956 = vld [vmem:[%s1955] sm:$0xff]
      %v1957 = vld [vmem:[%s1955 + $0x8] sm:$0xff]
      %v1958 = vld [vmem:[%s1955 + $0x10] sm:$0xff]
      %v1959 = vld [vmem:[%s1955 + $0x18] sm:$0xff]
      %v1960 = vld [vmem:[%s1955 + $0x20] sm:$0xff]
      %v1961 = vld [vmem:[%s1955 + $0x28] sm:$0xff]
      %v1962 = vld [vmem:[%s1955 + $0x30] sm:$0xff]
      %v1963 = vld [vmem:[%s1955 + $0x38] sm:$0xff]
      %v1964 = vrot.slane %v1871, 2
      %v1965 = vsel %vm1880, %v1964, 0
      %1967 = vmatprep.subr.mxu0 0.0
      %1968 = vmatpush1.msra.mxu0 0.0
      %1969 = vmatprep.subr.mxu0 0.0
      %1970 = vmatpush1.msra.mxu0 0.0
      %1971 = vmatprep.subr.mxu0 0.0
      %1972 = vmatpush1.msra.mxu0 0.0
      %1973 = vmatprep.subr.mxu0 0.0
      %1974 = vmatpush1.msra.mxu0 0.0
      %1975 = vmatprep.subr.mxu0 0.0
      %1976 = vmatpush1.msra.mxu0 0.0
      %1977 = vmatprep.subr.mxu0 0.0
      %1978 = vmatpush1.msra.mxu0 0.0
      %1979 = vmatprep.subr.mxu0 0.0
      %1980 = vmatpush1.msra.mxu0 0.0
      %1981 = vmatprep.subr.mxu0 0.0
      %1982 = vmatpush1.msra.mxu0 0.0
      %1983 = vmatprep.subr.mxu0 0.0
      %1984 = vmatpush1.msra.mxu0 %v1963
      %1985 = vmatprep.subr.mxu0 0.0
      %1986 = vmatpush1.msra.mxu0 %v1962
      %1987 = vmatprep.subr.mxu0 0.0
      %1988 = vmatpush1.msra.mxu0 %v1961
      %1989 = vmatprep.subr.mxu0 0.0
      %1990 = vmatpush1.msra.mxu0 %v1960
      %1991 = vmatprep.subr.mxu0 0.0
      %1992 = vmatpush1.msra.mxu0 %v1959
      %1993 = vmatprep.subr.mxu0 0.0
      %1994 = vmatpush1.msra.mxu0 %v1958
      %1995 = vmatprep.subr.mxu0 0.0
      %1996 = vmatpush1.msra.mxu0 %v1957
      %1997 = vmatprep.subr.mxu0 0.0
      %1998 = vmatpush1.msra.mxu0 %v1956
      %1999 = vmatprep.subr.mxu0 0.0
      %2000 = vmatpush2.msra.mxu0 0.0
      %2001 = vmatprep.subr.mxu0 0.0
      %2002 = vmatpush2.msra.mxu0 0.0
      %2003 = vmatprep.subr.mxu0 0.0
      %2004 = vmatpush2.msra.mxu0 0.0
      %2005 = vmatprep.subr.mxu0 0.0
      %2006 = vmatpush2.msra.mxu0 0.0
      %2007 = vmatprep.subr.mxu0 0.0
      %2008 = vmatpush2.msra.mxu0 0.0
      %2009 = vmatprep.subr.mxu0 0.0
      %2010 = vmatpush2.msra.mxu0 0.0
      %2011 = vmatprep.subr.mxu0 0.0
      %2012 = vmatpush2.msra.mxu0 0.0
      %2013 = vmatprep.subr.mxu0 0.0
      %2014 = vmatpush2.msra.mxu0 0.0
      %2015 = vmatprep.subr.mxu0 0.0
      %2016 = vmatpush2.msra.mxu0 0.0
      %2017 = vmatprep.subr.mxu0 0.0
      %2018 = vmatpush2.msra.mxu0 0.0
      %2019 = vmatprep.subr.mxu0 0.0
      %2020 = vmatpush2.msra.mxu0 0.0
      %2021 = vmatprep.subr.mxu0 0.0
      %2022 = vmatpush2.msra.mxu0 0.0
      %2023 = vmatprep.subr.mxu0 0.0
      %2024 = vmatpush2.msra.mxu0 0.0
      %2025 = vmatprep.subr.mxu0 0.0
      %2026 = vmatpush2.msra.mxu0 0.0
      %2027 = vmatprep.subr.mxu0 0.0
      %2028 = vmatpush2.msra.mxu0 0.0
      %2029 = vmatprep.subr.mxu0 0.0
      %2030 = vmatpush2.msra.mxu0 0.0
      %2031 = vmatprep.mubr.f32.mxu0 0.0
      %2032 = vmatmul.mubr.f32.gmra.mxu0 %v1965
      %v2033 = vpop.f32.mrf.mxu0
      %v2034 = vadd.f32 0.0, %v2033
      %v2035 = vpop.f32.mrf.mxu0
      %2036 = vdwg.mxu0
      %v2037 = vadd.f32 %v1954, %v2034
      %s2038 = scalar_lea.vmem %s8, 128
      %v2039 = vld [vmem:[%s2038] sm:$0xff]
      %v2040 = vld [vmem:[%s2038 + $0x8] sm:$0xff]
      %v2041 = vld [vmem:[%s2038 + $0x10] sm:$0xff]
      %v2042 = vld [vmem:[%s2038 + $0x18] sm:$0xff]
      %v2043 = vld [vmem:[%s2038 + $0x20] sm:$0xff]
      %v2044 = vld [vmem:[%s2038 + $0x28] sm:$0xff]
      %v2045 = vld [vmem:[%s2038 + $0x30] sm:$0xff]
      %v2046 = vld [vmem:[%s2038 + $0x38] sm:$0xff]
      %v2047 = vrot.slane %v1871, 4
      %v2048 = vsel %vm1880, %v2047, 0
      %2050 = vmatprep.subr.mxu0 0.0
      %2051 = vmatpush1.msra.mxu0 0.0
      %2052 = vmatprep.subr.mxu0 0.0
      %2053 = vmatpush1.msra.mxu0 0.0
      %2054 = vmatprep.subr.mxu0 0.0
      %2055 = vmatpush1.msra.mxu0 0.0
      %2056 = vmatprep.subr.mxu0 0.0
      %2057 = vmatpush1.msra.mxu0 0.0
      %2058 = vmatprep.subr.mxu0 0.0
      %2059 = vmatpush1.msra.mxu0 0.0
      %2060 = vmatprep.subr.mxu0 0.0
      %2061 = vmatpush1.msra.mxu0 0.0
      %2062 = vmatprep.subr.mxu0 0.0
      %2063 = vmatpush1.msra.mxu0 0.0
      %2064 = vmatprep.subr.mxu0 0.0
      %2065 = vmatpush1.msra.mxu0 0.0
      %2066 = vmatprep.subr.mxu0 0.0
      %2067 = vmatpush1.msra.mxu0 %v2046
      %2068 = vmatprep.subr.mxu0 0.0
      %2069 = vmatpush1.msra.mxu0 %v2045
      %2070 = vmatprep.subr.mxu0 0.0
      %2071 = vmatpush1.msra.mxu0 %v2044
      %2072 = vmatprep.subr.mxu0 0.0
      %2073 = vmatpush1.msra.mxu0 %v2043
      %2074 = vmatprep.subr.mxu0 0.0
      %2075 = vmatpush1.msra.mxu0 %v2042
      %2076 = vmatprep.subr.mxu0 0.0
      %2077 = vmatpush1.msra.mxu0 %v2041
      %2078 = vmatprep.subr.mxu0 0.0
      %2079 = vmatpush1.msra.mxu0 %v2040
      %2080 = vmatprep.subr.mxu0 0.0
      %2081 = vmatpush1.msra.mxu0 %v2039
      %2082 = vmatprep.subr.mxu0 0.0
      %2083 = vmatpush2.msra.mxu0 0.0
      %2084 = vmatprep.subr.mxu0 0.0
      %2085 = vmatpush2.msra.mxu0 0.0
      %2086 = vmatprep.subr.mxu0 0.0
      %2087 = vmatpush2.msra.mxu0 0.0
      %2088 = vmatprep.subr.mxu0 0.0
      %2089 = vmatpush2.msra.mxu0 0.0
      %2090 = vmatprep.subr.mxu0 0.0
      %2091 = vmatpush2.msra.mxu0 0.0
      %2092 = vmatprep.subr.mxu0 0.0
      %2093 = vmatpush2.msra.mxu0 0.0
      %2094 = vmatprep.subr.mxu0 0.0
      %2095 = vmatpush2.msra.mxu0 0.0
      %2096 = vmatprep.subr.mxu0 0.0
      %2097 = vmatpush2.msra.mxu0 0.0
      %2098 = vmatprep.subr.mxu0 0.0
      %2099 = vmatpush2.msra.mxu0 0.0
      %2100 = vmatprep.subr.mxu0 0.0
      %2101 = vmatpush2.msra.mxu0 0.0
      %2102 = vmatprep.subr.mxu0 0.0
      %2103 = vmatpush2.msra.mxu0 0.0
      %2104 = vmatprep.subr.mxu0 0.0
      %2105 = vmatpush2.msra.mxu0 0.0
      %2106 = vmatprep.subr.mxu0 0.0
      %2107 = vmatpush2.msra.mxu0 0.0
      %2108 = vmatprep.subr.mxu0 0.0
      %2109 = vmatpush2.msra.mxu0 0.0
      %2110 = vmatprep.subr.mxu0 0.0
      %2111 = vmatpush2.msra.mxu0 0.0
      %2112 = vmatprep.subr.mxu0 0.0
      %2113 = vmatpush2.msra.mxu0 0.0
      %2114 = vmatprep.mubr.f32.mxu0 0.0
      %2115 = vmatmul.mubr.f32.gmra.mxu0 %v2048
      %v2116 = vpop.f32.mrf.mxu0
      %v2117 = vadd.f32 0.0, %v2116
      %v2118 = vpop.f32.mrf.mxu0
      %2119 = vdwg.mxu0
      %v2120 = vadd.f32 %v2037, %v2117
      %s2121 = scalar_lea.vmem %s8, 192
      %v2122 = vld [vmem:[%s2121] sm:$0xff]
      %v2123 = vld [vmem:[%s2121 + $0x8] sm:$0xff]
      %v2124 = vld [vmem:[%s2121 + $0x10] sm:$0xff]
      %v2125 = vld [vmem:[%s2121 + $0x18] sm:$0xff]
      %v2126 = vld [vmem:[%s2121 + $0x20] sm:$0xff]
      %v2127 = vld [vmem:[%s2121 + $0x28] sm:$0xff]
      %v2128 = vld [vmem:[%s2121 + $0x30] sm:$0xff]
      %v2129 = vld [vmem:[%s2121 + $0x38] sm:$0xff]
      %v2130 = vrot.slane %v1871, 6
      %v2131 = vsel %vm1880, %v2130, 0
      %2133 = vmatprep.subr.mxu0 0.0
      %2134 = vmatpush1.msra.mxu0 0.0
      %2135 = vmatprep.subr.mxu0 0.0
      %2136 = vmatpush1.msra.mxu0 0.0
      %2137 = vmatprep.subr.mxu0 0.0
      %2138 = vmatpush1.msra.mxu0 0.0
      %2139 = vmatprep.subr.mxu0 0.0
      %2140 = vmatpush1.msra.mxu0 0.0
      %2141 = vmatprep.subr.mxu0 0.0
      %2142 = vmatpush1.msra.mxu0 0.0
      %2143 = vmatprep.subr.mxu0 0.0
      %2144 = vmatpush1.msra.mxu0 0.0
      %2145 = vmatprep.subr.mxu0 0.0
      %2146 = vmatpush1.msra.mxu0 0.0
      %2147 = vmatprep.subr.mxu0 0.0
      %2148 = vmatpush1.msra.mxu0 0.0
      %2149 = vmatprep.subr.mxu0 0.0
      %2150 = vmatpush1.msra.mxu0 %v2129
      %2151 = vmatprep.subr.mxu0 0.0
      %2152 = vmatpush1.msra.mxu0 %v2128
      %2153 = vmatprep.subr.mxu0 0.0
      %2154 = vmatpush1.msra.mxu0 %v2127
      %2155 = vmatprep.subr.mxu0 0.0
      %2156 = vmatpush1.msra.mxu0 %v2126
      %2157 = vmatprep.subr.mxu0 0.0
      %2158 = vmatpush1.msra.mxu0 %v2125
      %2159 = vmatprep.subr.mxu0 0.0
      %2160 = vmatpush1.msra.mxu0 %v2124
      %2161 = vmatprep.subr.mxu0 0.0
      %2162 = vmatpush1.msra.mxu0 %v2123
      %2163 = vmatprep.subr.mxu0 0.0
      %2164 = vmatpush1.msra.mxu0 %v2122
      %2165 = vmatprep.subr.mxu0 0.0
      %2166 = vmatpush2.msra.mxu0 0.0
      %2167 = vmatprep.subr.mxu0 0.0
      %2168 = vmatpush2.msra.mxu0 0.0
      %2169 = vmatprep.subr.mxu0 0.0
      %2170 = vmatpush2.msra.mxu0 0.0
      %2171 = vmatprep.subr.mxu0 0.0
      %2172 = vmatpush2.msra.mxu0 0.0
      %2173 = vmatprep.subr.mxu0 0.0
      %2174 = vmatpush2.msra.mxu0 0.0
      %2175 = vmatprep.subr.mxu0 0.0
      %2176 = vmatpush2.msra.mxu0 0.0
      %2177 = vmatprep.subr.mxu0 0.0
      %2178 = vmatpush2.msra.mxu0 0.0
      %2179 = vmatprep.subr.mxu0 0.0
      %2180 = vmatpush2.msra.mxu0 0.0
      %2181 = vmatprep.subr.mxu0 0.0
      %2182 = vmatpush2.msra.mxu0 0.0
      %2183 = vmatprep.subr.mxu0 0.0
      %2184 = vmatpush2.msra.mxu0 0.0
      %2185 = vmatprep.subr.mxu0 0.0
      %2186 = vmatpush2.msra.mxu0 0.0
      %2187 = vmatprep.subr.mxu0 0.0
      %2188 = vmatpush2.msra.mxu0 0.0
      %2189 = vmatprep.subr.mxu0 0.0
      %2190 = vmatpush2.msra.mxu0 0.0
      %2191 = vmatprep.subr.mxu0 0.0
      %2192 = vmatpush2.msra.mxu0 0.0
      %2193 = vmatprep.subr.mxu0 0.0
      %2194 = vmatpush2.msra.mxu0 0.0
      %2195 = vmatprep.subr.mxu0 0.0
      %2196 = vmatpush2.msra.mxu0 0.0
      %2197 = vmatprep.mubr.f32.mxu0 0.0
      %2198 = vmatmul.mubr.f32.gmra.mxu0 %v2131
      %v2199 = vpop.f32.mrf.mxu0
      %v2200 = vadd.f32 0.0, %v2199
      %v2201 = vpop.f32.mrf.mxu0
      %2202 = vdwg.mxu0
      %v2203 = vadd.f32 %v2120, %v2200
      %v2204 = vmax.f32 %v2203, 0.0
      %v2205 = vld [vmem:[%s10] sm:$0xff]
      %v2206 = vld [vmem:[%s10 + $0x8] sm:$0xff]
      %v2207 = vld [vmem:[%s10 + $0x10] sm:$0xff]
      %v2208 = vld [vmem:[%s10 + $0x18] sm:$0xff]
      %v2209 = vld [vmem:[%s10 + $0x20] sm:$0xff]
      %v2210 = vld [vmem:[%s10 + $0x28] sm:$0xff]
      %v2211 = vld [vmem:[%s10 + $0x30] sm:$0xff]
      %v2212 = vld [vmem:[%s10 + $0x38] sm:$0xff]
      %v2213 = vld [vmem:[%s11] sm:$0x1]
      %v2215 = vsel %vm1880, %v2204, 0
      %2217 = vmatprep.subr.mxu0 0.0
      %2218 = vmatpush1.msra.mxu0 0.0
      %2219 = vmatprep.subr.mxu0 0.0
      %2220 = vmatpush1.msra.mxu0 0.0
      %2221 = vmatprep.subr.mxu0 0.0
      %2222 = vmatpush1.msra.mxu0 0.0
      %2223 = vmatprep.subr.mxu0 0.0
      %2224 = vmatpush1.msra.mxu0 0.0
      %2225 = vmatprep.subr.mxu0 0.0
      %2226 = vmatpush1.msra.mxu0 0.0
      %2227 = vmatprep.subr.mxu0 0.0
      %2228 = vmatpush1.msra.mxu0 0.0
      %2229 = vmatprep.subr.mxu0 0.0
      %2230 = vmatpush1.msra.mxu0 0.0
      %2231 = vmatprep.subr.mxu0 0.0
      %2232 = vmatpush1.msra.mxu0 0.0
      %2233 = vmatprep.subr.mxu0 0.0
      %2234 = vmatpush1.msra.mxu0 %v2212
      %2235 = vmatprep.subr.mxu0 0.0
      %2236 = vmatpush1.msra.mxu0 %v2211
      %2237 = vmatprep.subr.mxu0 0.0
      %2238 = vmatpush1.msra.mxu0 %v2210
      %2239 = vmatprep.subr.mxu0 0.0
      %2240 = vmatpush1.msra.mxu0 %v2209
      %2241 = vmatprep.subr.mxu0 0.0
      %2242 = vmatpush1.msra.mxu0 %v2208
      %2243 = vmatprep.subr.mxu0 0.0
      %2244 = vmatpush1.msra.mxu0 %v2207
      %2245 = vmatprep.subr.mxu0 0.0
      %2246 = vmatpush1.msra.mxu0 %v2206
      %2247 = vmatprep.subr.mxu0 0.0
      %2248 = vmatpush1.msra.mxu0 %v2205
      %2249 = vmatprep.subr.mxu0 0.0
      %2250 = vmatpush2.msra.mxu0 0.0
      %2251 = vmatprep.subr.mxu0 0.0
      %2252 = vmatpush2.msra.mxu0 0.0
      %2253 = vmatprep.subr.mxu0 0.0
      %2254 = vmatpush2.msra.mxu0 0.0
      %2255 = vmatprep.subr.mxu0 0.0
      %2256 = vmatpush2.msra.mxu0 0.0
      %2257 = vmatprep.subr.mxu0 0.0
      %2258 = vmatpush2.msra.mxu0 0.0
      %2259 = vmatprep.subr.mxu0 0.0
      %2260 = vmatpush2.msra.mxu0 0.0
      %2261 = vmatprep.subr.mxu0 0.0
      %2262 = vmatpush2.msra.mxu0 0.0
      %2263 = vmatprep.subr.mxu0 0.0
      %2264 = vmatpush2.msra.mxu0 0.0
      %2265 = vmatprep.subr.mxu0 0.0
      %2266 = vmatpush2.msra.mxu0 0.0
      %2267 = vmatprep.subr.mxu0 0.0
      %2268 = vmatpush2.msra.mxu0 0.0
      %2269 = vmatprep.subr.mxu0 0.0
      %2270 = vmatpush2.msra.mxu0 0.0
      %2271 = vmatprep.subr.mxu0 0.0
      %2272 = vmatpush2.msra.mxu0 0.0
      %2273 = vmatprep.subr.mxu0 0.0
      %2274 = vmatpush2.msra.mxu0 0.0
      %2275 = vmatprep.subr.mxu0 0.0
      %2276 = vmatpush2.msra.mxu0 0.0
      %2277 = vmatprep.subr.mxu0 0.0
      %2278 = vmatpush2.msra.mxu0 0.0
      %2279 = vmatprep.subr.mxu0 0.0
      %2280 = vmatpush2.msra.mxu0 0.0
      %2281 = vmatprep.mubr.f32.mxu0 0.0
      %2282 = vmatmul.mubr.f32.gmra.mxu0 %v2215
      %v2283 = vpop.f32.mrf.mxu0
      %v2284 = vadd.f32 %v2213, %v2283
      %v2285 = vpop.f32.mrf.mxu0
      %2286 = vdwg.mxu0
      %vm2287 = vcmask 8192
      %2288 = vst.msk [vmem:[%s409] sm:$0x1] %vm2287, %v2284
      %p2289 = scmp.lt.s32.totalorder %s23, 1
      %s2290 = scalar_select %p2289, %s23, 1
      %s2291 = scalar_lea.vmem %s12, %s2290
      // Predicated region
      $region69: #{net_forward.2} parent=67 // pred_check
        %p2292 = pneg %p298
      $region70: #{net_forward.2} parent=67 // pred_check_branch
        %2294 = sbr.rel (%p2292) target = $region72
      $region71: #{net_forward.2} parent=67 // pred_region
        _
      $region72: #{net_forward.2} parent=67 // pred_fallthru
        _
    $region68: #{net_forward.2} parent=5 // pred_fallthru
      _
    %p2295 = scmp.le.s32.totalorder 2, %s18
    // Predicated region
    $region73: #{net_forward.2} parent=5 // pred_check
      %p2296 = pneg %p2295
    $region74: #{net_forward.2} parent=5 // pred_check_branch
      %2298 = sbr.rel (%p2296) target = $region76
    $region75: #{net_forward.2} parent=5 // pred_region
      %s2299 = ssub.s32 %s18, 2
      // Predicated region
      $region77: #{net_forward.2} parent=75 // pred_check
        %p2300 = pneg %p304
      $region78: #{net_forward.2} parent=75 // pred_check_branch
        %2302 = sbr.rel (%p2300) target = $region80
      $region79: #{net_forward.2} parent=75 // pred_region
        %p2303 = scmp.lt.s32.totalorder %s24, 1
        %s2304 = scalar_select %p2303, %s24, 1
        %s2305 = scalar_lea.vmem %s12, %s2304
      $region80: #{net_forward.2} parent=75 // pred_fallthru
        _
    $region76: #{net_forward.2} parent=5 // pred_fallthru
      _
  $region6: #{net_forward.2} parent=0 // loop_footer
    %s22 = sadd.s32 1, %s18
  $region7: #{net_forward.2} parent=0 // loop_footer_branch
    %17 = sbr.rel target = $region3
  $region8: #{net_forward.2} parent=0 // loop_exit
    _

</llo_original>
